<compile_context>
chip_gen: v5e
topology: v5e:2x2
jax: 0.10.0
libtpu: 0.0.40
codegen_flags: <defaults>
</compile_context>

<pallas_src>
import functools

import jax
import jax.numpy as jnp
from jax.experimental import pallas as pl
from jax.experimental.pallas import tpu as pltpu


# ------------------------------ kernel body -------------------------------

def _conv_pool_layer(act_ref, w_ref, b_ref, slab_ref, conv_ref, next_ref,
                     *, H, W):
    """3x3 VALID conv + bias + ReLU + 2x2/2 max-pool for one image.

    act_ref : (H*W, Cin) or (1, H*W, Cin)  flattened pixel rows (row = i*W+j)
    w_ref   : (9*Cin, Cout) bf16  conv weights, tap-major / Cin-minor
    b_ref   : (1, Cout) f32       bias
    slab_ref: (R, 9*Cin) bf16     im2col scratch, R = H*W - 2*W - 2
    conv_ref: (R, Cout) f32       conv+ReLU output (rows whose anchor has
                                  j > W-3 are garbage and never read)
    next_ref: (Hp*Wp, Cout) f32   pooled activation for the next layer
    """
    Cin = slab_ref.shape[-1] // 9
    R = conv_ref.shape[0]
    batched = len(act_ref.shape) == 3

    # --- im2col: 9 shifted tap copies packed on the lane axis (bf16) -------
    for di in range(3):
        for dj in range(3):
            t = di * 3 + dj
            off = di * W + dj
            if batched:
                tap = act_ref[0, off:off + R, :]
            else:
                tap = act_ref[off:off + R, :]
            slab_ref[:, t * Cin:(t + 1) * Cin] = tap.astype(jnp.bfloat16)

    # --- one MXU matmul (K = 9*Cin) with fused bias + ReLU epilogue --------
    conv_ref[...] = jnp.maximum(
        jnp.dot(slab_ref[...], w_ref[...],
                preferred_element_type=jnp.float32) + b_ref[...], 0.0)

    # --- fused 2x2 stride-2 max-pool + compaction into flat layout ---------
    Hp, Wp = (H - 2) // 2, (W - 2) // 2
    for pi in range(Hp):
        src = 2 * pi * W
        dst = pi * Wp
        if Wp > 1:
            c00 = conv_ref[pl.ds(src, Wp, stride=2), :]
            c01 = conv_ref[pl.ds(src + 1, Wp, stride=2), :]
            c10 = conv_ref[pl.ds(src + W, Wp, stride=2), :]
            c11 = conv_ref[pl.ds(src + W + 1, Wp, stride=2), :]
        else:
            c00 = conv_ref[src:src + 1, :]
            c01 = conv_ref[src + 1:src + 2, :]
            c10 = conv_ref[src + W:src + W + 1, :]
            c11 = conv_ref[src + W + 1:src + W + 2, :]
        next_ref[dst:dst + Wp, :] = jnp.maximum(jnp.maximum(c00, c01),
                                                jnp.maximum(c10, c11))


def _cnn_kernel(x_ref, w1_ref, b1_ref, w2_ref, b2_ref, w3_ref, b3_ref,
                wf_ref, bf_ref, out_ref, *scratch, layer_dims):
    w_refs = (w1_ref, w2_ref, w3_ref)
    b_refs = (b1_ref, b2_ref, b3_ref)
    act = x_ref                                   # (1, H*W, Cin) image block
    for li, (H, W) in enumerate(layer_dims):
        slab_ref, conv_ref, next_ref = scratch[3 * li:3 * li + 3]
        _conv_pool_layer(act, w_refs[li], b_refs[li],
                         slab_ref, conv_ref, next_ref, H=H, W=W)
        act = next_ref
    # act is the (1, 16) flattened feature (final spatial is 1x1); FC in f32.
    out_ref[0] = (jnp.dot(act[...], wf_ref[...],
                          preferred_element_type=jnp.float32) + bf_ref[...])


# -------------------------------- wrapper ---------------------------------

def cnn_forward(x_nchw, params):
    f32, bf16 = jnp.float32, jnp.bfloat16
    N, Cin, H, W = x_nchw.shape
    P1 = H * W
    # NCHW -> (N, H*W, C) flattened-pixel rows (layout glue on tiny input).
    x3 = jnp.transpose(x_nchw, (0, 2, 3, 1)).reshape(N, P1, Cin).astype(f32)

    def conv_w(w):
        # torch OIHW -> HWIO -> (9*Cin, Cout), tap-major / Cin-minor, bf16.
        cout, cin = w.shape[0], w.shape[1]
        return jnp.transpose(w, (2, 3, 1, 0)).reshape(9 * cin, cout).astype(bf16)

    w1, w2, w3 = conv_w(params['w1']), conv_w(params['w2']), conv_w(params['w3'])
    b1 = params['b1'].reshape(1, -1).astype(f32)
    b2 = params['b2'].reshape(1, -1).astype(f32)
    b3 = params['b3'].reshape(1, -1).astype(f32)
    wf = jnp.transpose(params['wf']).astype(f32)        # (16, num_classes)
    bfc = params['bf'].reshape(1, -1).astype(f32)
    nc = wf.shape[1]

    # Per-image layer geometry + scratch (batch is handled by the grid).
    layer_dims = []
    scratch = []
    h, w, cin = H, W, Cin
    for wm in (params['w1'], params['w2'], params['w3']):
        cout = wm.shape[0]
        R = h * w - 2 * w - 2                   # conv rows (incl. unused j)
        hp, wp = (h - 2) // 2, (w - 2) // 2
        layer_dims.append((h, w))
        scratch += [pltpu.VMEM((R, 9 * cin), bf16),      # im2col slab
                    pltpu.VMEM((R, cout), f32),          # conv+relu output
                    pltpu.VMEM((hp * wp, cout), f32)]    # pooled activation
        h, w, cin = hp, wp, cout
    assert h == 1 and w == 1 and cin == wf.shape[0], \
        "input spatial size must reduce to 1x1 to match fc1.in_features"

    kernel = functools.partial(_cnn_kernel, layer_dims=tuple(layer_dims))

    def replicated(arr):
        nd = arr.ndim
        return pl.BlockSpec(arr.shape, lambda n, _nd=nd: (0,) * _nd)

    in_specs = ([pl.BlockSpec((1, P1, Cin), lambda n: (n, 0, 0))]
                + [replicated(a) for a in (w1, b1, w2, b2, w3, b3, wf, bfc)])

    out = pl.pallas_call(
        kernel,
        grid=(N,),
        out_shape=jax.ShapeDtypeStruct((N, 1, nc), f32),
        in_specs=in_specs,
        out_specs=pl.BlockSpec((1, 1, nc), lambda n: (n, 0, 0)),
        scratch_shapes=scratch,
        compiler_params=pltpu.CompilerParams(
            dimension_semantics=("parallel",)),
    )(x3, w1, b1, w2, b2, w3, b3, wf, bfc)
    return out.reshape(N, nc)


# --------------------------- pure-JAX reference ---------------------------

def ref_forward(x_nchw, p):
    dn = ('NHWC', 'HWIO', 'NHWC')

    def conv(x, w, b):
        wh = jnp.transpose(w, (2, 3, 1, 0))
        y = jax.lax.conv_general_dilated(x, wh, (1, 1), 'VALID',
                                         dimension_numbers=dn)
        return jax.nn.relu(y + b)

    def pool(x):
        return jax.lax.reduce_window(x, -jnp.inf, jax.lax.max,
                                     (1, 2, 2, 1), (1, 2, 2, 1), 'VALID')

    x = jnp.transpose(x_nchw, (0, 2, 3, 1))
    x = pool(conv(x, p['w1'], p['b1']))
    x = pool(conv(x, p['w2'], p['b2']))
    x = pool(conv(x, p['w3'], p['b3']))
    x = x.reshape(x.shape[0], -1)
    return x @ p['wf'].T + p['bf']


# --------------------------------- main -----------------------------------

if __name__ == "__main__":
    key = jax.random.PRNGKey(0)
    ks = jax.random.split(key, 9)
    params = {
        'w1': jax.random.normal(ks[0], (16, 3, 3, 3), jnp.float32) * 0.10,
        'b1': jax.random.normal(ks[1], (16,), jnp.float32) * 0.10,
        'w2': jax.random.normal(ks[2], (32, 16, 3, 3), jnp.float32) * 0.05,
        'b2': jax.random.normal(ks[3], (32,), jnp.float32) * 0.05,
        'w3': jax.random.normal(ks[4], (16, 32, 3, 3), jnp.float32) * 0.05,
        'b3': jax.random.normal(ks[5], (16,), jnp.float32) * 0.05,
        'wf': jax.random.normal(ks[6], (2, 16), jnp.float32) * 0.10,
        'bf': jax.random.normal(ks[7], (2,), jnp.float32) * 0.10,
    }
    # Smallest input for which the flattened features equal fc1's in_features=16:
    # 22 -> conv 20 -> pool 10 -> conv 8 -> pool 4 -> conv 2 -> pool 1 (1x1x16).
    x = jax.random.normal(ks[8], (2, 3, 22, 22), jnp.float32)

    out = jax.block_until_ready(jax.jit(cnn_forward)(x, params))
    ref = ref_forward(x, params)

    assert out.shape == (2, 2), out.shape
    # bf16 MXU inputs (f32 accumulation) -> relaxed tolerance vs f32 reference.
    assert jnp.allclose(out, ref, atol=2e-2, rtol=2e-2), (out, ref)
    print("KERNEL_OK")
</pallas_src>

<mosaic_0001>
module attributes {stable_mosaic.version = 11 : i64} {
  func.func @_cnn_kernel(%arg0: i32, %arg1: memref<1x484x3xf32, #tpu.memory_space<vmem>>, %arg2: memref<27x16xbf16, #tpu.memory_space<vmem>>, %arg3: memref<1x16xf32, #tpu.memory_space<vmem>>, %arg4: memref<144x32xbf16, #tpu.memory_space<vmem>>, %arg5: memref<1x32xf32, #tpu.memory_space<vmem>>, %arg6: memref<288x16xbf16, #tpu.memory_space<vmem>>, %arg7: memref<1x16xf32, #tpu.memory_space<vmem>>, %arg8: memref<16x2xf32, #tpu.memory_space<vmem>>, %arg9: memref<1x2xf32, #tpu.memory_space<vmem>>, %arg10: memref<1x1x2xf32, #tpu.memory_space<vmem>>, %arg11: memref<438x27xbf16, #tpu.memory_space<vmem>>, %arg12: memref<438x16xf32, #tpu.memory_space<vmem>>, %arg13: memref<100x16xf32, #tpu.memory_space<vmem>>, %arg14: memref<78x144xbf16, #tpu.memory_space<vmem>>, %arg15: memref<78x32xf32, #tpu.memory_space<vmem>>, %arg16: memref<16x32xf32, #tpu.memory_space<vmem>>, %arg17: memref<6x288xbf16, #tpu.memory_space<vmem>>, %arg18: memref<6x16xf32, #tpu.memory_space<vmem>>, %arg19: memref<1x16xf32, #tpu.memory_space<vmem>>) attributes {dimension_semantics = [#tpu.dimension_semantics<parallel>], iteration_bounds = array<i64: 2>, scalar_prefetch = 0 : i64, scratch_operands = 9 : i64, tpu.core_type = #tpu.core_type<tc>, window_params = [{transform_indices = @transform_0, window_bounds = array<i64: 1, 484, 3>}, {pipeline_mode = #tpu.pipeline_mode<synchronous>, transform_indices = @transform_1, window_bounds = array<i64: 27, 16>}, {pipeline_mode = #tpu.pipeline_mode<synchronous>, transform_indices = @transform_2, window_bounds = array<i64: 1, 16>}, {pipeline_mode = #tpu.pipeline_mode<synchronous>, transform_indices = @transform_3, window_bounds = array<i64: 144, 32>}, {pipeline_mode = #tpu.pipeline_mode<synchronous>, transform_indices = @transform_4, window_bounds = array<i64: 1, 32>}, {pipeline_mode = #tpu.pipeline_mode<synchronous>, transform_indices = @transform_5, window_bounds = array<i64: 288, 16>}, {pipeline_mode = #tpu.pipeline_mode<synchronous>, transform_indices = @transform_6, window_bounds = array<i64: 1, 16>}, {pipeline_mode = #tpu.pipeline_mode<synchronous>, transform_indices = @transform_7, window_bounds = array<i64: 16, 2>}, {pipeline_mode = #tpu.pipeline_mode<synchronous>, transform_indices = @transform_8, window_bounds = array<i64: 1, 2>}, {transform_indices = @transform_9, window_bounds = array<i64: 1, 1, 2>}]} {
    %c0 = arith.constant 0 : index
    %c0_0 = arith.constant 0 : index
    %c0_1 = arith.constant 0 : index
    %0 = vector.load %arg1[%c0, %c0_0, %c0_1] : memref<1x484x3xf32, #tpu.memory_space<vmem>>, vector<1x438x3xf32>
    %1 = vector.shape_cast %0 : vector<1x438x3xf32> to vector<438x3xf32>
    %2 = arith.truncf %1 : vector<438x3xf32> to vector<438x3xbf16>
    %c0_2 = arith.constant 0 : index
    %c0_3 = arith.constant 0 : index
    %3 = vector.load %arg11[%c0_2, %c0_3] : memref<438x27xbf16, #tpu.memory_space<vmem>>, vector<438x3xbf16>
    tpu.vector_store %arg11[%c0_2, %c0_3], %2 {strides = array<i32>} : memref<438x27xbf16, #tpu.memory_space<vmem>>, vector<438x3xbf16>,
    %c0_4 = arith.constant 0 : index
    %c1 = arith.constant 1 : index
    %c0_5 = arith.constant 0 : index
    %4 = vector.load %arg1[%c0_4, %c1, %c0_5] : memref<1x484x3xf32, #tpu.memory_space<vmem>>, vector<1x438x3xf32>
    %5 = vector.shape_cast %4 : vector<1x438x3xf32> to vector<438x3xf32>
    %6 = arith.truncf %5 : vector<438x3xf32> to vector<438x3xbf16>
    %c0_6 = arith.constant 0 : index
    %c3 = arith.constant 3 : index
    %7 = vector.load %arg11[%c0_6, %c3] : memref<438x27xbf16, #tpu.memory_space<vmem>>, vector<438x3xbf16>
    tpu.vector_store %arg11[%c0_6, %c3], %6 {strides = array<i32>} : memref<438x27xbf16, #tpu.memory_space<vmem>>, vector<438x3xbf16>,
    %c0_7 = arith.constant 0 : index
    %c2 = arith.constant 2 : index
    %c0_8 = arith.constant 0 : index
    %8 = vector.load %arg1[%c0_7, %c2, %c0_8] : memref<1x484x3xf32, #tpu.memory_space<vmem>>, vector<1x438x3xf32>
    %9 = vector.shape_cast %8 : vector<1x438x3xf32> to vector<438x3xf32>
    %10 = arith.truncf %9 : vector<438x3xf32> to vector<438x3xbf16>
    %c0_9 = arith.constant 0 : index
    %c6 = arith.constant 6 : index
    %11 = vector.load %arg11[%c0_9, %c6] : memref<438x27xbf16, #tpu.memory_space<vmem>>, vector<438x3xbf16>
    tpu.vector_store %arg11[%c0_9, %c6], %10 {strides = array<i32>} : memref<438x27xbf16, #tpu.memory_space<vmem>>, vector<438x3xbf16>,
    %c0_10 = arith.constant 0 : index
    %c22 = arith.constant 22 : index
    %c0_11 = arith.constant 0 : index
    %12 = vector.load %arg1[%c0_10, %c22, %c0_11] : memref<1x484x3xf32, #tpu.memory_space<vmem>>, vector<1x438x3xf32>
    %13 = vector.shape_cast %12 : vector<1x438x3xf32> to vector<438x3xf32>
    %14 = arith.truncf %13 : vector<438x3xf32> to vector<438x3xbf16>
    %c0_12 = arith.constant 0 : index
    %c9 = arith.constant 9 : index
    %15 = vector.load %arg11[%c0_12, %c9] : memref<438x27xbf16, #tpu.memory_space<vmem>>, vector<438x3xbf16>
    tpu.vector_store %arg11[%c0_12, %c9], %14 {strides = array<i32>} : memref<438x27xbf16, #tpu.memory_space<vmem>>, vector<438x3xbf16>,
    %c0_13 = arith.constant 0 : index
    %c23 = arith.constant 23 : index
    %c0_14 = arith.constant 0 : index
    %16 = vector.load %arg1[%c0_13, %c23, %c0_14] : memref<1x484x3xf32, #tpu.memory_space<vmem>>, vector<1x438x3xf32>
    %17 = vector.shape_cast %16 : vector<1x438x3xf32> to vector<438x3xf32>
    %18 = arith.truncf %17 : vector<438x3xf32> to vector<438x3xbf16>
    %c0_15 = arith.constant 0 : index
    %c12 = arith.constant 12 : index
    %19 = vector.load %arg11[%c0_15, %c12] : memref<438x27xbf16, #tpu.memory_space<vmem>>, vector<438x3xbf16>
    tpu.vector_store %arg11[%c0_15, %c12], %18 {strides = array<i32>} : memref<438x27xbf16, #tpu.memory_space<vmem>>, vector<438x3xbf16>,
    %c0_16 = arith.constant 0 : index
    %c24 = arith.constant 24 : index
    %c0_17 = arith.constant 0 : index
    %20 = vector.load %arg1[%c0_16, %c24, %c0_17] : memref<1x484x3xf32, #tpu.memory_space<vmem>>, vector<1x438x3xf32>
    %21 = vector.shape_cast %20 : vector<1x438x3xf32> to vector<438x3xf32>
    %22 = arith.truncf %21 : vector<438x3xf32> to vector<438x3xbf16>
    %c0_18 = arith.constant 0 : index
    %c15 = arith.constant 15 : index
    %23 = vector.load %arg11[%c0_18, %c15] : memref<438x27xbf16, #tpu.memory_space<vmem>>, vector<438x3xbf16>
    tpu.vector_store %arg11[%c0_18, %c15], %22 {strides = array<i32>} : memref<438x27xbf16, #tpu.memory_space<vmem>>, vector<438x3xbf16>,
    %c0_19 = arith.constant 0 : index
    %c44 = arith.constant 44 : index
    %c0_20 = arith.constant 0 : index
    %24 = vector.load %arg1[%c0_19, %c44, %c0_20] : memref<1x484x3xf32, #tpu.memory_space<vmem>>, vector<1x438x3xf32>
    %25 = vector.shape_cast %24 : vector<1x438x3xf32> to vector<438x3xf32>
    %26 = arith.truncf %25 : vector<438x3xf32> to vector<438x3xbf16>
    %c0_21 = arith.constant 0 : index
    %c18 = arith.constant 18 : index
    %27 = vector.load %arg11[%c0_21, %c18] : memref<438x27xbf16, #tpu.memory_space<vmem>>, vector<438x3xbf16>
    tpu.vector_store %arg11[%c0_21, %c18], %26 {strides = array<i32>} : memref<438x27xbf16, #tpu.memory_space<vmem>>, vector<438x3xbf16>,
    %c0_22 = arith.constant 0 : index
    %c45 = arith.constant 45 : index
    %c0_23 = arith.constant 0 : index
    %28 = vector.load %arg1[%c0_22, %c45, %c0_23] : memref<1x484x3xf32, #tpu.memory_space<vmem>>, vector<1x438x3xf32>
    %29 = vector.shape_cast %28 : vector<1x438x3xf32> to vector<438x3xf32>
    %30 = arith.truncf %29 : vector<438x3xf32> to vector<438x3xbf16>
    %c0_24 = arith.constant 0 : index
    %c21 = arith.constant 21 : index
    %31 = vector.load %arg11[%c0_24, %c21] : memref<438x27xbf16, #tpu.memory_space<vmem>>, vector<438x3xbf16>
    tpu.vector_store %arg11[%c0_24, %c21], %30 {strides = array<i32>} : memref<438x27xbf16, #tpu.memory_space<vmem>>, vector<438x3xbf16>,
    %c0_25 = arith.constant 0 : index
    %c46 = arith.constant 46 : index
    %c0_26 = arith.constant 0 : index
    %32 = vector.load %arg1[%c0_25, %c46, %c0_26] : memref<1x484x3xf32, #tpu.memory_space<vmem>>, vector<1x438x3xf32>
    %33 = vector.shape_cast %32 : vector<1x438x3xf32> to vector<438x3xf32>
    %34 = arith.truncf %33 : vector<438x3xf32> to vector<438x3xbf16>
    %c0_27 = arith.constant 0 : index
    %c24_28 = arith.constant 24 : index
    %35 = vector.load %arg11[%c0_27, %c24_28] : memref<438x27xbf16, #tpu.memory_space<vmem>>, vector<438x3xbf16>
    tpu.vector_store %arg11[%c0_27, %c24_28], %34 {strides = array<i32>} : memref<438x27xbf16, #tpu.memory_space<vmem>>, vector<438x3xbf16>,
    %c0_29 = arith.constant 0 : index
    %c0_30 = arith.constant 0 : index
    %36 = vector.load %arg11[%c0_29, %c0_30] : memref<438x27xbf16, #tpu.memory_space<vmem>>, vector<438x27xbf16>
    %c0_31 = arith.constant 0 : index
    %c0_32 = arith.constant 0 : index
    %37 = vector.load %arg2[%c0_31, %c0_32] : memref<27x16xbf16, #tpu.memory_space<vmem>>, vector<27x16xbf16>
    %cst = arith.constant dense<0.000000e+00> : vector<438x16xf32>
    %38 = tpu.matmul %36, %37, %cst {dimension_numbers = #tpu.dot_dimension_numbers<[1], [0], [0], [1], [0, 0, 1, 1], [], []>} : vector<438x27xbf16>, vector<27x16xbf16>, vector<438x16xf32> -> vector<438x16xf32>
    %c0_33 = arith.constant 0 : index
    %c0_34 = arith.constant 0 : index
    %39 = vector.load %arg3[%c0_33, %c0_34] : memref<1x16xf32, #tpu.memory_space<vmem>>, vector<1x16xf32>
    %40 = vector.broadcast %39 : vector<1x16xf32> to vector<438x16xf32>
    %41 = arith.addf %38, %40 : vector<438x16xf32>
    %cst_35 = arith.constant 0.000000e+00 : f32
    %42 = vector.broadcast %cst_35 : f32 to vector<438x16xf32>
    %43 = arith.maximumf %41, %42 : vector<438x16xf32>
    %c0_36 = arith.constant 0 : index
    %c0_37 = arith.constant 0 : index
    %44 = vector.load %arg12[%c0_36, %c0_37] : memref<438x16xf32, #tpu.memory_space<vmem>>, vector<438x16xf32>
    tpu.vector_store %arg12[%c0_36, %c0_37], %43 {strides = array<i32>} : memref<438x16xf32, #tpu.memory_space<vmem>>, vector<438x16xf32>,
    %c0_38 = arith.constant 0 : index
    %c0_39 = arith.constant 0 : index
    %45 = tpu.strided_load %arg12[%c0_38, %c0_39] {strides = array<i32: 2, 1>} : memref<438x16xf32, #tpu.memory_space<vmem>>, vector<10x16xf32>
    %c1_40 = arith.constant 1 : index
    %c0_41 = arith.constant 0 : index
    %46 = tpu.strided_load %arg12[%c1_40, %c0_41] {strides = array<i32: 2, 1>} : memref<438x16xf32, #tpu.memory_space<vmem>>, vector<10x16xf32>
    %c22_42 = arith.constant 22 : index
    %c0_43 = arith.constant 0 : index
    %47 = tpu.strided_load %arg12[%c22_42, %c0_43] {strides = array<i32: 2, 1>} : memref<438x16xf32, #tpu.memory_space<vmem>>, vector<10x16xf32>
    %c23_44 = arith.constant 23 : index
    %c0_45 = arith.constant 0 : index
    %48 = tpu.strided_load %arg12[%c23_44, %c0_45] {strides = array<i32: 2, 1>} : memref<438x16xf32, #tpu.memory_space<vmem>>, vector<10x16xf32>
    %49 = arith.maximumf %45, %46 : vector<10x16xf32>
    %50 = arith.maximumf %47, %48 : vector<10x16xf32>
    %51 = arith.maximumf %49, %50 : vector<10x16xf32>
    %c0_46 = arith.constant 0 : index
    %c0_47 = arith.constant 0 : index
    %52 = vector.load %arg13[%c0_46, %c0_47] : memref<100x16xf32, #tpu.memory_space<vmem>>, vector<10x16xf32>
    tpu.vector_store %arg13[%c0_46, %c0_47], %51 {strides = array<i32>} : memref<100x16xf32, #tpu.memory_space<vmem>>, vector<10x16xf32>,
    %c44_48 = arith.constant 44 : index
    %c0_49 = arith.constant 0 : index
    %53 = tpu.strided_load %arg12[%c44_48, %c0_49] {strides = array<i32: 2, 1>} : memref<438x16xf32, #tpu.memory_space<vmem>>, vector<10x16xf32>
    %c45_50 = arith.constant 45 : index
    %c0_51 = arith.constant 0 : index
    %54 = tpu.strided_load %arg12[%c45_50, %c0_51] {strides = array<i32: 2, 1>} : memref<438x16xf32, #tpu.memory_space<vmem>>, vector<10x16xf32>
    %c66 = arith.constant 66 : index
    %c0_52 = arith.constant 0 : index
    %55 = tpu.strided_load %arg12[%c66, %c0_52] {strides = array<i32: 2, 1>} : memref<438x16xf32, #tpu.memory_space<vmem>>, vector<10x16xf32>
    %c67 = arith.constant 67 : index
    %c0_53 = arith.constant 0 : index
    %56 = tpu.strided_load %arg12[%c67, %c0_53] {strides = array<i32: 2, 1>} : memref<438x16xf32, #tpu.memory_space<vmem>>, vector<10x16xf32>
    %57 = arith.maximumf %53, %54 : vector<10x16xf32>
    %58 = arith.maximumf %55, %56 : vector<10x16xf32>
    %59 = arith.maximumf %57, %58 : vector<10x16xf32>
    %c10 = arith.constant 10 : index
    %c0_54 = arith.constant 0 : index
    %60 = vector.load %arg13[%c10, %c0_54] : memref<100x16xf32, #tpu.memory_space<vmem>>, vector<10x16xf32>
    tpu.vector_store %arg13[%c10, %c0_54], %59 {strides = array<i32>} : memref<100x16xf32, #tpu.memory_space<vmem>>, vector<10x16xf32>,
    %c88 = arith.constant 88 : index
    %c0_55 = arith.constant 0 : index
    %61 = tpu.strided_load %arg12[%c88, %c0_55] {strides = array<i32: 2, 1>} : memref<438x16xf32, #tpu.memory_space<vmem>>, vector<10x16xf32>
    %c89 = arith.constant 89 : index
    %c0_56 = arith.constant 0 : index
    %62 = tpu.strided_load %arg12[%c89, %c0_56] {strides = array<i32: 2, 1>} : memref<438x16xf32, #tpu.memory_space<vmem>>, vector<10x16xf32>
    %c110 = arith.constant 110 : index
    %c0_57 = arith.constant 0 : index
    %63 = tpu.strided_load %arg12[%c110, %c0_57] {strides = array<i32: 2, 1>} : memref<438x16xf32, #tpu.memory_space<vmem>>, vector<10x16xf32>
    %c111 = arith.constant 111 : index
    %c0_58 = arith.constant 0 : index
    %64 = tpu.strided_load %arg12[%c111, %c0_58] {strides = array<i32: 2, 1>} : memref<438x16xf32, #tpu.memory_space<vmem>>, vector<10x16xf32>
    %65 = arith.maximumf %61, %62 : vector<10x16xf32>
    %66 = arith.maximumf %63, %64 : vector<10x16xf32>
    %67 = arith.maximumf %65, %66 : vector<10x16xf32>
    %c20 = arith.constant 20 : index
    %c0_59 = arith.constant 0 : index
    %68 = vector.load %arg13[%c20, %c0_59] : memref<100x16xf32, #tpu.memory_space<vmem>>, vector<10x16xf32>
    tpu.vector_store %arg13[%c20, %c0_59], %67 {strides = array<i32>} : memref<100x16xf32, #tpu.memory_space<vmem>>, vector<10x16xf32>,
    %c132 = arith.constant 132 : index
    %c0_60 = arith.constant 0 : index
    %69 = tpu.strided_load %arg12[%c132, %c0_60] {strides = array<i32: 2, 1>} : memref<438x16xf32, #tpu.memory_space<vmem>>, vector<10x16xf32>
    %c133 = arith.constant 133 : index
    %c0_61 = arith.constant 0 : index
    %70 = tpu.strided_load %arg12[%c133, %c0_61] {strides = array<i32: 2, 1>} : memref<438x16xf32, #tpu.memory_space<vmem>>, vector<10x16xf32>
    %c154 = arith.constant 154 : index
    %c0_62 = arith.constant 0 : index
    %71 = tpu.strided_load %arg12[%c154, %c0_62] {strides = array<i32: 2, 1>} : memref<438x16xf32, #tpu.memory_space<vmem>>, vector<10x16xf32>
    %c155 = arith.constant 155 : index
    %c0_63 = arith.constant 0 : index
    %72 = tpu.strided_load %arg12[%c155, %c0_63] {strides = array<i32: 2, 1>} : memref<438x16xf32, #tpu.memory_space<vmem>>, vector<10x16xf32>
    %73 = arith.maximumf %69, %70 : vector<10x16xf32>
    %74 = arith.maximumf %71, %72 : vector<10x16xf32>
    %75 = arith.maximumf %73, %74 : vector<10x16xf32>
    %c30 = arith.constant 30 : index
    %c0_64 = arith.constant 0 : index
    %76 = vector.load %arg13[%c30, %c0_64] : memref<100x16xf32, #tpu.memory_space<vmem>>, vector<10x16xf32>
    tpu.vector_store %arg13[%c30, %c0_64], %75 {strides = array<i32>} : memref<100x16xf32, #tpu.memory_space<vmem>>, vector<10x16xf32>,
    %c176 = arith.constant 176 : index
    %c0_65 = arith.constant 0 : index
    %77 = tpu.strided_load %arg12[%c176, %c0_65] {strides = array<i32: 2, 1>} : memref<438x16xf32, #tpu.memory_space<vmem>>, vector<10x16xf32>
    %c177 = arith.constant 177 : index
    %c0_66 = arith.constant 0 : index
    %78 = tpu.strided_load %arg12[%c177, %c0_66] {strides = array<i32: 2, 1>} : memref<438x16xf32, #tpu.memory_space<vmem>>, vector<10x16xf32>
    %c198 = arith.constant 198 : index
    %c0_67 = arith.constant 0 : index
    %79 = tpu.strided_load %arg12[%c198, %c0_67] {strides = array<i32: 2, 1>} : memref<438x16xf32, #tpu.memory_space<vmem>>, vector<10x16xf32>
    %c199 = arith.constant 199 : index
    %c0_68 = arith.constant 0 : index
    %80 = tpu.strided_load %arg12[%c199, %c0_68] {strides = array<i32: 2, 1>} : memref<438x16xf32, #tpu.memory_space<vmem>>, vector<10x16xf32>
    %81 = arith.maximumf %77, %78 : vector<10x16xf32>
    %82 = arith.maximumf %79, %80 : vector<10x16xf32>
    %83 = arith.maximumf %81, %82 : vector<10x16xf32>
    %c40 = arith.constant 40 : index
    %c0_69 = arith.constant 0 : index
    %84 = vector.load %arg13[%c40, %c0_69] : memref<100x16xf32, #tpu.memory_space<vmem>>, vector<10x16xf32>
    tpu.vector_store %arg13[%c40, %c0_69], %83 {strides = array<i32>} : memref<100x16xf32, #tpu.memory_space<vmem>>, vector<10x16xf32>,
    %c220 = arith.constant 220 : index
    %c0_70 = arith.constant 0 : index
    %85 = tpu.strided_load %arg12[%c220, %c0_70] {strides = array<i32: 2, 1>} : memref<438x16xf32, #tpu.memory_space<vmem>>, vector<10x16xf32>
    %c221 = arith.constant 221 : index
    %c0_71 = arith.constant 0 : index
    %86 = tpu.strided_load %arg12[%c221, %c0_71] {strides = array<i32: 2, 1>} : memref<438x16xf32, #tpu.memory_space<vmem>>, vector<10x16xf32>
    %c242 = arith.constant 242 : index
    %c0_72 = arith.constant 0 : index
    %87 = tpu.strided_load %arg12[%c242, %c0_72] {strides = array<i32: 2, 1>} : memref<438x16xf32, #tpu.memory_space<vmem>>, vector<10x16xf32>
    %c243 = arith.constant 243 : index
    %c0_73 = arith.constant 0 : index
    %88 = tpu.strided_load %arg12[%c243, %c0_73] {strides = array<i32: 2, 1>} : memref<438x16xf32, #tpu.memory_space<vmem>>, vector<10x16xf32>
    %89 = arith.maximumf %85, %86 : vector<10x16xf32>
    %90 = arith.maximumf %87, %88 : vector<10x16xf32>
    %91 = arith.maximumf %89, %90 : vector<10x16xf32>
    %c50 = arith.constant 50 : index
    %c0_74 = arith.constant 0 : index
    %92 = vector.load %arg13[%c50, %c0_74] : memref<100x16xf32, #tpu.memory_space<vmem>>, vector<10x16xf32>
    tpu.vector_store %arg13[%c50, %c0_74], %91 {strides = array<i32>} : memref<100x16xf32, #tpu.memory_space<vmem>>, vector<10x16xf32>,
    %c264 = arith.constant 264 : index
    %c0_75 = arith.constant 0 : index
    %93 = tpu.strided_load %arg12[%c264, %c0_75] {strides = array<i32: 2, 1>} : memref<438x16xf32, #tpu.memory_space<vmem>>, vector<10x16xf32>
    %c265 = arith.constant 265 : index
    %c0_76 = arith.constant 0 : index
    %94 = tpu.strided_load %arg12[%c265, %c0_76] {strides = array<i32: 2, 1>} : memref<438x16xf32, #tpu.memory_space<vmem>>, vector<10x16xf32>
    %c286 = arith.constant 286 : index
    %c0_77 = arith.constant 0 : index
    %95 = tpu.strided_load %arg12[%c286, %c0_77] {strides = array<i32: 2, 1>} : memref<438x16xf32, #tpu.memory_space<vmem>>, vector<10x16xf32>
    %c287 = arith.constant 287 : index
    %c0_78 = arith.constant 0 : index
    %96 = tpu.strided_load %arg12[%c287, %c0_78] {strides = array<i32: 2, 1>} : memref<438x16xf32, #tpu.memory_space<vmem>>, vector<10x16xf32>
    %97 = arith.maximumf %93, %94 : vector<10x16xf32>
    %98 = arith.maximumf %95, %96 : vector<10x16xf32>
    %99 = arith.maximumf %97, %98 : vector<10x16xf32>
    %c60 = arith.constant 60 : index
    %c0_79 = arith.constant 0 : index
    %100 = vector.load %arg13[%c60, %c0_79] : memref<100x16xf32, #tpu.memory_space<vmem>>, vector<10x16xf32>
    tpu.vector_store %arg13[%c60, %c0_79], %99 {strides = array<i32>} : memref<100x16xf32, #tpu.memory_space<vmem>>, vector<10x16xf32>,
    %c308 = arith.constant 308 : index
    %c0_80 = arith.constant 0 : index
    %101 = tpu.strided_load %arg12[%c308, %c0_80] {strides = array<i32: 2, 1>} : memref<438x16xf32, #tpu.memory_space<vmem>>, vector<10x16xf32>
    %c309 = arith.constant 309 : index
    %c0_81 = arith.constant 0 : index
    %102 = tpu.strided_load %arg12[%c309, %c0_81] {strides = array<i32: 2, 1>} : memref<438x16xf32, #tpu.memory_space<vmem>>, vector<10x16xf32>
    %c330 = arith.constant 330 : index
    %c0_82 = arith.constant 0 : index
    %103 = tpu.strided_load %arg12[%c330, %c0_82] {strides = array<i32: 2, 1>} : memref<438x16xf32, #tpu.memory_space<vmem>>, vector<10x16xf32>
    %c331 = arith.constant 331 : index
    %c0_83 = arith.constant 0 : index
    %104 = tpu.strided_load %arg12[%c331, %c0_83] {strides = array<i32: 2, 1>} : memref<438x16xf32, #tpu.memory_space<vmem>>, vector<10x16xf32>
    %105 = arith.maximumf %101, %102 : vector<10x16xf32>
    %106 = arith.maximumf %103, %104 : vector<10x16xf32>
    %107 = arith.maximumf %105, %106 : vector<10x16xf32>
    %c70 = arith.constant 70 : index
    %c0_84 = arith.constant 0 : index
    %108 = vector.load %arg13[%c70, %c0_84] : memref<100x16xf32, #tpu.memory_space<vmem>>, vector<10x16xf32>
    tpu.vector_store %arg13[%c70, %c0_84], %107 {strides = array<i32>} : memref<100x16xf32, #tpu.memory_space<vmem>>, vector<10x16xf32>,
    %c352 = arith.constant 352 : index
    %c0_85 = arith.constant 0 : index
    %109 = tpu.strided_load %arg12[%c352, %c0_85] {strides = array<i32: 2, 1>} : memref<438x16xf32, #tpu.memory_space<vmem>>, vector<10x16xf32>
    %c353 = arith.constant 353 : index
    %c0_86 = arith.constant 0 : index
    %110 = tpu.strided_load %arg12[%c353, %c0_86] {strides = array<i32: 2, 1>} : memref<438x16xf32, #tpu.memory_space<vmem>>, vector<10x16xf32>
    %c374 = arith.constant 374 : index
    %c0_87 = arith.constant 0 : index
    %111 = tpu.strided_load %arg12[%c374, %c0_87] {strides = array<i32: 2, 1>} : memref<438x16xf32, #tpu.memory_space<vmem>>, vector<10x16xf32>
    %c375 = arith.constant 375 : index
    %c0_88 = arith.constant 0 : index
    %112 = tpu.strided_load %arg12[%c375, %c0_88] {strides = array<i32: 2, 1>} : memref<438x16xf32, #tpu.memory_space<vmem>>, vector<10x16xf32>
    %113 = arith.maximumf %109, %110 : vector<10x16xf32>
    %114 = arith.maximumf %111, %112 : vector<10x16xf32>
    %115 = arith.maximumf %113, %114 : vector<10x16xf32>
    %c80 = arith.constant 80 : index
    %c0_89 = arith.constant 0 : index
    %116 = vector.load %arg13[%c80, %c0_89] : memref<100x16xf32, #tpu.memory_space<vmem>>, vector<10x16xf32>
    tpu.vector_store %arg13[%c80, %c0_89], %115 {strides = array<i32>} : memref<100x16xf32, #tpu.memory_space<vmem>>, vector<10x16xf32>,
    %c396 = arith.constant 396 : index
    %c0_90 = arith.constant 0 : index
    %117 = tpu.strided_load %arg12[%c396, %c0_90] {strides = array<i32: 2, 1>} : memref<438x16xf32, #tpu.memory_space<vmem>>, vector<10x16xf32>
    %c397 = arith.constant 397 : index
    %c0_91 = arith.constant 0 : index
    %118 = tpu.strided_load %arg12[%c397, %c0_91] {strides = array<i32: 2, 1>} : memref<438x16xf32, #tpu.memory_space<vmem>>, vector<10x16xf32>
    %c418 = arith.constant 418 : index
    %c0_92 = arith.constant 0 : index
    %119 = tpu.strided_load %arg12[%c418, %c0_92] {strides = array<i32: 2, 1>} : memref<438x16xf32, #tpu.memory_space<vmem>>, vector<10x16xf32>
    %c419 = arith.constant 419 : index
    %c0_93 = arith.constant 0 : index
    %120 = tpu.strided_load %arg12[%c419, %c0_93] {strides = array<i32: 2, 1>} : memref<438x16xf32, #tpu.memory_space<vmem>>, vector<10x16xf32>
    %121 = arith.maximumf %117, %118 : vector<10x16xf32>
    %122 = arith.maximumf %119, %120 : vector<10x16xf32>
    %123 = arith.maximumf %121, %122 : vector<10x16xf32>
    %c90 = arith.constant 90 : index
    %c0_94 = arith.constant 0 : index
    %124 = vector.load %arg13[%c90, %c0_94] : memref<100x16xf32, #tpu.memory_space<vmem>>, vector<10x16xf32>
    tpu.vector_store %arg13[%c90, %c0_94], %123 {strides = array<i32>} : memref<100x16xf32, #tpu.memory_space<vmem>>, vector<10x16xf32>,
    %c0_95 = arith.constant 0 : index
    %c0_96 = arith.constant 0 : index
    %125 = vector.load %arg13[%c0_95, %c0_96] : memref<100x16xf32, #tpu.memory_space<vmem>>, vector<78x16xf32>
    %126 = arith.truncf %125 : vector<78x16xf32> to vector<78x16xbf16>
    %c0_97 = arith.constant 0 : index
    %c0_98 = arith.constant 0 : index
    %127 = vector.load %arg14[%c0_97, %c0_98] : memref<78x144xbf16, #tpu.memory_space<vmem>>, vector<78x16xbf16>
    tpu.vector_store %arg14[%c0_97, %c0_98], %126 {strides = array<i32>} : memref<78x144xbf16, #tpu.memory_space<vmem>>, vector<78x16xbf16>,
    %c1_99 = arith.constant 1 : index
    %c0_100 = arith.constant 0 : index
    %128 = vector.load %arg13[%c1_99, %c0_100] : memref<100x16xf32, #tpu.memory_space<vmem>>, vector<78x16xf32>
    %129 = arith.truncf %128 : vector<78x16xf32> to vector<78x16xbf16>
    %c0_101 = arith.constant 0 : index
    %c16 = arith.constant 16 : index
    %130 = vector.load %arg14[%c0_101, %c16] : memref<78x144xbf16, #tpu.memory_space<vmem>>, vector<78x16xbf16>
    tpu.vector_store %arg14[%c0_101, %c16], %129 {strides = array<i32>} : memref<78x144xbf16, #tpu.memory_space<vmem>>, vector<78x16xbf16>,
    %c2_102 = arith.constant 2 : index
    %c0_103 = arith.constant 0 : index
    %131 = vector.load %arg13[%c2_102, %c0_103] : memref<100x16xf32, #tpu.memory_space<vmem>>, vector<78x16xf32>
    %132 = arith.truncf %131 : vector<78x16xf32> to vector<78x16xbf16>
    %c0_104 = arith.constant 0 : index
    %c32 = arith.constant 32 : index
    %133 = vector.load %arg14[%c0_104, %c32] : memref<78x144xbf16, #tpu.memory_space<vmem>>, vector<78x16xbf16>
    tpu.vector_store %arg14[%c0_104, %c32], %132 {strides = array<i32>} : memref<78x144xbf16, #tpu.memory_space<vmem>>, vector<78x16xbf16>,
    %c10_105 = arith.constant 10 : index
    %c0_106 = arith.constant 0 : index
    %134 = vector.load %arg13[%c10_105, %c0_106] : memref<100x16xf32, #tpu.memory_space<vmem>>, vector<78x16xf32>
    %135 = arith.truncf %134 : vector<78x16xf32> to vector<78x16xbf16>
    %c0_107 = arith.constant 0 : index
    %c48 = arith.constant 48 : index
    %136 = vector.load %arg14[%c0_107, %c48] : memref<78x144xbf16, #tpu.memory_space<vmem>>, vector<78x16xbf16>
    tpu.vector_store %arg14[%c0_107, %c48], %135 {strides = array<i32>} : memref<78x144xbf16, #tpu.memory_space<vmem>>, vector<78x16xbf16>,
    %c11 = arith.constant 11 : index
    %c0_108 = arith.constant 0 : index
    %137 = vector.load %arg13[%c11, %c0_108] : memref<100x16xf32, #tpu.memory_space<vmem>>, vector<78x16xf32>
    %138 = arith.truncf %137 : vector<78x16xf32> to vector<78x16xbf16>
    %c0_109 = arith.constant 0 : index
    %c64 = arith.constant 64 : index
    %139 = vector.load %arg14[%c0_109, %c64] : memref<78x144xbf16, #tpu.memory_space<vmem>>, vector<78x16xbf16>
    tpu.vector_store %arg14[%c0_109, %c64], %138 {strides = array<i32>} : memref<78x144xbf16, #tpu.memory_space<vmem>>, vector<78x16xbf16>,
    %c12_110 = arith.constant 12 : index
    %c0_111 = arith.constant 0 : index
    %140 = vector.load %arg13[%c12_110, %c0_111] : memref<100x16xf32, #tpu.memory_space<vmem>>, vector<78x16xf32>
    %141 = arith.truncf %140 : vector<78x16xf32> to vector<78x16xbf16>
    %c0_112 = arith.constant 0 : index
    %c80_113 = arith.constant 80 : index
    %142 = vector.load %arg14[%c0_112, %c80_113] : memref<78x144xbf16, #tpu.memory_space<vmem>>, vector<78x16xbf16>
    tpu.vector_store %arg14[%c0_112, %c80_113], %141 {strides = array<i32>} : memref<78x144xbf16, #tpu.memory_space<vmem>>, vector<78x16xbf16>,
    %c20_114 = arith.constant 20 : index
    %c0_115 = arith.constant 0 : index
    %143 = vector.load %arg13[%c20_114, %c0_115] : memref<100x16xf32, #tpu.memory_space<vmem>>, vector<78x16xf32>
    %144 = arith.truncf %143 : vector<78x16xf32> to vector<78x16xbf16>
    %c0_116 = arith.constant 0 : index
    %c96 = arith.constant 96 : index
    %145 = vector.load %arg14[%c0_116, %c96] : memref<78x144xbf16, #tpu.memory_space<vmem>>, vector<78x16xbf16>
    tpu.vector_store %arg14[%c0_116, %c96], %144 {strides = array<i32>} : memref<78x144xbf16, #tpu.memory_space<vmem>>, vector<78x16xbf16>,
    %c21_117 = arith.constant 21 : index
    %c0_118 = arith.constant 0 : index
    %146 = vector.load %arg13[%c21_117, %c0_118] : memref<100x16xf32, #tpu.memory_space<vmem>>, vector<78x16xf32>
    %147 = arith.truncf %146 : vector<78x16xf32> to vector<78x16xbf16>
    %c0_119 = arith.constant 0 : index
    %c112 = arith.constant 112 : index
    %148 = vector.load %arg14[%c0_119, %c112] : memref<78x144xbf16, #tpu.memory_space<vmem>>, vector<78x16xbf16>
    tpu.vector_store %arg14[%c0_119, %c112], %147 {strides = array<i32>} : memref<78x144xbf16, #tpu.memory_space<vmem>>, vector<78x16xbf16>,
    %c22_120 = arith.constant 22 : index
    %c0_121 = arith.constant 0 : index
    %149 = vector.load %arg13[%c22_120, %c0_121] : memref<100x16xf32, #tpu.memory_space<vmem>>, vector<78x16xf32>
    %150 = arith.truncf %149 : vector<78x16xf32> to vector<78x16xbf16>
    %c0_122 = arith.constant 0 : index
    %c128 = arith.constant 128 : index
    %151 = vector.load %arg14[%c0_122, %c128] : memref<78x144xbf16, #tpu.memory_space<vmem>>, vector<78x16xbf16>
    tpu.vector_store %arg14[%c0_122, %c128], %150 {strides = array<i32>} : memref<78x144xbf16, #tpu.memory_space<vmem>>, vector<78x16xbf16>,
    %c0_123 = arith.constant 0 : index
    %c0_124 = arith.constant 0 : index
    %152 = vector.load %arg14[%c0_123, %c0_124] : memref<78x144xbf16, #tpu.memory_space<vmem>>, vector<78x144xbf16>
    %c0_125 = arith.constant 0 : index
    %c0_126 = arith.constant 0 : index
    %153 = vector.load %arg4[%c0_125, %c0_126] : memref<144x32xbf16, #tpu.memory_space<vmem>>, vector<144x32xbf16>
    %cst_127 = arith.constant dense<0.000000e+00> : vector<78x32xf32>
    %154 = tpu.matmul %152, %153, %cst_127 {dimension_numbers = #tpu.dot_dimension_numbers<[1], [0], [0], [1], [0, 0, 1, 1], [], []>} : vector<78x144xbf16>, vector<144x32xbf16>, vector<78x32xf32> -> vector<78x32xf32>
    %c0_128 = arith.constant 0 : index
    %c0_129 = arith.constant 0 : index
    %155 = vector.load %arg5[%c0_128, %c0_129] : memref<1x32xf32, #tpu.memory_space<vmem>>, vector<1x32xf32>
    %156 = vector.broadcast %155 : vector<1x32xf32> to vector<78x32xf32>
    %157 = arith.addf %154, %156 : vector<78x32xf32>
    %cst_130 = arith.constant 0.000000e+00 : f32
    %158 = vector.broadcast %cst_130 : f32 to vector<78x32xf32>
    %159 = arith.maximumf %157, %158 : vector<78x32xf32>
    %c0_131 = arith.constant 0 : index
    %c0_132 = arith.constant 0 : index
    %160 = vector.load %arg15[%c0_131, %c0_132] : memref<78x32xf32, #tpu.memory_space<vmem>>, vector<78x32xf32>
    tpu.vector_store %arg15[%c0_131, %c0_132], %159 {strides = array<i32>} : memref<78x32xf32, #tpu.memory_space<vmem>>, vector<78x32xf32>,
    %c0_133 = arith.constant 0 : index
    %c0_134 = arith.constant 0 : index
    %161 = tpu.strided_load %arg15[%c0_133, %c0_134] {strides = array<i32: 2, 1>} : memref<78x32xf32, #tpu.memory_space<vmem>>, vector<4x32xf32>
    %c1_135 = arith.constant 1 : index
    %c0_136 = arith.constant 0 : index
    %162 = tpu.strided_load %arg15[%c1_135, %c0_136] {strides = array<i32: 2, 1>} : memref<78x32xf32, #tpu.memory_space<vmem>>, vector<4x32xf32>
    %c10_137 = arith.constant 10 : index
    %c0_138 = arith.constant 0 : index
    %163 = tpu.strided_load %arg15[%c10_137, %c0_138] {strides = array<i32: 2, 1>} : memref<78x32xf32, #tpu.memory_space<vmem>>, vector<4x32xf32>
    %c11_139 = arith.constant 11 : index
    %c0_140 = arith.constant 0 : index
    %164 = tpu.strided_load %arg15[%c11_139, %c0_140] {strides = array<i32: 2, 1>} : memref<78x32xf32, #tpu.memory_space<vmem>>, vector<4x32xf32>
    %165 = arith.maximumf %161, %162 : vector<4x32xf32>
    %166 = arith.maximumf %163, %164 : vector<4x32xf32>
    %167 = arith.maximumf %165, %166 : vector<4x32xf32>
    %c0_141 = arith.constant 0 : index
    %c0_142 = arith.constant 0 : index
    %168 = vector.load %arg16[%c0_141, %c0_142] : memref<16x32xf32, #tpu.memory_space<vmem>>, vector<4x32xf32>
    tpu.vector_store %arg16[%c0_141, %c0_142], %167 {strides = array<i32>} : memref<16x32xf32, #tpu.memory_space<vmem>>, vector<4x32xf32>,
    %c20_143 = arith.constant 20 : index
    %c0_144 = arith.constant 0 : index
    %169 = tpu.strided_load %arg15[%c20_143, %c0_144] {strides = array<i32: 2, 1>} : memref<78x32xf32, #tpu.memory_space<vmem>>, vector<4x32xf32>
    %c21_145 = arith.constant 21 : index
    %c0_146 = arith.constant 0 : index
    %170 = tpu.strided_load %arg15[%c21_145, %c0_146] {strides = array<i32: 2, 1>} : memref<78x32xf32, #tpu.memory_space<vmem>>, vector<4x32xf32>
    %c30_147 = arith.constant 30 : index
    %c0_148 = arith.constant 0 : index
    %171 = tpu.strided_load %arg15[%c30_147, %c0_148] {strides = array<i32: 2, 1>} : memref<78x32xf32, #tpu.memory_space<vmem>>, vector<4x32xf32>
    %c31 = arith.constant 31 : index
    %c0_149 = arith.constant 0 : index
    %172 = tpu.strided_load %arg15[%c31, %c0_149] {strides = array<i32: 2, 1>} : memref<78x32xf32, #tpu.memory_space<vmem>>, vector<4x32xf32>
    %173 = arith.maximumf %169, %170 : vector<4x32xf32>
    %174 = arith.maximumf %171, %172 : vector<4x32xf32>
    %175 = arith.maximumf %173, %174 : vector<4x32xf32>
    %c4 = arith.constant 4 : index
    %c0_150 = arith.constant 0 : index
    %176 = vector.load %arg16[%c4, %c0_150] : memref<16x32xf32, #tpu.memory_space<vmem>>, vector<4x32xf32>
    tpu.vector_store %arg16[%c4, %c0_150], %175 {strides = array<i32>} : memref<16x32xf32, #tpu.memory_space<vmem>>, vector<4x32xf32>,
    %c40_151 = arith.constant 40 : index
    %c0_152 = arith.constant 0 : index
    %177 = tpu.strided_load %arg15[%c40_151, %c0_152] {strides = array<i32: 2, 1>} : memref<78x32xf32, #tpu.memory_space<vmem>>, vector<4x32xf32>
    %c41 = arith.constant 41 : index
    %c0_153 = arith.constant 0 : index
    %178 = tpu.strided_load %arg15[%c41, %c0_153] {strides = array<i32: 2, 1>} : memref<78x32xf32, #tpu.memory_space<vmem>>, vector<4x32xf32>
    %c50_154 = arith.constant 50 : index
    %c0_155 = arith.constant 0 : index
    %179 = tpu.strided_load %arg15[%c50_154, %c0_155] {strides = array<i32: 2, 1>} : memref<78x32xf32, #tpu.memory_space<vmem>>, vector<4x32xf32>
    %c51 = arith.constant 51 : index
    %c0_156 = arith.constant 0 : index
    %180 = tpu.strided_load %arg15[%c51, %c0_156] {strides = array<i32: 2, 1>} : memref<78x32xf32, #tpu.memory_space<vmem>>, vector<4x32xf32>
    %181 = arith.maximumf %177, %178 : vector<4x32xf32>
    %182 = arith.maximumf %179, %180 : vector<4x32xf32>
    %183 = arith.maximumf %181, %182 : vector<4x32xf32>
    %c8 = arith.constant 8 : index
    %c0_157 = arith.constant 0 : index
    %184 = vector.load %arg16[%c8, %c0_157] : memref<16x32xf32, #tpu.memory_space<vmem>>, vector<4x32xf32>
    tpu.vector_store %arg16[%c8, %c0_157], %183 {strides = array<i32>} : memref<16x32xf32, #tpu.memory_space<vmem>>, vector<4x32xf32>,
    %c60_158 = arith.constant 60 : index
    %c0_159 = arith.constant 0 : index
    %185 = tpu.strided_load %arg15[%c60_158, %c0_159] {strides = array<i32: 2, 1>} : memref<78x32xf32, #tpu.memory_space<vmem>>, vector<4x32xf32>
    %c61 = arith.constant 61 : index
    %c0_160 = arith.constant 0 : index
    %186 = tpu.strided_load %arg15[%c61, %c0_160] {strides = array<i32: 2, 1>} : memref<78x32xf32, #tpu.memory_space<vmem>>, vector<4x32xf32>
    %c70_161 = arith.constant 70 : index
    %c0_162 = arith.constant 0 : index
    %187 = tpu.strided_load %arg15[%c70_161, %c0_162] {strides = array<i32: 2, 1>} : memref<78x32xf32, #tpu.memory_space<vmem>>, vector<4x32xf32>
    %c71 = arith.constant 71 : index
    %c0_163 = arith.constant 0 : index
    %188 = tpu.strided_load %arg15[%c71, %c0_163] {strides = array<i32: 2, 1>} : memref<78x32xf32, #tpu.memory_space<vmem>>, vector<4x32xf32>
    %189 = arith.maximumf %185, %186 : vector<4x32xf32>
    %190 = arith.maximumf %187, %188 : vector<4x32xf32>
    %191 = arith.maximumf %189, %190 : vector<4x32xf32>
    %c12_164 = arith.constant 12 : index
    %c0_165 = arith.constant 0 : index
    %192 = vector.load %arg16[%c12_164, %c0_165] : memref<16x32xf32, #tpu.memory_space<vmem>>, vector<4x32xf32>
    tpu.vector_store %arg16[%c12_164, %c0_165], %191 {strides = array<i32>} : memref<16x32xf32, #tpu.memory_space<vmem>>, vector<4x32xf32>,
    %c0_166 = arith.constant 0 : index
    %c0_167 = arith.constant 0 : index
    %193 = vector.load %arg16[%c0_166, %c0_167] : memref<16x32xf32, #tpu.memory_space<vmem>>, vector<6x32xf32>
    %194 = arith.truncf %193 : vector<6x32xf32> to vector<6x32xbf16>
    %c0_168 = arith.constant 0 : index
    %c0_169 = arith.constant 0 : index
    %195 = vector.load %arg17[%c0_168, %c0_169] : memref<6x288xbf16, #tpu.memory_space<vmem>>, vector<6x32xbf16>
    tpu.vector_store %arg17[%c0_168, %c0_169], %194 {strides = array<i32>} : memref<6x288xbf16, #tpu.memory_space<vmem>>, vector<6x32xbf16>,
    %c1_170 = arith.constant 1 : index
    %c0_171 = arith.constant 0 : index
    %196 = vector.load %arg16[%c1_170, %c0_171] : memref<16x32xf32, #tpu.memory_space<vmem>>, vector<6x32xf32>
    %197 = arith.truncf %196 : vector<6x32xf32> to vector<6x32xbf16>
    %c0_172 = arith.constant 0 : index
    %c32_173 = arith.constant 32 : index
    %198 = vector.load %arg17[%c0_172, %c32_173] : memref<6x288xbf16, #tpu.memory_space<vmem>>, vector<6x32xbf16>
    tpu.vector_store %arg17[%c0_172, %c32_173], %197 {strides = array<i32>} : memref<6x288xbf16, #tpu.memory_space<vmem>>, vector<6x32xbf16>,
    %c2_174 = arith.constant 2 : index
    %c0_175 = arith.constant 0 : index
    %199 = vector.load %arg16[%c2_174, %c0_175] : memref<16x32xf32, #tpu.memory_space<vmem>>, vector<6x32xf32>
    %200 = arith.truncf %199 : vector<6x32xf32> to vector<6x32xbf16>
    %c0_176 = arith.constant 0 : index
    %c64_177 = arith.constant 64 : index
    %201 = vector.load %arg17[%c0_176, %c64_177] : memref<6x288xbf16, #tpu.memory_space<vmem>>, vector<6x32xbf16>
    tpu.vector_store %arg17[%c0_176, %c64_177], %200 {strides = array<i32>} : memref<6x288xbf16, #tpu.memory_space<vmem>>, vector<6x32xbf16>,
    %c4_178 = arith.constant 4 : index
    %c0_179 = arith.constant 0 : index
    %202 = vector.load %arg16[%c4_178, %c0_179] : memref<16x32xf32, #tpu.memory_space<vmem>>, vector<6x32xf32>
    %203 = arith.truncf %202 : vector<6x32xf32> to vector<6x32xbf16>
    %c0_180 = arith.constant 0 : index
    %c96_181 = arith.constant 96 : index
    %204 = vector.load %arg17[%c0_180, %c96_181] : memref<6x288xbf16, #tpu.memory_space<vmem>>, vector<6x32xbf16>
    tpu.vector_store %arg17[%c0_180, %c96_181], %203 {strides = array<i32>} : memref<6x288xbf16, #tpu.memory_space<vmem>>, vector<6x32xbf16>,
    %c5 = arith.constant 5 : index
    %c0_182 = arith.constant 0 : index
    %205 = vector.load %arg16[%c5, %c0_182] : memref<16x32xf32, #tpu.memory_space<vmem>>, vector<6x32xf32>
    %206 = arith.truncf %205 : vector<6x32xf32> to vector<6x32xbf16>
    %c0_183 = arith.constant 0 : index
    %c128_184 = arith.constant 128 : index
    %207 = vector.load %arg17[%c0_183, %c128_184] : memref<6x288xbf16, #tpu.memory_space<vmem>>, vector<6x32xbf16>
    tpu.vector_store %arg17[%c0_183, %c128_184], %206 {strides = array<i32>} : memref<6x288xbf16, #tpu.memory_space<vmem>>, vector<6x32xbf16>,
    %c6_185 = arith.constant 6 : index
    %c0_186 = arith.constant 0 : index
    %208 = vector.load %arg16[%c6_185, %c0_186] : memref<16x32xf32, #tpu.memory_space<vmem>>, vector<6x32xf32>
    %209 = arith.truncf %208 : vector<6x32xf32> to vector<6x32xbf16>
    %c0_187 = arith.constant 0 : index
    %c160 = arith.constant 160 : index
    %210 = vector.load %arg17[%c0_187, %c160] : memref<6x288xbf16, #tpu.memory_space<vmem>>, vector<6x32xbf16>
    tpu.vector_store %arg17[%c0_187, %c160], %209 {strides = array<i32>} : memref<6x288xbf16, #tpu.memory_space<vmem>>, vector<6x32xbf16>,
    %c8_188 = arith.constant 8 : index
    %c0_189 = arith.constant 0 : index
    %211 = vector.load %arg16[%c8_188, %c0_189] : memref<16x32xf32, #tpu.memory_space<vmem>>, vector<6x32xf32>
    %212 = arith.truncf %211 : vector<6x32xf32> to vector<6x32xbf16>
    %c0_190 = arith.constant 0 : index
    %c192 = arith.constant 192 : index
    %213 = vector.load %arg17[%c0_190, %c192] : memref<6x288xbf16, #tpu.memory_space<vmem>>, vector<6x32xbf16>
    tpu.vector_store %arg17[%c0_190, %c192], %212 {strides = array<i32>} : memref<6x288xbf16, #tpu.memory_space<vmem>>, vector<6x32xbf16>,
    %c9_191 = arith.constant 9 : index
    %c0_192 = arith.constant 0 : index
    %214 = vector.load %arg16[%c9_191, %c0_192] : memref<16x32xf32, #tpu.memory_space<vmem>>, vector<6x32xf32>
    %215 = arith.truncf %214 : vector<6x32xf32> to vector<6x32xbf16>
    %c0_193 = arith.constant 0 : index
    %c224 = arith.constant 224 : index
    %216 = vector.load %arg17[%c0_193, %c224] : memref<6x288xbf16, #tpu.memory_space<vmem>>, vector<6x32xbf16>
    tpu.vector_store %arg17[%c0_193, %c224], %215 {strides = array<i32>} : memref<6x288xbf16, #tpu.memory_space<vmem>>, vector<6x32xbf16>,
    %c10_194 = arith.constant 10 : index
    %c0_195 = arith.constant 0 : index
    %217 = vector.load %arg16[%c10_194, %c0_195] : memref<16x32xf32, #tpu.memory_space<vmem>>, vector<6x32xf32>
    %218 = arith.truncf %217 : vector<6x32xf32> to vector<6x32xbf16>
    %c0_196 = arith.constant 0 : index
    %c256 = arith.constant 256 : index
    %219 = vector.load %arg17[%c0_196, %c256] : memref<6x288xbf16, #tpu.memory_space<vmem>>, vector<6x32xbf16>
    tpu.vector_store %arg17[%c0_196, %c256], %218 {strides = array<i32>} : memref<6x288xbf16, #tpu.memory_space<vmem>>, vector<6x32xbf16>,
    %c0_197 = arith.constant 0 : index
    %c0_198 = arith.constant 0 : index
    %220 = vector.load %arg17[%c0_197, %c0_198] : memref<6x288xbf16, #tpu.memory_space<vmem>>, vector<6x288xbf16>
    %c0_199 = arith.constant 0 : index
    %c0_200 = arith.constant 0 : index
    %221 = vector.load %arg6[%c0_199, %c0_200] : memref<288x16xbf16, #tpu.memory_space<vmem>>, vector<288x16xbf16>
    %cst_201 = arith.constant dense<0.000000e+00> : vector<6x16xf32>
    %222 = tpu.matmul %220, %221, %cst_201 {dimension_numbers = #tpu.dot_dimension_numbers<[1], [0], [0], [1], [0, 0, 1, 1], [], []>} : vector<6x288xbf16>, vector<288x16xbf16>, vector<6x16xf32> -> vector<6x16xf32>
    %c0_202 = arith.constant 0 : index
    %c0_203 = arith.constant 0 : index
    %223 = vector.load %arg7[%c0_202, %c0_203] : memref<1x16xf32, #tpu.memory_space<vmem>>, vector<1x16xf32>
    %224 = vector.broadcast %223 : vector<1x16xf32> to vector<6x16xf32>
    %225 = arith.addf %222, %224 : vector<6x16xf32>
    %cst_204 = arith.constant 0.000000e+00 : f32
    %226 = vector.broadcast %cst_204 : f32 to vector<6x16xf32>
    %227 = arith.maximumf %225, %226 : vector<6x16xf32>
    %c0_205 = arith.constant 0 : index
    %c0_206 = arith.constant 0 : index
    %228 = vector.load %arg18[%c0_205, %c0_206] : memref<6x16xf32, #tpu.memory_space<vmem>>, vector<6x16xf32>
    tpu.vector_store %arg18[%c0_205, %c0_206], %227 {strides = array<i32>} : memref<6x16xf32, #tpu.memory_space<vmem>>, vector<6x16xf32>,
    %c0_207 = arith.constant 0 : index
    %c0_208 = arith.constant 0 : index
    %229 = vector.load %arg18[%c0_207, %c0_208] : memref<6x16xf32, #tpu.memory_space<vmem>>, vector<1x16xf32>
    %c1_209 = arith.constant 1 : index
    %c0_210 = arith.constant 0 : index
    %230 = vector.load %arg18[%c1_209, %c0_210] : memref<6x16xf32, #tpu.memory_space<vmem>>, vector<1x16xf32>
    %c4_211 = arith.constant 4 : index
    %c0_212 = arith.constant 0 : index
    %231 = vector.load %arg18[%c4_211, %c0_212] : memref<6x16xf32, #tpu.memory_space<vmem>>, vector<1x16xf32>
    %c5_213 = arith.constant 5 : index
    %c0_214 = arith.constant 0 : index
    %232 = vector.load %arg18[%c5_213, %c0_214] : memref<6x16xf32, #tpu.memory_space<vmem>>, vector<1x16xf32>
    %233 = arith.maximumf %229, %230 : vector<1x16xf32>
    %234 = arith.maximumf %231, %232 : vector<1x16xf32>
    %235 = arith.maximumf %233, %234 : vector<1x16xf32>
    %c0_215 = arith.constant 0 : index
    %c0_216 = arith.constant 0 : index
    %236 = vector.load %arg19[%c0_215, %c0_216] : memref<1x16xf32, #tpu.memory_space<vmem>>, vector<1x16xf32>
    tpu.vector_store %arg19[%c0_215, %c0_216], %235 {strides = array<i32>} : memref<1x16xf32, #tpu.memory_space<vmem>>, vector<1x16xf32>,
    %c0_217 = arith.constant 0 : index
    %c0_218 = arith.constant 0 : index
    %237 = vector.load %arg19[%c0_217, %c0_218] : memref<1x16xf32, #tpu.memory_space<vmem>>, vector<1x16xf32>
    %c0_219 = arith.constant 0 : index
    %c0_220 = arith.constant 0 : index
    %238 = vector.load %arg8[%c0_219, %c0_220] : memref<16x2xf32, #tpu.memory_space<vmem>>, vector<16x2xf32>
    %cst_221 = arith.constant dense<0.000000e+00> : vector<1x2xf32>
    %239 = tpu.matmul %237, %238, %cst_221 {dimension_numbers = #tpu.dot_dimension_numbers<[1], [0], [0], [1], [0, 0, 1, 1], [], []>} : vector<1x16xf32>, vector<16x2xf32>, vector<1x2xf32> -> vector<1x2xf32>
    %c0_222 = arith.constant 0 : index
    %c0_223 = arith.constant 0 : index
    %240 = vector.load %arg9[%c0_222, %c0_223] : memref<1x2xf32, #tpu.memory_space<vmem>>, vector<1x2xf32>
    %241 = arith.addf %239, %240 : vector<1x2xf32>
    %c0_224 = arith.constant 0 : index
    %c0_225 = arith.constant 0 : index
    %c0_226 = arith.constant 0 : index
    %242 = vector.load %arg10[%c0_224, %c0_225, %c0_226] : memref<1x1x2xf32, #tpu.memory_space<vmem>>, vector<1x1x2xf32>
    %243 = vector.shape_cast %242 : vector<1x1x2xf32> to vector<1x2xf32>
    %244 = vector.shape_cast %241 : vector<1x2xf32> to vector<1x1x2xf32>
    tpu.vector_store %arg10[%c0_224, %c0_225, %c0_226], %244 {strides = array<i32>} : memref<1x1x2xf32, #tpu.memory_space<vmem>>, vector<1x1x2xf32>,
    return
  }
  func.func @transform_0(%arg0: i32) -> (i32, i32, i32) {
    %c0_i32 = arith.constant 0 : i32
    %c0_i32_0 = arith.constant 0 : i32
    %c0_i32_1 = arith.constant 0 : i32
    return %arg0, %c0_i32, %c0_i32_0 : i32, i32, i32
  }
  func.func @transform_1(%arg0: i32) -> (i32, i32) {
    %c0_i32 = arith.constant 0 : i32
    %c0_i32_0 = arith.constant 0 : i32
    %c0_i32_1 = arith.constant 0 : i32
    return %c0_i32, %c0_i32_0 : i32, i32
  }
  func.func @transform_2(%arg0: i32) -> (i32, i32) {
    %c0_i32 = arith.constant 0 : i32
    %c0_i32_0 = arith.constant 0 : i32
    %c0_i32_1 = arith.constant 0 : i32
    return %c0_i32, %c0_i32_0 : i32, i32
  }
  func.func @transform_3(%arg0: i32) -> (i32, i32) {
    %c0_i32 = arith.constant 0 : i32
    %c0_i32_0 = arith.constant 0 : i32
    %c0_i32_1 = arith.constant 0 : i32
    return %c0_i32, %c0_i32_0 : i32, i32
  }
  func.func @transform_4(%arg0: i32) -> (i32, i32) {
    %c0_i32 = arith.constant 0 : i32
    %c0_i32_0 = arith.constant 0 : i32
    %c0_i32_1 = arith.constant 0 : i32
    return %c0_i32, %c0_i32_0 : i32, i32
  }
  func.func @transform_5(%arg0: i32) -> (i32, i32) {
    %c0_i32 = arith.constant 0 : i32
    %c0_i32_0 = arith.constant 0 : i32
    %c0_i32_1 = arith.constant 0 : i32
    return %c0_i32, %c0_i32_0 : i32, i32
  }
  func.func @transform_6(%arg0: i32) -> (i32, i32) {
    %c0_i32 = arith.constant 0 : i32
    %c0_i32_0 = arith.constant 0 : i32
    %c0_i32_1 = arith.constant 0 : i32
    return %c0_i32, %c0_i32_0 : i32, i32
  }
  func.func @transform_7(%arg0: i32) -> (i32, i32) {
    %c0_i32 = arith.constant 0 : i32
    %c0_i32_0 = arith.constant 0 : i32
    %c0_i32_1 = arith.constant 0 : i32
    return %c0_i32, %c0_i32_0 : i32, i32
  }
  func.func @transform_8(%arg0: i32) -> (i32, i32) {
    %c0_i32 = arith.constant 0 : i32
    %c0_i32_0 = arith.constant 0 : i32
    %c0_i32_1 = arith.constant 0 : i32
    return %c0_i32, %c0_i32_0 : i32, i32
  }
  func.func @transform_9(%arg0: i32) -> (i32, i32, i32) {
    %c0_i32 = arith.constant 0 : i32
    %c0_i32_0 = arith.constant 0 : i32
    %c0_i32_1 = arith.constant 0 : i32
    return %arg0, %c0_i32, %c0_i32_0 : i32, i32, i32
  }
}

</mosaic_0001>

<llo_original>
// kernel: cnn_forward.1
$region0: #{cnn_forward.1}
  #allocation0 [shape = 'u32[]', space=smem, size = 0x4, offset = 0x4, fixed_abs, tag = 'smem constant byte address 0x4 - core index']
  #allocation1 [shape = 'u32[72,128]{1,0:T(1,128)}', space=vmem, size = 0x9000, scoped, tag = 'internal scratch']
  #allocation2 [shape = 'bf16[438,27]{1,0:T(8,128)(2,1)}', space=vmem, size = 0x1b800, scoped, tag = 'scratch operand']
  #allocation3 [shape = 'f32[438,16]{1,0:T(8,128)}', space=vmem, size = 0x37000, scoped, tag = 'scratch operand']
  #allocation4 [shape = 'f32[100,16]{1,0:T(8,128)}', space=vmem, size = 0xd000, scoped, tag = 'scratch operand']
  #allocation5 [shape = 'bf16[78,144]{1,0:T(8,128)(2,1)}', space=vmem, size = 0xa000, scoped, tag = 'scratch operand']
  #allocation6 [shape = 'f32[78,32]{1,0:T(8,128)}', space=vmem, size = 0xa000, scoped, tag = 'scratch operand']
  #allocation7 [shape = 'f32[16,32]{1,0:T(8,128)}', space=vmem, size = 0x2000, scoped, tag = 'scratch operand']
  #allocation8 [shape = 'bf16[6,288]{1,0:T(8,128)(2,1)}', space=vmem, size = 0x1800, scoped, tag = 'scratch operand']
  #allocation9 [shape = 'f32[6,16]{1,0:T(8,128)}', space=vmem, size = 0x1000, scoped, tag = 'scratch operand']
  #allocation10 [shape = 'f32[1,16]{1,0:T(1,128)}', space=vmem, size = 0x200, scoped, tag = 'scratch operand']
  %s0 = inlined_call_operand.vmem [shape: f32[2,484,3], index: 0, kind: input, shape index: {}]
  %s1 = inlined_call_operand.vmem [shape: bf16[27,16], index: 1, kind: input, shape index: {}]
  %s2 = inlined_call_operand.vmem [shape: f32[1,16], index: 2, kind: input, shape index: {}]
  %s3 = inlined_call_operand.vmem [shape: bf16[144,32], index: 3, kind: input, shape index: {}]
  %s4 = inlined_call_operand.vmem [shape: f32[1,32], index: 4, kind: input, shape index: {}]
  %s5 = inlined_call_operand.vmem [shape: bf16[288,16], index: 5, kind: input, shape index: {}]
  %s6 = inlined_call_operand.vmem [shape: f32[1,16], index: 6, kind: input, shape index: {}]
  %s7 = inlined_call_operand.vmem [shape: f32[16,2], index: 7, kind: input, shape index: {}]
  %s8 = inlined_call_operand.vmem [shape: f32[1,2], index: 8, kind: input, shape index: {}]
  %s9 = inlined_call_operand.hbm [shape: f32[2,1,2], index: 9, kind: output, shape index: {}]
  %s10 = sld [smem:[#allocation0]]
  $region69: #{cnn_forward.1} parent=0
    _
  %s12 = ssub.s32 1, %s10
  %s13 = scalar_select 0, %s12, %s10
  $region1: #{cnn_forward.1} parent=0
    #allocation11 [shape = 'u8[1024]{0}', space=vmem, size = 0x400, scoped, tag = 'output window, operand 0']
    #allocation12 [shape = 's32[2]{0}', space=sflag, size = 0x8, scoped, tag = 'scoped memory for cnn_forward.1']
    %14 = vsyncpa [#allocation12], 0
    %s15 = scalar_lea.sflag [#allocation12], 1
    %16 = vsyncpa %s15, 0
    loop: start=0, step=1, limit=4
    $region2: #{cnn_forward.1} parent=1 // loop_pre_header
      _
    $region3: #{cnn_forward.1} parent=1 // loop_header
      %s18 = sphi 0, %s22
      %p19 = scmp.ge.s32.totalorder %s18, 4
      %s28 = sphi 0, %s30
      %s31 = sphi 0, %s28
      %s32 = sphi 0, %s31
      %s48 = sphi 0, %s32
      %s52 = sphi 0, %s52
      %s54 = sphi 0, %s52
      %s55 = sphi 0, %s54
      %s69 = sphi 0, %s55
      %s73 = sphi 0, %s73
      %s75 = sphi 0, %s73
      %s76 = sphi 0, %s75
      %s90 = sphi 0, %s76
      %s94 = sphi 0, %s94
      %s96 = sphi 0, %s94
      %s97 = sphi 0, %s96
      %s111 = sphi 0, %s97
      %s115 = sphi 0, %s115
      %s117 = sphi 0, %s115
      %s118 = sphi 0, %s117
      %s132 = sphi 0, %s118
      %s136 = sphi 0, %s136
      %s138 = sphi 0, %s136
      %s139 = sphi 0, %s138
      %s153 = sphi 0, %s139
      %s157 = sphi 0, %s157
      %s159 = sphi 0, %s157
      %s160 = sphi 0, %s159
      %s174 = sphi 0, %s160
      %s178 = sphi 0, %s178
      %s180 = sphi 0, %s178
      %s181 = sphi 0, %s180
      %s195 = sphi 0, %s181
      %s199 = sphi 0, %s199
      %s201 = sphi 0, %s199
      %s202 = sphi 0, %s201
      %s216 = sphi 0, %s202
      %s222 = sphi 0, %s224
      %s225 = sphi 0, %s222
      %s226 = sphi 0, %s225
      %s242 = sphi 0, %s226
    $region4: #{cnn_forward.1} parent=1 // loop_header_branch
      %21 = sbr.rel (%p19) target = $region8
    $region5: #{cnn_forward.1} parent=1 // loop_body
      %s23 = ssub.s32 %s18, 1
      %s24 = ssub.s32 %s18, 2
      %s25 = sadd.s32 %s18, 1
      %s26 = ssub.s32 %s18, %s25
      %p27 = scmp.eq.s32.totalorder %s26, 0
      %s29 = sadd.s32 %s28, 1
      %s30 = scalar_select %p27, %s28, %s29
      %p33 = pneg %p27
      %p34 = scmp.eq.s32.totalorder %s18, 1
      %p35 = por %p33, %p34
      %p36 = scmp.ne.s32.totalorder %s28, %s31
      %p37 = scmp.eq.s32.totalorder %s18, 0
      %p38 = por %p36, %p37
      %p39 = scmp.ne.s32.totalorder %s28, %s31
      %p40 = scmp.eq.s32.totalorder %s23, 1
      %p41 = por %p39, %p40
      %p42 = scmp.ne.s32.totalorder %s31, %s32
      %p43 = scmp.eq.s32.totalorder %s23, 0
      %p44 = por %p42, %p43
      %p45 = scmp.ne.s32.totalorder %s31, %s32
      %p46 = scmp.eq.s32.totalorder %s24, 1
      %p47 = por %p45, %p46
      %p49 = scmp.ne.s32.totalorder %s32, %s48
      %p50 = scmp.eq.s32.totalorder %s24, 0
      %p51 = por %p49, %p50
      %s53 = sadd.s32 %s52, 1
      %p56 = scmp.eq.s32.totalorder %s18, 1
      %p57 = scmp.ne.s32.totalorder %s52, %s54
      %p58 = scmp.eq.s32.totalorder %s18, 0
      %p59 = por %p57, %p58
      %p60 = scmp.ne.s32.totalorder %s52, %s54
      %p61 = scmp.eq.s32.totalorder %s23, 1
      %p62 = por %p60, %p61
      %p63 = scmp.ne.s32.totalorder %s54, %s55
      %p64 = scmp.eq.s32.totalorder %s23, 0
      %p65 = por %p63, %p64
      %p66 = scmp.ne.s32.totalorder %s54, %s55
      %p67 = scmp.eq.s32.totalorder %s24, 1
      %p68 = por %p66, %p67
      %p70 = scmp.ne.s32.totalorder %s55, %s69
      %p71 = scmp.eq.s32.totalorder %s24, 0
      %p72 = por %p70, %p71
      %s74 = sadd.s32 %s73, 1
      %p77 = scmp.eq.s32.totalorder %s18, 1
      %p78 = scmp.ne.s32.totalorder %s73, %s75
      %p79 = scmp.eq.s32.totalorder %s18, 0
      %p80 = por %p78, %p79
      %p81 = scmp.ne.s32.totalorder %s73, %s75
      %p82 = scmp.eq.s32.totalorder %s23, 1
      %p83 = por %p81, %p82
      %p84 = scmp.ne.s32.totalorder %s75, %s76
      %p85 = scmp.eq.s32.totalorder %s23, 0
      %p86 = por %p84, %p85
      %p87 = scmp.ne.s32.totalorder %s75, %s76
      %p88 = scmp.eq.s32.totalorder %s24, 1
      %p89 = por %p87, %p88
      %p91 = scmp.ne.s32.totalorder %s76, %s90
      %p92 = scmp.eq.s32.totalorder %s24, 0
      %p93 = por %p91, %p92
      %s95 = sadd.s32 %s94, 1
      %p98 = scmp.eq.s32.totalorder %s18, 1
      %p99 = scmp.ne.s32.totalorder %s94, %s96
      %p100 = scmp.eq.s32.totalorder %s18, 0
      %p101 = por %p99, %p100
      %p102 = scmp.ne.s32.totalorder %s94, %s96
      %p103 = scmp.eq.s32.totalorder %s23, 1
      %p104 = por %p102, %p103
      %p105 = scmp.ne.s32.totalorder %s96, %s97
      %p106 = scmp.eq.s32.totalorder %s23, 0
      %p107 = por %p105, %p106
      %p108 = scmp.ne.s32.totalorder %s96, %s97
      %p109 = scmp.eq.s32.totalorder %s24, 1
      %p110 = por %p108, %p109
      %p112 = scmp.ne.s32.totalorder %s97, %s111
      %p113 = scmp.eq.s32.totalorder %s24, 0
      %p114 = por %p112, %p113
      %s116 = sadd.s32 %s115, 1
      %p119 = scmp.eq.s32.totalorder %s18, 1
      %p120 = scmp.ne.s32.totalorder %s115, %s117
      %p121 = scmp.eq.s32.totalorder %s18, 0
      %p122 = por %p120, %p121
      %p123 = scmp.ne.s32.totalorder %s115, %s117
      %p124 = scmp.eq.s32.totalorder %s23, 1
      %p125 = por %p123, %p124
      %p126 = scmp.ne.s32.totalorder %s117, %s118
      %p127 = scmp.eq.s32.totalorder %s23, 0
      %p128 = por %p126, %p127
      %p129 = scmp.ne.s32.totalorder %s117, %s118
      %p130 = scmp.eq.s32.totalorder %s24, 1
      %p131 = por %p129, %p130
      %p133 = scmp.ne.s32.totalorder %s118, %s132
      %p134 = scmp.eq.s32.totalorder %s24, 0
      %p135 = por %p133, %p134
      %s137 = sadd.s32 %s136, 1
      %p140 = scmp.eq.s32.totalorder %s18, 1
      %p141 = scmp.ne.s32.totalorder %s136, %s138
      %p142 = scmp.eq.s32.totalorder %s18, 0
      %p143 = por %p141, %p142
      %p144 = scmp.ne.s32.totalorder %s136, %s138
      %p145 = scmp.eq.s32.totalorder %s23, 1
      %p146 = por %p144, %p145
      %p147 = scmp.ne.s32.totalorder %s138, %s139
      %p148 = scmp.eq.s32.totalorder %s23, 0
      %p149 = por %p147, %p148
      %p150 = scmp.ne.s32.totalorder %s138, %s139
      %p151 = scmp.eq.s32.totalorder %s24, 1
      %p152 = por %p150, %p151
      %p154 = scmp.ne.s32.totalorder %s139, %s153
      %p155 = scmp.eq.s32.totalorder %s24, 0
      %p156 = por %p154, %p155
      %s158 = sadd.s32 %s157, 1
      %p161 = scmp.eq.s32.totalorder %s18, 1
      %p162 = scmp.ne.s32.totalorder %s157, %s159
      %p163 = scmp.eq.s32.totalorder %s18, 0
      %p164 = por %p162, %p163
      %p165 = scmp.ne.s32.totalorder %s157, %s159
      %p166 = scmp.eq.s32.totalorder %s23, 1
      %p167 = por %p165, %p166
      %p168 = scmp.ne.s32.totalorder %s159, %s160
      %p169 = scmp.eq.s32.totalorder %s23, 0
      %p170 = por %p168, %p169
      %p171 = scmp.ne.s32.totalorder %s159, %s160
      %p172 = scmp.eq.s32.totalorder %s24, 1
      %p173 = por %p171, %p172
      %p175 = scmp.ne.s32.totalorder %s160, %s174
      %p176 = scmp.eq.s32.totalorder %s24, 0
      %p177 = por %p175, %p176
      %s179 = sadd.s32 %s178, 1
      %p182 = scmp.eq.s32.totalorder %s18, 1
      %p183 = scmp.ne.s32.totalorder %s178, %s180
      %p184 = scmp.eq.s32.totalorder %s18, 0
      %p185 = por %p183, %p184
      %p186 = scmp.ne.s32.totalorder %s178, %s180
      %p187 = scmp.eq.s32.totalorder %s23, 1
      %p188 = por %p186, %p187
      %p189 = scmp.ne.s32.totalorder %s180, %s181
      %p190 = scmp.eq.s32.totalorder %s23, 0
      %p191 = por %p189, %p190
      %p192 = scmp.ne.s32.totalorder %s180, %s181
      %p193 = scmp.eq.s32.totalorder %s24, 1
      %p194 = por %p192, %p193
      %p196 = scmp.ne.s32.totalorder %s181, %s195
      %p197 = scmp.eq.s32.totalorder %s24, 0
      %p198 = por %p196, %p197
      %s200 = sadd.s32 %s199, 1
      %p203 = scmp.eq.s32.totalorder %s18, 1
      %p204 = scmp.ne.s32.totalorder %s199, %s201
      %p205 = scmp.eq.s32.totalorder %s18, 0
      %p206 = por %p204, %p205
      %p207 = scmp.ne.s32.totalorder %s199, %s201
      %p208 = scmp.eq.s32.totalorder %s23, 1
      %p209 = por %p207, %p208
      %p210 = scmp.ne.s32.totalorder %s201, %s202
      %p211 = scmp.eq.s32.totalorder %s23, 0
      %p212 = por %p210, %p211
      %p213 = scmp.ne.s32.totalorder %s201, %s202
      %p214 = scmp.eq.s32.totalorder %s24, 1
      %p215 = por %p213, %p214
      %p217 = scmp.ne.s32.totalorder %s202, %s216
      %p218 = scmp.eq.s32.totalorder %s24, 0
      %p219 = por %p217, %p218
      %s220 = ssub.s32 %s18, %s25
      %p221 = scmp.eq.s32.totalorder %s220, 0
      %s223 = sadd.s32 %s222, 1
      %s224 = scalar_select %p221, %s222, %s223
      %p227 = pneg %p221
      %p228 = scmp.eq.s32.totalorder %s18, 1
      %p229 = por %p227, %p228
      %p230 = scmp.ne.s32.totalorder %s222, %s225
      %p231 = scmp.eq.s32.totalorder %s18, 0
      %p232 = por %p230, %p231
      %p233 = scmp.ne.s32.totalorder %s222, %s225
      %p234 = scmp.eq.s32.totalorder %s23, 1
      %p235 = por %p233, %p234
      %p236 = scmp.ne.s32.totalorder %s225, %s226
      %p237 = scmp.eq.s32.totalorder %s23, 0
      %p238 = por %p236, %p237
      %p239 = scmp.ne.s32.totalorder %s225, %s226
      %p240 = scmp.eq.s32.totalorder %s24, 1
      %p241 = por %p239, %p240
      %p243 = scmp.ne.s32.totalorder %s226, %s242
      %p244 = scmp.eq.s32.totalorder %s24, 0
      %p245 = por %p243, %p244
      %p246 = scmp.le.s32.totalorder 1, %s18
      %p247 = scmp.lt.s32.totalorder %s18, 3
      %p248 = pnand %p246, %p247
      %p249 = pneg %p248
      // Predicated region
      $region9: #{cnn_forward.1} parent=5 // pred_check
        _
      $region10: #{cnn_forward.1} parent=5 // pred_check_branch
        %251 = sbr.rel (%p248) target = $region12
      $region11: #{cnn_forward.1} parent=5 // pred_region
        %s252 = ssub.s32 %s18, 1
        // Predicated region
        $region13: #{cnn_forward.1} parent=11 // pred_check
          %p253 = pneg %p65
        $region14: #{cnn_forward.1} parent=11 // pred_check_branch
          %255 = sbr.rel (%p253) target = $region16
        $region15: #{cnn_forward.1} parent=11 // pred_region
          _
        $region16: #{cnn_forward.1} parent=11 // pred_fallthru
          _
        // Predicated region
        $region17: #{cnn_forward.1} parent=11 // pred_check
          %p256 = pneg %p86
        $region18: #{cnn_forward.1} parent=11 // pred_check_branch
          %258 = sbr.rel (%p256) target = $region20
        $region19: #{cnn_forward.1} parent=11 // pred_region
          _
        $region20: #{cnn_forward.1} parent=11 // pred_fallthru
          _
        // Predicated region
        $region21: #{cnn_forward.1} parent=11 // pred_check
          %p259 = pneg %p107
        $region22: #{cnn_forward.1} parent=11 // pred_check_branch
          %261 = sbr.rel (%p259) target = $region24
        $region23: #{cnn_forward.1} parent=11 // pred_region
          _
        $region24: #{cnn_forward.1} parent=11 // pred_fallthru
          _
        // Predicated region
        $region25: #{cnn_forward.1} parent=11 // pred_check
          %p262 = pneg %p128
        $region26: #{cnn_forward.1} parent=11 // pred_check_branch
          %264 = sbr.rel (%p262) target = $region28
        $region27: #{cnn_forward.1} parent=11 // pred_region
          _
        $region28: #{cnn_forward.1} parent=11 // pred_fallthru
          _
        // Predicated region
        $region29: #{cnn_forward.1} parent=11 // pred_check
          %p265 = pneg %p149
        $region30: #{cnn_forward.1} parent=11 // pred_check_branch
          %267 = sbr.rel (%p265) target = $region32
        $region31: #{cnn_forward.1} parent=11 // pred_region
          _
        $region32: #{cnn_forward.1} parent=11 // pred_fallthru
          _
        // Predicated region
        $region33: #{cnn_forward.1} parent=11 // pred_check
          %p268 = pneg %p170
        $region34: #{cnn_forward.1} parent=11 // pred_check_branch
          %270 = sbr.rel (%p268) target = $region36
        $region35: #{cnn_forward.1} parent=11 // pred_region
          _
        $region36: #{cnn_forward.1} parent=11 // pred_fallthru
          _
        // Predicated region
        $region37: #{cnn_forward.1} parent=11 // pred_check
          %p271 = pneg %p191
        $region38: #{cnn_forward.1} parent=11 // pred_check_branch
          %273 = sbr.rel (%p271) target = $region40
        $region39: #{cnn_forward.1} parent=11 // pred_region
          _
        $region40: #{cnn_forward.1} parent=11 // pred_fallthru
          _
        // Predicated region
        $region41: #{cnn_forward.1} parent=11 // pred_check
          %p274 = pneg %p212
        $region42: #{cnn_forward.1} parent=11 // pred_check_branch
          %276 = sbr.rel (%p274) target = $region44
        $region43: #{cnn_forward.1} parent=11 // pred_region
          _
        $region44: #{cnn_forward.1} parent=11 // pred_fallthru
          _
      $region12: #{cnn_forward.1} parent=5 // pred_fallthru
        _
      %p277 = scmp.lt.s32.totalorder %s18, 2
      // Predicated region
      $region45: #{cnn_forward.1} parent=5 // pred_check
        %p278 = pneg %p277
      $region46: #{cnn_forward.1} parent=5 // pred_check_branch
        %280 = sbr.rel (%p278) target = $region48
      $region47: #{cnn_forward.1} parent=5 // pred_region
        // Predicated region
        $region49: #{cnn_forward.1} parent=47 // pred_check
          %p281 = pneg %p38
        $region50: #{cnn_forward.1} parent=47 // pred_check_branch
          %283 = sbr.rel (%p281) target = $region52
        $region51: #{cnn_forward.1} parent=47 // pred_region
          %p284 = scmp.lt.s32.totalorder %s18, 1
          %s285 = scalar_select %p284, %s18, 1
          %s286 = smul.addr %s285, 61
          %s287 = smul.addr %s286, 8
          %s288 = scalar_lea.vmem %s0, %s287
        $region52: #{cnn_forward.1} parent=47 // pred_fallthru
          _
      $region48: #{cnn_forward.1} parent=5 // pred_fallthru
        _
      %p289 = scmp.le.s32.totalorder 1, %s18
      %p290 = scmp.lt.s32.totalorder %s18, 3
      %p291 = pnand %p289, %p290
      %p292 = pneg %p291
      // Predicated region
      $region53: #{cnn_forward.1} parent=5 // pred_check
        _
      $region54: #{cnn_forward.1} parent=5 // pred_check_branch
        %294 = sbr.rel (%p291) target = $region56
      $region55: #{cnn_forward.1} parent=5 // pred_region
        %s295 = ssub.s32 %s18, 1
        %p296 = scmp.lt.s32.totalorder %s23, 1
        %s297 = scalar_select %p296, %s23, 1
        %s298 = smul.addr %s297, 61
        %s299 = smul.addr %s298, 8
        %s300 = scalar_lea.vmem %s0, %s299
        %p301 = pneg %p44
        %p302 = pneg %p41
        %p303 = pneg %p65
        %p304 = pneg %p62
        %p305 = pneg %p86
        %p306 = pneg %p83
        %p307 = pneg %p107
        %p308 = pneg %p104
        %p309 = pneg %p128
        %p310 = pneg %p125
        %p311 = pneg %p149
        %p312 = pneg %p146
        %p313 = pneg %p170
        %p314 = pneg %p167
        %p315 = pneg %p191
        %p316 = pneg %p188
        %p317 = pneg %p212
        %p318 = pneg %p209
        %p319 = pneg %p238
        %p320 = pneg %p235
        %s321 = sand.u32 %s225, 1
        %s322 = scalar_lea.sflag [#allocation12], %s321
        %s323 = sand.u32 %s225, 1
        %s324 = scalar_lea.vmem [#allocation11], %s323
        %p325 = scmp.lt.s32.totalorder %s23, 1
        %s326 = scalar_select %p325, %s23, 1
        %s327 = smul.addr %s326, 61
        %s328 = smul.addr %s327, 8
        %s329 = scalar_lea.vmem %s0, %s328
        %v331 = vld [vmem:[%s329] sm:$0xff]
        %v332 = vld [vmem:[%s329 + $0x8] sm:$0xff]
        %v333 = vld [vmem:[%s329 + $0x10] sm:$0xff]
        %v334 = vld [vmem:[%s329 + $0x18] sm:$0xff]
        %v335 = vld [vmem:[%s329 + $0x20] sm:$0xff]
        %v336 = vld [vmem:[%s329 + $0x28] sm:$0xff]
        %v337 = vld [vmem:[%s329 + $0x30] sm:$0xff]
        %v338 = vld [vmem:[%s329 + $0x38] sm:$0xff]
        %v339 = vld [vmem:[%s329 + $0x40] sm:$0xff]
        %v340 = vld [vmem:[%s329 + $0x48] sm:$0xff]
        %v341 = vld [vmem:[%s329 + $0x50] sm:$0xff]
        %v342 = vld [vmem:[%s329 + $0x58] sm:$0xff]
        %v343 = vld [vmem:[%s329 + $0x60] sm:$0xff]
        %v344 = vld [vmem:[%s329 + $0x68] sm:$0xff]
        %v345 = vld [vmem:[%s329 + $0x70] sm:$0xff]
        %v346 = vld [vmem:[%s329 + $0x78] sm:$0xff]
        %v347 = vld [vmem:[%s329 + $0x80] sm:$0xff]
        %v348 = vld [vmem:[%s329 + $0x88] sm:$0xff]
        %v349 = vld [vmem:[%s329 + $0x90] sm:$0xff]
        %v350 = vld [vmem:[%s329 + $0x98] sm:$0xff]
        %v351 = vld [vmem:[%s329 + $0xa0] sm:$0xff]
        %v352 = vld [vmem:[%s329 + $0xa8] sm:$0xff]
        %v353 = vld [vmem:[%s329 + $0xb0] sm:$0xff]
        %v354 = vld [vmem:[%s329 + $0xb8] sm:$0xff]
        %v355 = vld [vmem:[%s329 + $0xc0] sm:$0xff]
        %v356 = vld [vmem:[%s329 + $0xc8] sm:$0xff]
        %v357 = vld [vmem:[%s329 + $0xd0] sm:$0xff]
        %v358 = vld [vmem:[%s329 + $0xd8] sm:$0xff]
        %v359 = vld [vmem:[%s329 + $0xe0] sm:$0xff]
        %v360 = vld [vmem:[%s329 + $0xe8] sm:$0xff]
        %v361 = vld [vmem:[%s329 + $0xf0] sm:$0xff]
        %v362 = vld [vmem:[%s329 + $0xf8] sm:$0xff]
        %v363 = vld [vmem:[%s329 + $0x100] sm:$0xff]
        %v364 = vld [vmem:[%s329 + $0x108] sm:$0xff]
        %v365 = vld [vmem:[%s329 + $0x110] sm:$0xff]
        %v366 = vld [vmem:[%s329 + $0x118] sm:$0xff]
        %v367 = vld [vmem:[%s329 + $0x120] sm:$0xff]
        %v368 = vld [vmem:[%s329 + $0x128] sm:$0xff]
        %v369 = vld [vmem:[%s329 + $0x130] sm:$0xff]
        %v370 = vld [vmem:[%s329 + $0x138] sm:$0xff]
        %v371 = vld [vmem:[%s329 + $0x140] sm:$0xff]
        %v372 = vld [vmem:[%s329 + $0x148] sm:$0xff]
        %v373 = vld [vmem:[%s329 + $0x150] sm:$0xff]
        %v374 = vld [vmem:[%s329 + $0x158] sm:$0xff]
        %v375 = vld [vmem:[%s329 + $0x160] sm:$0xff]
        %v376 = vld [vmem:[%s329 + $0x168] sm:$0xff]
        %v377 = vld [vmem:[%s329 + $0x170] sm:$0xff]
        %v378 = vld [vmem:[%s329 + $0x178] sm:$0xff]
        %v379 = vld [vmem:[%s329 + $0x180] sm:$0xff]
        %v380 = vld [vmem:[%s329 + $0x188] sm:$0xff]
        %v381 = vld [vmem:[%s329 + $0x190] sm:$0xff]
        %v382 = vld [vmem:[%s329 + $0x198] sm:$0xff]
        %v383 = vld [vmem:[%s329 + $0x1a0] sm:$0xff]
        %v384 = vld [vmem:[%s329 + $0x1a8] sm:$0xff]
        %v385 = vld [vmem:[%s329 + $0x1b0] sm:$0x3f]
        %v386 = vpack.c.bf16 %v331, %v331
        %v387 = vpack.c.bf16 %v332, %v332
        %v388 = vpack.c.bf16 %v333, %v333
        %v389 = vpack.c.bf16 %v334, %v334
        %v390 = vpack.c.bf16 %v335, %v335
        %v391 = vpack.c.bf16 %v336, %v336
        %v392 = vpack.c.bf16 %v337, %v337
        %v393 = vpack.c.bf16 %v338, %v338
        %v394 = vpack.c.bf16 %v339, %v339
        %v395 = vpack.c.bf16 %v340, %v340
        %v396 = vpack.c.bf16 %v341, %v341
        %v397 = vpack.c.bf16 %v342, %v342
        %v398 = vpack.c.bf16 %v343, %v343
        %v399 = vpack.c.bf16 %v344, %v344
        %v400 = vpack.c.bf16 %v345, %v345
        %v401 = vpack.c.bf16 %v346, %v346
        %v402 = vpack.c.bf16 %v347, %v347
        %v403 = vpack.c.bf16 %v348, %v348
        %v404 = vpack.c.bf16 %v349, %v349
        %v405 = vpack.c.bf16 %v350, %v350
        %v406 = vpack.c.bf16 %v351, %v351
        %v407 = vpack.c.bf16 %v352, %v352
        %v408 = vpack.c.bf16 %v353, %v353
        %v409 = vpack.c.bf16 %v354, %v354
        %v410 = vpack.c.bf16 %v355, %v355
        %v411 = vpack.c.bf16 %v356, %v356
        %v412 = vpack.c.bf16 %v357, %v357
        %v413 = vpack.c.bf16 %v358, %v358
        %v414 = vpack.c.bf16 %v359, %v359
        %v415 = vpack.c.bf16 %v360, %v360
        %v416 = vpack.c.bf16 %v361, %v361
        %v417 = vpack.c.bf16 %v362, %v362
        %v418 = vpack.c.bf16 %v363, %v363
        %v419 = vpack.c.bf16 %v364, %v364
        %v420 = vpack.c.bf16 %v365, %v365
        %v421 = vpack.c.bf16 %v366, %v366
        %v422 = vpack.c.bf16 %v367, %v367
        %v423 = vpack.c.bf16 %v368, %v368
        %v424 = vpack.c.bf16 %v369, %v369
        %v425 = vpack.c.bf16 %v370, %v370
        %v426 = vpack.c.bf16 %v371, %v371
        %v427 = vpack.c.bf16 %v372, %v372
        %v428 = vpack.c.bf16 %v373, %v373
        %v429 = vpack.c.bf16 %v374, %v374
        %v430 = vpack.c.bf16 %v375, %v375
        %v431 = vpack.c.bf16 %v376, %v376
        %v432 = vpack.c.bf16 %v377, %v377
        %v433 = vpack.c.bf16 %v378, %v378
        %v434 = vpack.c.bf16 %v379, %v379
        %v435 = vpack.c.bf16 %v380, %v380
        %v436 = vpack.c.bf16 %v381, %v381
        %v437 = vpack.c.bf16 %v382, %v382
        %v438 = vpack.c.bf16 %v383, %v383
        %v439 = vpack.c.bf16 %v384, %v384
        %v440 = vpack.c.bf16 %v385, %v385
        %vm441 = vcmask 19456
        %442 = vst.msk [vmem:[#allocation2] sm:$0xf] %vm441, %v386
        %443 = vst.msk [vmem:[#allocation2 + $0x4] sm:$0xf] %vm441, %v387
        %444 = vst.msk [vmem:[#allocation2 + $0x8] sm:$0xf] %vm441, %v388
        %445 = vst.msk [vmem:[#allocation2 + $0xc] sm:$0xf] %vm441, %v389
        %446 = vst.msk [vmem:[#allocation2 + $0x10] sm:$0xf] %vm441, %v390
        %447 = vst.msk [vmem:[#allocation2 + $0x14] sm:$0xf] %vm441, %v391
        %448 = vst.msk [vmem:[#allocation2 + $0x18] sm:$0xf] %vm441, %v392
        %449 = vst.msk [vmem:[#allocation2 + $0x1c] sm:$0xf] %vm441, %v393
        %450 = vst.msk [vmem:[#allocation2 + $0x20] sm:$0xf] %vm441, %v394
        %451 = vst.msk [vmem:[#allocation2 + $0x24] sm:$0xf] %vm441, %v395
        %452 = vst.msk [vmem:[#allocation2 + $0x28] sm:$0xf] %vm441, %v396
        %453 = vst.msk [vmem:[#allocation2 + $0x2c] sm:$0xf] %vm441, %v397
        %454 = vst.msk [vmem:[#allocation2 + $0x30] sm:$0xf] %vm441, %v398
        %455 = vst.msk [vmem:[#allocation2 + $0x34] sm:$0xf] %vm441, %v399
        %456 = vst.msk [vmem:[#allocation2 + $0x38] sm:$0xf] %vm441, %v400
        %457 = vst.msk [vmem:[#allocation2 + $0x3c] sm:$0xf] %vm441, %v401
        %458 = vst.msk [vmem:[#allocation2 + $0x40] sm:$0xf] %vm441, %v402
        %459 = vst.msk [vmem:[#allocation2 + $0x44] sm:$0xf] %vm441, %v403
        %460 = vst.msk [vmem:[#allocation2 + $0x48] sm:$0xf] %vm441, %v404
        %461 = vst.msk [vmem:[#allocation2 + $0x4c] sm:$0xf] %vm441, %v405
        %462 = vst.msk [vmem:[#allocation2 + $0x50] sm:$0xf] %vm441, %v406
        %463 = vst.msk [vmem:[#allocation2 + $0x54] sm:$0xf] %vm441, %v407
        %464 = vst.msk [vmem:[#allocation2 + $0x58] sm:$0xf] %vm441, %v408
        %465 = vst.msk [vmem:[#allocation2 + $0x5c] sm:$0xf] %vm441, %v409
        %466 = vst.msk [vmem:[#allocation2 + $0x60] sm:$0xf] %vm441, %v410
        %467 = vst.msk [vmem:[#allocation2 + $0x64] sm:$0xf] %vm441, %v411
        %468 = vst.msk [vmem:[#allocation2 + $0x68] sm:$0xf] %vm441, %v412
        %469 = vst.msk [vmem:[#allocation2 + $0x6c] sm:$0xf] %vm441, %v413
        %470 = vst.msk [vmem:[#allocation2 + $0x70] sm:$0xf] %vm441, %v414
        %471 = vst.msk [vmem:[#allocation2 + $0x74] sm:$0xf] %vm441, %v415
        %472 = vst.msk [vmem:[#allocation2 + $0x78] sm:$0xf] %vm441, %v416
        %473 = vst.msk [vmem:[#allocation2 + $0x7c] sm:$0xf] %vm441, %v417
        %474 = vst.msk [vmem:[#allocation2 + $0x80] sm:$0xf] %vm441, %v418
        %475 = vst.msk [vmem:[#allocation2 + $0x84] sm:$0xf] %vm441, %v419
        %476 = vst.msk [vmem:[#allocation2 + $0x88] sm:$0xf] %vm441, %v420
        %477 = vst.msk [vmem:[#allocation2 + $0x8c] sm:$0xf] %vm441, %v421
        %478 = vst.msk [vmem:[#allocation2 + $0x90] sm:$0xf] %vm441, %v422
        %479 = vst.msk [vmem:[#allocation2 + $0x94] sm:$0xf] %vm441, %v423
        %480 = vst.msk [vmem:[#allocation2 + $0x98] sm:$0xf] %vm441, %v424
        %481 = vst.msk [vmem:[#allocation2 + $0x9c] sm:$0xf] %vm441, %v425
        %482 = vst.msk [vmem:[#allocation2 + $0xa0] sm:$0xf] %vm441, %v426
        %483 = vst.msk [vmem:[#allocation2 + $0xa4] sm:$0xf] %vm441, %v427
        %484 = vst.msk [vmem:[#allocation2 + $0xa8] sm:$0xf] %vm441, %v428
        %485 = vst.msk [vmem:[#allocation2 + $0xac] sm:$0xf] %vm441, %v429
        %486 = vst.msk [vmem:[#allocation2 + $0xb0] sm:$0xf] %vm441, %v430
        %487 = vst.msk [vmem:[#allocation2 + $0xb4] sm:$0xf] %vm441, %v431
        %488 = vst.msk [vmem:[#allocation2 + $0xb8] sm:$0xf] %vm441, %v432
        %489 = vst.msk [vmem:[#allocation2 + $0xbc] sm:$0xf] %vm441, %v433
        %490 = vst.msk [vmem:[#allocation2 + $0xc0] sm:$0xf] %vm441, %v434
        %491 = vst.msk [vmem:[#allocation2 + $0xc4] sm:$0xf] %vm441, %v435
        %492 = vst.msk [vmem:[#allocation2 + $0xc8] sm:$0xf] %vm441, %v436
        %493 = vst.msk [vmem:[#allocation2 + $0xcc] sm:$0xf] %vm441, %v437
        %494 = vst.msk [vmem:[#allocation2 + $0xd0] sm:$0xf] %vm441, %v438
        %495 = vst.msk [vmem:[#allocation2 + $0xd4] sm:$0xf] %vm441, %v439
        %vm496 = vcmask 18432
        %497 = vst.msk [vmem:[#allocation2 + $0xd8] sm:$0x7] %vm496, %v440
        %v498 = vld [vmem:[%s329 + $0x1] sm:$0xff]
        %v499 = vld [vmem:[%s329 + $0x9] sm:$0xff]
        %v500 = vld [vmem:[%s329 + $0x11] sm:$0xff]
        %v501 = vld [vmem:[%s329 + $0x19] sm:$0xff]
        %v502 = vld [vmem:[%s329 + $0x21] sm:$0xff]
        %v503 = vld [vmem:[%s329 + $0x29] sm:$0xff]
        %v504 = vld [vmem:[%s329 + $0x31] sm:$0xff]
        %v505 = vld [vmem:[%s329 + $0x39] sm:$0xff]
        %v506 = vld [vmem:[%s329 + $0x41] sm:$0xff]
        %v507 = vld [vmem:[%s329 + $0x49] sm:$0xff]
        %v508 = vld [vmem:[%s329 + $0x51] sm:$0xff]
        %v509 = vld [vmem:[%s329 + $0x59] sm:$0xff]
        %v510 = vld [vmem:[%s329 + $0x61] sm:$0xff]
        %v511 = vld [vmem:[%s329 + $0x69] sm:$0xff]
        %v512 = vld [vmem:[%s329 + $0x71] sm:$0xff]
        %v513 = vld [vmem:[%s329 + $0x79] sm:$0xff]
        %v514 = vld [vmem:[%s329 + $0x81] sm:$0xff]
        %v515 = vld [vmem:[%s329 + $0x89] sm:$0xff]
        %v516 = vld [vmem:[%s329 + $0x91] sm:$0xff]
        %v517 = vld [vmem:[%s329 + $0x99] sm:$0xff]
        %v518 = vld [vmem:[%s329 + $0xa1] sm:$0xff]
        %v519 = vld [vmem:[%s329 + $0xa9] sm:$0xff]
        %v520 = vld [vmem:[%s329 + $0xb1] sm:$0xff]
        %v521 = vld [vmem:[%s329 + $0xb9] sm:$0xff]
        %v522 = vld [vmem:[%s329 + $0xc1] sm:$0xff]
        %v523 = vld [vmem:[%s329 + $0xc9] sm:$0xff]
        %v524 = vld [vmem:[%s329 + $0xd1] sm:$0xff]
        %v525 = vld [vmem:[%s329 + $0xd9] sm:$0xff]
        %v526 = vld [vmem:[%s329 + $0xe1] sm:$0xff]
        %v527 = vld [vmem:[%s329 + $0xe9] sm:$0xff]
        %v528 = vld [vmem:[%s329 + $0xf1] sm:$0xff]
        %v529 = vld [vmem:[%s329 + $0xf9] sm:$0xff]
        %v530 = vld [vmem:[%s329 + $0x101] sm:$0xff]
        %v531 = vld [vmem:[%s329 + $0x109] sm:$0xff]
        %v532 = vld [vmem:[%s329 + $0x111] sm:$0xff]
        %v533 = vld [vmem:[%s329 + $0x119] sm:$0xff]
        %v534 = vld [vmem:[%s329 + $0x121] sm:$0xff]
        %v535 = vld [vmem:[%s329 + $0x129] sm:$0xff]
        %v536 = vld [vmem:[%s329 + $0x131] sm:$0xff]
        %v537 = vld [vmem:[%s329 + $0x139] sm:$0xff]
        %v538 = vld [vmem:[%s329 + $0x141] sm:$0xff]
        %v539 = vld [vmem:[%s329 + $0x149] sm:$0xff]
        %v540 = vld [vmem:[%s329 + $0x151] sm:$0xff]
        %v541 = vld [vmem:[%s329 + $0x159] sm:$0xff]
        %v542 = vld [vmem:[%s329 + $0x161] sm:$0xff]
        %v543 = vld [vmem:[%s329 + $0x169] sm:$0xff]
        %v544 = vld [vmem:[%s329 + $0x171] sm:$0xff]
        %v545 = vld [vmem:[%s329 + $0x179] sm:$0xff]
        %v546 = vld [vmem:[%s329 + $0x181] sm:$0xff]
        %v547 = vld [vmem:[%s329 + $0x189] sm:$0xff]
        %v548 = vld [vmem:[%s329 + $0x191] sm:$0xff]
        %v549 = vld [vmem:[%s329 + $0x199] sm:$0xff]
        %v550 = vld [vmem:[%s329 + $0x1a1] sm:$0xff]
        %v551 = vld [vmem:[%s329 + $0x1a9] sm:$0xff]
        %v552 = vld [vmem:[%s329 + $0x1b1] sm:$0x3f]
        %v553 = vpack.c.bf16 %v498, %v498
        %v554 = vpack.c.bf16 %v499, %v499
        %v555 = vpack.c.bf16 %v500, %v500
        %v556 = vpack.c.bf16 %v501, %v501
        %v557 = vpack.c.bf16 %v502, %v502
        %v558 = vpack.c.bf16 %v503, %v503
        %v559 = vpack.c.bf16 %v504, %v504
        %v560 = vpack.c.bf16 %v505, %v505
        %v561 = vpack.c.bf16 %v506, %v506
        %v562 = vpack.c.bf16 %v507, %v507
        %v563 = vpack.c.bf16 %v508, %v508
        %v564 = vpack.c.bf16 %v509, %v509
        %v565 = vpack.c.bf16 %v510, %v510
        %v566 = vpack.c.bf16 %v511, %v511
        %v567 = vpack.c.bf16 %v512, %v512
        %v568 = vpack.c.bf16 %v513, %v513
        %v569 = vpack.c.bf16 %v514, %v514
        %v570 = vpack.c.bf16 %v515, %v515
        %v571 = vpack.c.bf16 %v516, %v516
        %v572 = vpack.c.bf16 %v517, %v517
        %v573 = vpack.c.bf16 %v518, %v518
        %v574 = vpack.c.bf16 %v519, %v519
        %v575 = vpack.c.bf16 %v520, %v520
        %v576 = vpack.c.bf16 %v521, %v521
        %v577 = vpack.c.bf16 %v522, %v522
        %v578 = vpack.c.bf16 %v523, %v523
        %v579 = vpack.c.bf16 %v524, %v524
        %v580 = vpack.c.bf16 %v525, %v525
        %v581 = vpack.c.bf16 %v526, %v526
        %v582 = vpack.c.bf16 %v527, %v527
        %v583 = vpack.c.bf16 %v528, %v528
        %v584 = vpack.c.bf16 %v529, %v529
        %v585 = vpack.c.bf16 %v530, %v530
        %v586 = vpack.c.bf16 %v531, %v531
        %v587 = vpack.c.bf16 %v532, %v532
        %v588 = vpack.c.bf16 %v533, %v533
        %v589 = vpack.c.bf16 %v534, %v534
        %v590 = vpack.c.bf16 %v535, %v535
        %v591 = vpack.c.bf16 %v536, %v536
        %v592 = vpack.c.bf16 %v537, %v537
        %v593 = vpack.c.bf16 %v538, %v538
        %v594 = vpack.c.bf16 %v539, %v539
        %v595 = vpack.c.bf16 %v540, %v540
        %v596 = vpack.c.bf16 %v541, %v541
        %v597 = vpack.c.bf16 %v542, %v542
        %v598 = vpack.c.bf16 %v543, %v543
        %v599 = vpack.c.bf16 %v544, %v544
        %v600 = vpack.c.bf16 %v545, %v545
        %v601 = vpack.c.bf16 %v546, %v546
        %v602 = vpack.c.bf16 %v547, %v547
        %v603 = vpack.c.bf16 %v548, %v548
        %v604 = vpack.c.bf16 %v549, %v549
        %v605 = vpack.c.bf16 %v550, %v550
        %v606 = vpack.c.bf16 %v551, %v551
        %v607 = vpack.c.bf16 %v552, %v552
        %663 = vrot.lane.b32.xlu0 %v553, 3
        %v664 = vpop.permute.xlu0 %663
        %665 = vrot.lane.b32.xlu0 %v554, 3
        %v666 = vpop.permute.xlu0 %665
        %667 = vrot.lane.b32.xlu0 %v555, 3
        %v668 = vpop.permute.xlu0 %667
        %669 = vrot.lane.b32.xlu0 %v556, 3
        %v670 = vpop.permute.xlu0 %669
        %671 = vrot.lane.b32.xlu0 %v557, 3
        %v672 = vpop.permute.xlu0 %671
        %673 = vrot.lane.b32.xlu0 %v558, 3
        %v674 = vpop.permute.xlu0 %673
        %675 = vrot.lane.b32.xlu0 %v559, 3
        %v676 = vpop.permute.xlu0 %675
        %677 = vrot.lane.b32.xlu0 %v560, 3
        %v678 = vpop.permute.xlu0 %677
        %679 = vrot.lane.b32.xlu0 %v561, 3
        %v680 = vpop.permute.xlu0 %679
        %681 = vrot.lane.b32.xlu0 %v562, 3
        %v682 = vpop.permute.xlu0 %681
        %683 = vrot.lane.b32.xlu0 %v563, 3
        %v684 = vpop.permute.xlu0 %683
        %685 = vrot.lane.b32.xlu0 %v564, 3
        %v686 = vpop.permute.xlu0 %685
        %687 = vrot.lane.b32.xlu0 %v565, 3
        %v688 = vpop.permute.xlu0 %687
        %689 = vrot.lane.b32.xlu0 %v566, 3
        %v690 = vpop.permute.xlu0 %689
        %691 = vrot.lane.b32.xlu0 %v567, 3
        %v692 = vpop.permute.xlu0 %691
        %693 = vrot.lane.b32.xlu0 %v568, 3
        %v694 = vpop.permute.xlu0 %693
        %695 = vrot.lane.b32.xlu0 %v569, 3
        %v696 = vpop.permute.xlu0 %695
        %697 = vrot.lane.b32.xlu0 %v570, 3
        %v698 = vpop.permute.xlu0 %697
        %699 = vrot.lane.b32.xlu0 %v571, 3
        %v700 = vpop.permute.xlu0 %699
        %701 = vrot.lane.b32.xlu0 %v572, 3
        %v702 = vpop.permute.xlu0 %701
        %703 = vrot.lane.b32.xlu0 %v573, 3
        %v704 = vpop.permute.xlu0 %703
        %705 = vrot.lane.b32.xlu0 %v574, 3
        %v706 = vpop.permute.xlu0 %705
        %707 = vrot.lane.b32.xlu0 %v575, 3
        %v708 = vpop.permute.xlu0 %707
        %709 = vrot.lane.b32.xlu0 %v576, 3
        %v710 = vpop.permute.xlu0 %709
        %711 = vrot.lane.b32.xlu0 %v577, 3
        %v712 = vpop.permute.xlu0 %711
        %713 = vrot.lane.b32.xlu0 %v578, 3
        %v714 = vpop.permute.xlu0 %713
        %715 = vrot.lane.b32.xlu0 %v579, 3
        %v716 = vpop.permute.xlu0 %715
        %717 = vrot.lane.b32.xlu0 %v580, 3
        %v718 = vpop.permute.xlu0 %717
        %719 = vrot.lane.b32.xlu0 %v581, 3
        %v720 = vpop.permute.xlu0 %719
        %721 = vrot.lane.b32.xlu0 %v582, 3
        %v722 = vpop.permute.xlu0 %721
        %723 = vrot.lane.b32.xlu0 %v583, 3
        %v724 = vpop.permute.xlu0 %723
        %725 = vrot.lane.b32.xlu0 %v584, 3
        %v726 = vpop.permute.xlu0 %725
        %727 = vrot.lane.b32.xlu0 %v585, 3
        %v728 = vpop.permute.xlu0 %727
        %729 = vrot.lane.b32.xlu0 %v586, 3
        %v730 = vpop.permute.xlu0 %729
        %731 = vrot.lane.b32.xlu0 %v587, 3
        %v732 = vpop.permute.xlu0 %731
        %733 = vrot.lane.b32.xlu0 %v588, 3
        %v734 = vpop.permute.xlu0 %733
        %735 = vrot.lane.b32.xlu0 %v589, 3
        %v736 = vpop.permute.xlu0 %735
        %737 = vrot.lane.b32.xlu0 %v590, 3
        %v738 = vpop.permute.xlu0 %737
        %739 = vrot.lane.b32.xlu0 %v591, 3
        %v740 = vpop.permute.xlu0 %739
        %741 = vrot.lane.b32.xlu0 %v592, 3
        %v742 = vpop.permute.xlu0 %741
        %743 = vrot.lane.b32.xlu0 %v593, 3
        %v744 = vpop.permute.xlu0 %743
        %745 = vrot.lane.b32.xlu0 %v594, 3
        %v746 = vpop.permute.xlu0 %745
        %747 = vrot.lane.b32.xlu0 %v595, 3
        %v748 = vpop.permute.xlu0 %747
        %749 = vrot.lane.b32.xlu0 %v596, 3
        %v750 = vpop.permute.xlu0 %749
        %751 = vrot.lane.b32.xlu0 %v597, 3
        %v752 = vpop.permute.xlu0 %751
        %753 = vrot.lane.b32.xlu0 %v598, 3
        %v754 = vpop.permute.xlu0 %753
        %755 = vrot.lane.b32.xlu0 %v599, 3
        %v756 = vpop.permute.xlu0 %755
        %757 = vrot.lane.b32.xlu0 %v600, 3
        %v758 = vpop.permute.xlu0 %757
        %759 = vrot.lane.b32.xlu0 %v601, 3
        %v760 = vpop.permute.xlu0 %759
        %761 = vrot.lane.b32.xlu0 %v602, 3
        %v762 = vpop.permute.xlu0 %761
        %763 = vrot.lane.b32.xlu0 %v603, 3
        %v764 = vpop.permute.xlu0 %763
        %765 = vrot.lane.b32.xlu0 %v604, 3
        %v766 = vpop.permute.xlu0 %765
        %767 = vrot.lane.b32.xlu0 %v605, 3
        %v768 = vpop.permute.xlu0 %767
        %769 = vrot.lane.b32.xlu0 %v606, 3
        %v770 = vpop.permute.xlu0 %769
        %771 = vrot.lane.b32.xlu0 %v607, 3
        %v772 = vpop.permute.xlu0 %771
        %vm828 = vcmask 44056
        %829 = vst.msk [vmem:[#allocation2] sm:$0xf] %vm828, %v664
        %830 = vst.msk [vmem:[#allocation2 + $0x4] sm:$0xf] %vm828, %v666
        %831 = vst.msk [vmem:[#allocation2 + $0x8] sm:$0xf] %vm828, %v668
        %832 = vst.msk [vmem:[#allocation2 + $0xc] sm:$0xf] %vm828, %v670
        %833 = vst.msk [vmem:[#allocation2 + $0x10] sm:$0xf] %vm828, %v672
        %834 = vst.msk [vmem:[#allocation2 + $0x14] sm:$0xf] %vm828, %v674
        %835 = vst.msk [vmem:[#allocation2 + $0x18] sm:$0xf] %vm828, %v676
        %836 = vst.msk [vmem:[#allocation2 + $0x1c] sm:$0xf] %vm828, %v678
        %837 = vst.msk [vmem:[#allocation2 + $0x20] sm:$0xf] %vm828, %v680
        %838 = vst.msk [vmem:[#allocation2 + $0x24] sm:$0xf] %vm828, %v682
        %839 = vst.msk [vmem:[#allocation2 + $0x28] sm:$0xf] %vm828, %v684
        %840 = vst.msk [vmem:[#allocation2 + $0x2c] sm:$0xf] %vm828, %v686
        %841 = vst.msk [vmem:[#allocation2 + $0x30] sm:$0xf] %vm828, %v688
        %842 = vst.msk [vmem:[#allocation2 + $0x34] sm:$0xf] %vm828, %v690
        %843 = vst.msk [vmem:[#allocation2 + $0x38] sm:$0xf] %vm828, %v692
        %844 = vst.msk [vmem:[#allocation2 + $0x3c] sm:$0xf] %vm828, %v694
        %845 = vst.msk [vmem:[#allocation2 + $0x40] sm:$0xf] %vm828, %v696
        %846 = vst.msk [vmem:[#allocation2 + $0x44] sm:$0xf] %vm828, %v698
        %847 = vst.msk [vmem:[#allocation2 + $0x48] sm:$0xf] %vm828, %v700
        %848 = vst.msk [vmem:[#allocation2 + $0x4c] sm:$0xf] %vm828, %v702
        %849 = vst.msk [vmem:[#allocation2 + $0x50] sm:$0xf] %vm828, %v704
        %850 = vst.msk [vmem:[#allocation2 + $0x54] sm:$0xf] %vm828, %v706
        %851 = vst.msk [vmem:[#allocation2 + $0x58] sm:$0xf] %vm828, %v708
        %852 = vst.msk [vmem:[#allocation2 + $0x5c] sm:$0xf] %vm828, %v710
        %853 = vst.msk [vmem:[#allocation2 + $0x60] sm:$0xf] %vm828, %v712
        %854 = vst.msk [vmem:[#allocation2 + $0x64] sm:$0xf] %vm828, %v714
        %855 = vst.msk [vmem:[#allocation2 + $0x68] sm:$0xf] %vm828, %v716
        %856 = vst.msk [vmem:[#allocation2 + $0x6c] sm:$0xf] %vm828, %v718
        %857 = vst.msk [vmem:[#allocation2 + $0x70] sm:$0xf] %vm828, %v720
        %858 = vst.msk [vmem:[#allocation2 + $0x74] sm:$0xf] %vm828, %v722
        %859 = vst.msk [vmem:[#allocation2 + $0x78] sm:$0xf] %vm828, %v724
        %860 = vst.msk [vmem:[#allocation2 + $0x7c] sm:$0xf] %vm828, %v726
        %861 = vst.msk [vmem:[#allocation2 + $0x80] sm:$0xf] %vm828, %v728
        %862 = vst.msk [vmem:[#allocation2 + $0x84] sm:$0xf] %vm828, %v730
        %863 = vst.msk [vmem:[#allocation2 + $0x88] sm:$0xf] %vm828, %v732
        %864 = vst.msk [vmem:[#allocation2 + $0x8c] sm:$0xf] %vm828, %v734
        %865 = vst.msk [vmem:[#allocation2 + $0x90] sm:$0xf] %vm828, %v736
        %866 = vst.msk [vmem:[#allocation2 + $0x94] sm:$0xf] %vm828, %v738
        %867 = vst.msk [vmem:[#allocation2 + $0x98] sm:$0xf] %vm828, %v740
        %868 = vst.msk [vmem:[#allocation2 + $0x9c] sm:$0xf] %vm828, %v742
        %869 = vst.msk [vmem:[#allocation2 + $0xa0] sm:$0xf] %vm828, %v744
        %870 = vst.msk [vmem:[#allocation2 + $0xa4] sm:$0xf] %vm828, %v746
        %871 = vst.msk [vmem:[#allocation2 + $0xa8] sm:$0xf] %vm828, %v748
        %872 = vst.msk [vmem:[#allocation2 + $0xac] sm:$0xf] %vm828, %v750
        %873 = vst.msk [vmem:[#allocation2 + $0xb0] sm:$0xf] %vm828, %v752
        %874 = vst.msk [vmem:[#allocation2 + $0xb4] sm:$0xf] %vm828, %v754
        %875 = vst.msk [vmem:[#allocation2 + $0xb8] sm:$0xf] %vm828, %v756
        %876 = vst.msk [vmem:[#allocation2 + $0xbc] sm:$0xf] %vm828, %v758
        %877 = vst.msk [vmem:[#allocation2 + $0xc0] sm:$0xf] %vm828, %v760
        %878 = vst.msk [vmem:[#allocation2 + $0xc4] sm:$0xf] %vm828, %v762
        %879 = vst.msk [vmem:[#allocation2 + $0xc8] sm:$0xf] %vm828, %v764
        %880 = vst.msk [vmem:[#allocation2 + $0xcc] sm:$0xf] %vm828, %v766
        %881 = vst.msk [vmem:[#allocation2 + $0xd0] sm:$0xf] %vm828, %v768
        %882 = vst.msk [vmem:[#allocation2 + $0xd4] sm:$0xf] %vm828, %v770
        %vm883 = vcmask 43032
        %884 = vst.msk [vmem:[#allocation2 + $0xd8] sm:$0x7] %vm883, %v772
        %v885 = vld [vmem:[%s329 + $0x2] sm:$0xff]
        %v886 = vld [vmem:[%s329 + $0xa] sm:$0xff]
        %v887 = vld [vmem:[%s329 + $0x12] sm:$0xff]
        %v888 = vld [vmem:[%s329 + $0x1a] sm:$0xff]
        %v889 = vld [vmem:[%s329 + $0x22] sm:$0xff]
        %v890 = vld [vmem:[%s329 + $0x2a] sm:$0xff]
        %v891 = vld [vmem:[%s329 + $0x32] sm:$0xff]
        %v892 = vld [vmem:[%s329 + $0x3a] sm:$0xff]
        %v893 = vld [vmem:[%s329 + $0x42] sm:$0xff]
        %v894 = vld [vmem:[%s329 + $0x4a] sm:$0xff]
        %v895 = vld [vmem:[%s329 + $0x52] sm:$0xff]
        %v896 = vld [vmem:[%s329 + $0x5a] sm:$0xff]
        %v897 = vld [vmem:[%s329 + $0x62] sm:$0xff]
        %v898 = vld [vmem:[%s329 + $0x6a] sm:$0xff]
        %v899 = vld [vmem:[%s329 + $0x72] sm:$0xff]
        %v900 = vld [vmem:[%s329 + $0x7a] sm:$0xff]
        %v901 = vld [vmem:[%s329 + $0x82] sm:$0xff]
        %v902 = vld [vmem:[%s329 + $0x8a] sm:$0xff]
        %v903 = vld [vmem:[%s329 + $0x92] sm:$0xff]
        %v904 = vld [vmem:[%s329 + $0x9a] sm:$0xff]
        %v905 = vld [vmem:[%s329 + $0xa2] sm:$0xff]
        %v906 = vld [vmem:[%s329 + $0xaa] sm:$0xff]
        %v907 = vld [vmem:[%s329 + $0xb2] sm:$0xff]
        %v908 = vld [vmem:[%s329 + $0xba] sm:$0xff]
        %v909 = vld [vmem:[%s329 + $0xc2] sm:$0xff]
        %v910 = vld [vmem:[%s329 + $0xca] sm:$0xff]
        %v911 = vld [vmem:[%s329 + $0xd2] sm:$0xff]
        %v912 = vld [vmem:[%s329 + $0xda] sm:$0xff]
        %v913 = vld [vmem:[%s329 + $0xe2] sm:$0xff]
        %v914 = vld [vmem:[%s329 + $0xea] sm:$0xff]
        %v915 = vld [vmem:[%s329 + $0xf2] sm:$0xff]
        %v916 = vld [vmem:[%s329 + $0xfa] sm:$0xff]
        %v917 = vld [vmem:[%s329 + $0x102] sm:$0xff]
        %v918 = vld [vmem:[%s329 + $0x10a] sm:$0xff]
        %v919 = vld [vmem:[%s329 + $0x112] sm:$0xff]
        %v920 = vld [vmem:[%s329 + $0x11a] sm:$0xff]
        %v921 = vld [vmem:[%s329 + $0x122] sm:$0xff]
        %v922 = vld [vmem:[%s329 + $0x12a] sm:$0xff]
        %v923 = vld [vmem:[%s329 + $0x132] sm:$0xff]
        %v924 = vld [vmem:[%s329 + $0x13a] sm:$0xff]
        %v925 = vld [vmem:[%s329 + $0x142] sm:$0xff]
        %v926 = vld [vmem:[%s329 + $0x14a] sm:$0xff]
        %v927 = vld [vmem:[%s329 + $0x152] sm:$0xff]
        %v928 = vld [vmem:[%s329 + $0x15a] sm:$0xff]
        %v929 = vld [vmem:[%s329 + $0x162] sm:$0xff]
        %v930 = vld [vmem:[%s329 + $0x16a] sm:$0xff]
        %v931 = vld [vmem:[%s329 + $0x172] sm:$0xff]
        %v932 = vld [vmem:[%s329 + $0x17a] sm:$0xff]
        %v933 = vld [vmem:[%s329 + $0x182] sm:$0xff]
        %v934 = vld [vmem:[%s329 + $0x18a] sm:$0xff]
        %v935 = vld [vmem:[%s329 + $0x192] sm:$0xff]
        %v936 = vld [vmem:[%s329 + $0x19a] sm:$0xff]
        %v937 = vld [vmem:[%s329 + $0x1a2] sm:$0xff]
        %v938 = vld [vmem:[%s329 + $0x1aa] sm:$0xff]
        %v939 = vld [vmem:[%s329 + $0x1b2] sm:$0x3f]
        %v940 = vpack.c.bf16 %v885, %v885
        %v941 = vpack.c.bf16 %v886, %v886
        %v942 = vpack.c.bf16 %v887, %v887
        %v943 = vpack.c.bf16 %v888, %v888
        %v944 = vpack.c.bf16 %v889, %v889
        %v945 = vpack.c.bf16 %v890, %v890
        %v946 = vpack.c.bf16 %v891, %v891
        %v947 = vpack.c.bf16 %v892, %v892
        %v948 = vpack.c.bf16 %v893, %v893
        %v949 = vpack.c.bf16 %v894, %v894
        %v950 = vpack.c.bf16 %v895, %v895
        %v951 = vpack.c.bf16 %v896, %v896
        %v952 = vpack.c.bf16 %v897, %v897
        %v953 = vpack.c.bf16 %v898, %v898
        %v954 = vpack.c.bf16 %v899, %v899
        %v955 = vpack.c.bf16 %v900, %v900
        %v956 = vpack.c.bf16 %v901, %v901
        %v957 = vpack.c.bf16 %v902, %v902
        %v958 = vpack.c.bf16 %v903, %v903
        %v959 = vpack.c.bf16 %v904, %v904
        %v960 = vpack.c.bf16 %v905, %v905
        %v961 = vpack.c.bf16 %v906, %v906
        %v962 = vpack.c.bf16 %v907, %v907
        %v963 = vpack.c.bf16 %v908, %v908
        %v964 = vpack.c.bf16 %v909, %v909
        %v965 = vpack.c.bf16 %v910, %v910
        %v966 = vpack.c.bf16 %v911, %v911
        %v967 = vpack.c.bf16 %v912, %v912
        %v968 = vpack.c.bf16 %v913, %v913
        %v969 = vpack.c.bf16 %v914, %v914
        %v970 = vpack.c.bf16 %v915, %v915
        %v971 = vpack.c.bf16 %v916, %v916
        %v972 = vpack.c.bf16 %v917, %v917
        %v973 = vpack.c.bf16 %v918, %v918
        %v974 = vpack.c.bf16 %v919, %v919
        %v975 = vpack.c.bf16 %v920, %v920
        %v976 = vpack.c.bf16 %v921, %v921
        %v977 = vpack.c.bf16 %v922, %v922
        %v978 = vpack.c.bf16 %v923, %v923
        %v979 = vpack.c.bf16 %v924, %v924
        %v980 = vpack.c.bf16 %v925, %v925
        %v981 = vpack.c.bf16 %v926, %v926
        %v982 = vpack.c.bf16 %v927, %v927
        %v983 = vpack.c.bf16 %v928, %v928
        %v984 = vpack.c.bf16 %v929, %v929
        %v985 = vpack.c.bf16 %v930, %v930
        %v986 = vpack.c.bf16 %v931, %v931
        %v987 = vpack.c.bf16 %v932, %v932
        %v988 = vpack.c.bf16 %v933, %v933
        %v989 = vpack.c.bf16 %v934, %v934
        %v990 = vpack.c.bf16 %v935, %v935
        %v991 = vpack.c.bf16 %v936, %v936
        %v992 = vpack.c.bf16 %v937, %v937
        %v993 = vpack.c.bf16 %v938, %v938
        %v994 = vpack.c.bf16 %v939, %v939
        %1050 = vrot.lane.b32.xlu0 %v940, 6
        %v1051 = vpop.permute.xlu0 %1050
        %1052 = vrot.lane.b32.xlu0 %v941, 6
        %v1053 = vpop.permute.xlu0 %1052
        %1054 = vrot.lane.b32.xlu0 %v942, 6
        %v1055 = vpop.permute.xlu0 %1054
        %1056 = vrot.lane.b32.xlu0 %v943, 6
        %v1057 = vpop.permute.xlu0 %1056
        %1058 = vrot.lane.b32.xlu0 %v944, 6
        %v1059 = vpop.permute.xlu0 %1058
        %1060 = vrot.lane.b32.xlu0 %v945, 6
        %v1061 = vpop.permute.xlu0 %1060
        %1062 = vrot.lane.b32.xlu0 %v946, 6
        %v1063 = vpop.permute.xlu0 %1062
        %1064 = vrot.lane.b32.xlu0 %v947, 6
        %v1065 = vpop.permute.xlu0 %1064
        %1066 = vrot.lane.b32.xlu0 %v948, 6
        %v1067 = vpop.permute.xlu0 %1066
        %1068 = vrot.lane.b32.xlu0 %v949, 6
        %v1069 = vpop.permute.xlu0 %1068
        %1070 = vrot.lane.b32.xlu0 %v950, 6
        %v1071 = vpop.permute.xlu0 %1070
        %1072 = vrot.lane.b32.xlu0 %v951, 6
        %v1073 = vpop.permute.xlu0 %1072
        %1074 = vrot.lane.b32.xlu0 %v952, 6
        %v1075 = vpop.permute.xlu0 %1074
        %1076 = vrot.lane.b32.xlu0 %v953, 6
        %v1077 = vpop.permute.xlu0 %1076
        %1078 = vrot.lane.b32.xlu0 %v954, 6
        %v1079 = vpop.permute.xlu0 %1078
        %1080 = vrot.lane.b32.xlu0 %v955, 6
        %v1081 = vpop.permute.xlu0 %1080
        %1082 = vrot.lane.b32.xlu0 %v956, 6
        %v1083 = vpop.permute.xlu0 %1082
        %1084 = vrot.lane.b32.xlu0 %v957, 6
        %v1085 = vpop.permute.xlu0 %1084
        %1086 = vrot.lane.b32.xlu0 %v958, 6
        %v1087 = vpop.permute.xlu0 %1086
        %1088 = vrot.lane.b32.xlu0 %v959, 6
        %v1089 = vpop.permute.xlu0 %1088
        %1090 = vrot.lane.b32.xlu0 %v960, 6
        %v1091 = vpop.permute.xlu0 %1090
        %1092 = vrot.lane.b32.xlu0 %v961, 6
        %v1093 = vpop.permute.xlu0 %1092
        %1094 = vrot.lane.b32.xlu0 %v962, 6
        %v1095 = vpop.permute.xlu0 %1094
        %1096 = vrot.lane.b32.xlu0 %v963, 6
        %v1097 = vpop.permute.xlu0 %1096
        %1098 = vrot.lane.b32.xlu0 %v964, 6
        %v1099 = vpop.permute.xlu0 %1098
        %1100 = vrot.lane.b32.xlu0 %v965, 6
        %v1101 = vpop.permute.xlu0 %1100
        %1102 = vrot.lane.b32.xlu0 %v966, 6
        %v1103 = vpop.permute.xlu0 %1102
        %1104 = vrot.lane.b32.xlu0 %v967, 6
        %v1105 = vpop.permute.xlu0 %1104
        %1106 = vrot.lane.b32.xlu0 %v968, 6
        %v1107 = vpop.permute.xlu0 %1106
        %1108 = vrot.lane.b32.xlu0 %v969, 6
        %v1109 = vpop.permute.xlu0 %1108
        %1110 = vrot.lane.b32.xlu0 %v970, 6
        %v1111 = vpop.permute.xlu0 %1110
        %1112 = vrot.lane.b32.xlu0 %v971, 6
        %v1113 = vpop.permute.xlu0 %1112
        %1114 = vrot.lane.b32.xlu0 %v972, 6
        %v1115 = vpop.permute.xlu0 %1114
        %1116 = vrot.lane.b32.xlu0 %v973, 6
        %v1117 = vpop.permute.xlu0 %1116
        %1118 = vrot.lane.b32.xlu0 %v974, 6
        %v1119 = vpop.permute.xlu0 %1118
        %1120 = vrot.lane.b32.xlu0 %v975, 6
        %v1121 = vpop.permute.xlu0 %1120
        %1122 = vrot.lane.b32.xlu0 %v976, 6
        %v1123 = vpop.permute.xlu0 %1122
        %1124 = vrot.lane.b32.xlu0 %v977, 6
        %v1125 = vpop.permute.xlu0 %1124
        %1126 = vrot.lane.b32.xlu0 %v978, 6
        %v1127 = vpop.permute.xlu0 %1126
        %1128 = vrot.lane.b32.xlu0 %v979, 6
        %v1129 = vpop.permute.xlu0 %1128
        %1130 = vrot.lane.b32.xlu0 %v980, 6
        %v1131 = vpop.permute.xlu0 %1130
        %1132 = vrot.lane.b32.xlu0 %v981, 6
        %v1133 = vpop.permute.xlu0 %1132
        %1134 = vrot.lane.b32.xlu0 %v982, 6
        %v1135 = vpop.permute.xlu0 %1134
        %1136 = vrot.lane.b32.xlu0 %v983, 6
        %v1137 = vpop.permute.xlu0 %1136
        %1138 = vrot.lane.b32.xlu0 %v984, 6
        %v1139 = vpop.permute.xlu0 %1138
        %1140 = vrot.lane.b32.xlu0 %v985, 6
        %v1141 = vpop.permute.xlu0 %1140
        %1142 = vrot.lane.b32.xlu0 %v986, 6
        %v1143 = vpop.permute.xlu0 %1142
        %1144 = vrot.lane.b32.xlu0 %v987, 6
        %v1145 = vpop.permute.xlu0 %1144
        %1146 = vrot.lane.b32.xlu0 %v988, 6
        %v1147 = vpop.permute.xlu0 %1146
        %1148 = vrot.lane.b32.xlu0 %v989, 6
        %v1149 = vpop.permute.xlu0 %1148
        %1150 = vrot.lane.b32.xlu0 %v990, 6
        %v1151 = vpop.permute.xlu0 %1150
        %1152 = vrot.lane.b32.xlu0 %v991, 6
        %v1153 = vpop.permute.xlu0 %1152
        %1154 = vrot.lane.b32.xlu0 %v992, 6
        %v1155 = vpop.permute.xlu0 %1154
        %1156 = vrot.lane.b32.xlu0 %v993, 6
        %v1157 = vpop.permute.xlu0 %1156
        %1158 = vrot.lane.b32.xlu0 %v994, 6
        %v1159 = vpop.permute.xlu0 %1158
        %vm1215 = vcmask 68656
        %1216 = vst.msk [vmem:[#allocation2] sm:$0xf] %vm1215, %v1051
        %1217 = vst.msk [vmem:[#allocation2 + $0x4] sm:$0xf] %vm1215, %v1053
        %1218 = vst.msk [vmem:[#allocation2 + $0x8] sm:$0xf] %vm1215, %v1055
        %1219 = vst.msk [vmem:[#allocation2 + $0xc] sm:$0xf] %vm1215, %v1057
        %1220 = vst.msk [vmem:[#allocation2 + $0x10] sm:$0xf] %vm1215, %v1059
        %1221 = vst.msk [vmem:[#allocation2 + $0x14] sm:$0xf] %vm1215, %v1061
        %1222 = vst.msk [vmem:[#allocation2 + $0x18] sm:$0xf] %vm1215, %v1063
        %1223 = vst.msk [vmem:[#allocation2 + $0x1c] sm:$0xf] %vm1215, %v1065
        %1224 = vst.msk [vmem:[#allocation2 + $0x20] sm:$0xf] %vm1215, %v1067
        %1225 = vst.msk [vmem:[#allocation2 + $0x24] sm:$0xf] %vm1215, %v1069
        %1226 = vst.msk [vmem:[#allocation2 + $0x28] sm:$0xf] %vm1215, %v1071
        %1227 = vst.msk [vmem:[#allocation2 + $0x2c] sm:$0xf] %vm1215, %v1073
        %1228 = vst.msk [vmem:[#allocation2 + $0x30] sm:$0xf] %vm1215, %v1075
        %1229 = vst.msk [vmem:[#allocation2 + $0x34] sm:$0xf] %vm1215, %v1077
        %1230 = vst.msk [vmem:[#allocation2 + $0x38] sm:$0xf] %vm1215, %v1079
        %1231 = vst.msk [vmem:[#allocation2 + $0x3c] sm:$0xf] %vm1215, %v1081
        %1232 = vst.msk [vmem:[#allocation2 + $0x40] sm:$0xf] %vm1215, %v1083
        %1233 = vst.msk [vmem:[#allocation2 + $0x44] sm:$0xf] %vm1215, %v1085
        %1234 = vst.msk [vmem:[#allocation2 + $0x48] sm:$0xf] %vm1215, %v1087
        %1235 = vst.msk [vmem:[#allocation2 + $0x4c] sm:$0xf] %vm1215, %v1089
        %1236 = vst.msk [vmem:[#allocation2 + $0x50] sm:$0xf] %vm1215, %v1091
        %1237 = vst.msk [vmem:[#allocation2 + $0x54] sm:$0xf] %vm1215, %v1093
        %1238 = vst.msk [vmem:[#allocation2 + $0x58] sm:$0xf] %vm1215, %v1095
        %1239 = vst.msk [vmem:[#allocation2 + $0x5c] sm:$0xf] %vm1215, %v1097
        %1240 = vst.msk [vmem:[#allocation2 + $0x60] sm:$0xf] %vm1215, %v1099
        %1241 = vst.msk [vmem:[#allocation2 + $0x64] sm:$0xf] %vm1215, %v1101
        %1242 = vst.msk [vmem:[#allocation2 + $0x68] sm:$0xf] %vm1215, %v1103
        %1243 = vst.msk [vmem:[#allocation2 + $0x6c] sm:$0xf] %vm1215, %v1105
        %1244 = vst.msk [vmem:[#allocation2 + $0x70] sm:$0xf] %vm1215, %v1107
        %1245 = vst.msk [vmem:[#allocation2 + $0x74] sm:$0xf] %vm1215, %v1109
        %1246 = vst.msk [vmem:[#allocation2 + $0x78] sm:$0xf] %vm1215, %v1111
        %1247 = vst.msk [vmem:[#allocation2 + $0x7c] sm:$0xf] %vm1215, %v1113
        %1248 = vst.msk [vmem:[#allocation2 + $0x80] sm:$0xf] %vm1215, %v1115
        %1249 = vst.msk [vmem:[#allocation2 + $0x84] sm:$0xf] %vm1215, %v1117
        %1250 = vst.msk [vmem:[#allocation2 + $0x88] sm:$0xf] %vm1215, %v1119
        %1251 = vst.msk [vmem:[#allocation2 + $0x8c] sm:$0xf] %vm1215, %v1121
        %1252 = vst.msk [vmem:[#allocation2 + $0x90] sm:$0xf] %vm1215, %v1123
        %1253 = vst.msk [vmem:[#allocation2 + $0x94] sm:$0xf] %vm1215, %v1125
        %1254 = vst.msk [vmem:[#allocation2 + $0x98] sm:$0xf] %vm1215, %v1127
        %1255 = vst.msk [vmem:[#allocation2 + $0x9c] sm:$0xf] %vm1215, %v1129
        %1256 = vst.msk [vmem:[#allocation2 + $0xa0] sm:$0xf] %vm1215, %v1131
        %1257 = vst.msk [vmem:[#allocation2 + $0xa4] sm:$0xf] %vm1215, %v1133
        %1258 = vst.msk [vmem:[#allocation2 + $0xa8] sm:$0xf] %vm1215, %v1135
        %1259 = vst.msk [vmem:[#allocation2 + $0xac] sm:$0xf] %vm1215, %v1137
        %1260 = vst.msk [vmem:[#allocation2 + $0xb0] sm:$0xf] %vm1215, %v1139
        %1261 = vst.msk [vmem:[#allocation2 + $0xb4] sm:$0xf] %vm1215, %v1141
        %1262 = vst.msk [vmem:[#allocation2 + $0xb8] sm:$0xf] %vm1215, %v1143
        %1263 = vst.msk [vmem:[#allocation2 + $0xbc] sm:$0xf] %vm1215, %v1145
        %1264 = vst.msk [vmem:[#allocation2 + $0xc0] sm:$0xf] %vm1215, %v1147
        %1265 = vst.msk [vmem:[#allocation2 + $0xc4] sm:$0xf] %vm1215, %v1149
        %1266 = vst.msk [vmem:[#allocation2 + $0xc8] sm:$0xf] %vm1215, %v1151
        %1267 = vst.msk [vmem:[#allocation2 + $0xcc] sm:$0xf] %vm1215, %v1153
        %1268 = vst.msk [vmem:[#allocation2 + $0xd0] sm:$0xf] %vm1215, %v1155
        %1269 = vst.msk [vmem:[#allocation2 + $0xd4] sm:$0xf] %vm1215, %v1157
        %vm1270 = vcmask 67632
        %1271 = vst.msk [vmem:[#allocation2 + $0xd8] sm:$0x7] %vm1270, %v1159
        %v1272 = vld [vmem:[%s329 + $0x16] sm:$0xff]
        %v1273 = vld [vmem:[%s329 + $0x1e] sm:$0xff]
        %v1274 = vld [vmem:[%s329 + $0x26] sm:$0xff]
        %v1275 = vld [vmem:[%s329 + $0x2e] sm:$0xff]
        %v1276 = vld [vmem:[%s329 + $0x36] sm:$0xff]
        %v1277 = vld [vmem:[%s329 + $0x3e] sm:$0xff]
        %v1278 = vld [vmem:[%s329 + $0x46] sm:$0xff]
        %v1279 = vld [vmem:[%s329 + $0x4e] sm:$0xff]
        %v1280 = vld [vmem:[%s329 + $0x56] sm:$0xff]
        %v1281 = vld [vmem:[%s329 + $0x5e] sm:$0xff]
        %v1282 = vld [vmem:[%s329 + $0x66] sm:$0xff]
        %v1283 = vld [vmem:[%s329 + $0x6e] sm:$0xff]
        %v1284 = vld [vmem:[%s329 + $0x76] sm:$0xff]
        %v1285 = vld [vmem:[%s329 + $0x7e] sm:$0xff]
        %v1286 = vld [vmem:[%s329 + $0x86] sm:$0xff]
        %v1287 = vld [vmem:[%s329 + $0x8e] sm:$0xff]
        %v1288 = vld [vmem:[%s329 + $0x96] sm:$0xff]
        %v1289 = vld [vmem:[%s329 + $0x9e] sm:$0xff]
        %v1290 = vld [vmem:[%s329 + $0xa6] sm:$0xff]
        %v1291 = vld [vmem:[%s329 + $0xae] sm:$0xff]
        %v1292 = vld [vmem:[%s329 + $0xb6] sm:$0xff]
        %v1293 = vld [vmem:[%s329 + $0xbe] sm:$0xff]
        %v1294 = vld [vmem:[%s329 + $0xc6] sm:$0xff]
        %v1295 = vld [vmem:[%s329 + $0xce] sm:$0xff]
        %v1296 = vld [vmem:[%s329 + $0xd6] sm:$0xff]
        %v1297 = vld [vmem:[%s329 + $0xde] sm:$0xff]
        %v1298 = vld [vmem:[%s329 + $0xe6] sm:$0xff]
        %v1299 = vld [vmem:[%s329 + $0xee] sm:$0xff]
        %v1300 = vld [vmem:[%s329 + $0xf6] sm:$0xff]
        %v1301 = vld [vmem:[%s329 + $0xfe] sm:$0xff]
        %v1302 = vld [vmem:[%s329 + $0x106] sm:$0xff]
        %v1303 = vld [vmem:[%s329 + $0x10e] sm:$0xff]
        %v1304 = vld [vmem:[%s329 + $0x116] sm:$0xff]
        %v1305 = vld [vmem:[%s329 + $0x11e] sm:$0xff]
        %v1306 = vld [vmem:[%s329 + $0x126] sm:$0xff]
        %v1307 = vld [vmem:[%s329 + $0x12e] sm:$0xff]
        %v1308 = vld [vmem:[%s329 + $0x136] sm:$0xff]
        %v1309 = vld [vmem:[%s329 + $0x13e] sm:$0xff]
        %v1310 = vld [vmem:[%s329 + $0x146] sm:$0xff]
        %v1311 = vld [vmem:[%s329 + $0x14e] sm:$0xff]
        %v1312 = vld [vmem:[%s329 + $0x156] sm:$0xff]
        %v1313 = vld [vmem:[%s329 + $0x15e] sm:$0xff]
        %v1314 = vld [vmem:[%s329 + $0x166] sm:$0xff]
        %v1315 = vld [vmem:[%s329 + $0x16e] sm:$0xff]
        %v1316 = vld [vmem:[%s329 + $0x176] sm:$0xff]
        %v1317 = vld [vmem:[%s329 + $0x17e] sm:$0xff]
        %v1318 = vld [vmem:[%s329 + $0x186] sm:$0xff]
        %v1319 = vld [vmem:[%s329 + $0x18e] sm:$0xff]
        %v1320 = vld [vmem:[%s329 + $0x196] sm:$0xff]
        %v1321 = vld [vmem:[%s329 + $0x19e] sm:$0xff]
        %v1322 = vld [vmem:[%s329 + $0x1a6] sm:$0xff]
        %v1323 = vld [vmem:[%s329 + $0x1ae] sm:$0xff]
        %v1324 = vld [vmem:[%s329 + $0x1b6] sm:$0xff]
        %v1325 = vld [vmem:[%s329 + $0x1be] sm:$0xff]
        %v1326 = vld [vmem:[%s329 + $0x1c6] sm:$0x3f]
        %v1327 = vpack.c.bf16 %v1272, %v1272
        %v1328 = vpack.c.bf16 %v1273, %v1273
        %v1329 = vpack.c.bf16 %v1274, %v1274
        %v1330 = vpack.c.bf16 %v1275, %v1275
        %v1331 = vpack.c.bf16 %v1276, %v1276
        %v1332 = vpack.c.bf16 %v1277, %v1277
        %v1333 = vpack.c.bf16 %v1278, %v1278
        %v1334 = vpack.c.bf16 %v1279, %v1279
        %v1335 = vpack.c.bf16 %v1280, %v1280
        %v1336 = vpack.c.bf16 %v1281, %v1281
        %v1337 = vpack.c.bf16 %v1282, %v1282
        %v1338 = vpack.c.bf16 %v1283, %v1283
        %v1339 = vpack.c.bf16 %v1284, %v1284
        %v1340 = vpack.c.bf16 %v1285, %v1285
        %v1341 = vpack.c.bf16 %v1286, %v1286
        %v1342 = vpack.c.bf16 %v1287, %v1287
        %v1343 = vpack.c.bf16 %v1288, %v1288
        %v1344 = vpack.c.bf16 %v1289, %v1289
        %v1345 = vpack.c.bf16 %v1290, %v1290
        %v1346 = vpack.c.bf16 %v1291, %v1291
        %v1347 = vpack.c.bf16 %v1292, %v1292
        %v1348 = vpack.c.bf16 %v1293, %v1293
        %v1349 = vpack.c.bf16 %v1294, %v1294
        %v1350 = vpack.c.bf16 %v1295, %v1295
        %v1351 = vpack.c.bf16 %v1296, %v1296
        %v1352 = vpack.c.bf16 %v1297, %v1297
        %v1353 = vpack.c.bf16 %v1298, %v1298
        %v1354 = vpack.c.bf16 %v1299, %v1299
        %v1355 = vpack.c.bf16 %v1300, %v1300
        %v1356 = vpack.c.bf16 %v1301, %v1301
        %v1357 = vpack.c.bf16 %v1302, %v1302
        %v1358 = vpack.c.bf16 %v1303, %v1303
        %v1359 = vpack.c.bf16 %v1304, %v1304
        %v1360 = vpack.c.bf16 %v1305, %v1305
        %v1361 = vpack.c.bf16 %v1306, %v1306
        %v1362 = vpack.c.bf16 %v1307, %v1307
        %v1363 = vpack.c.bf16 %v1308, %v1308
        %v1364 = vpack.c.bf16 %v1309, %v1309
        %v1365 = vpack.c.bf16 %v1310, %v1310
        %v1366 = vpack.c.bf16 %v1311, %v1311
        %v1367 = vpack.c.bf16 %v1312, %v1312
        %v1368 = vpack.c.bf16 %v1313, %v1313
        %v1369 = vpack.c.bf16 %v1314, %v1314
        %v1370 = vpack.c.bf16 %v1315, %v1315
        %v1371 = vpack.c.bf16 %v1316, %v1316
        %v1372 = vpack.c.bf16 %v1317, %v1317
        %v1373 = vpack.c.bf16 %v1318, %v1318
        %v1374 = vpack.c.bf16 %v1319, %v1319
        %v1375 = vpack.c.bf16 %v1320, %v1320
        %v1376 = vpack.c.bf16 %v1321, %v1321
        %v1377 = vpack.c.bf16 %v1322, %v1322
        %v1378 = vpack.c.bf16 %v1323, %v1323
        %v1379 = vpack.c.bf16 %v1324, %v1324
        %v1380 = vpack.c.bf16 %v1325, %v1325
        %v1381 = vpack.c.bf16 %v1326, %v1326
        %1437 = vrot.lane.b32.xlu0 %v1327, 9
        %v1438 = vpop.permute.xlu0 %1437
        %1439 = vrot.lane.b32.xlu0 %v1328, 9
        %v1440 = vpop.permute.xlu0 %1439
        %1441 = vrot.lane.b32.xlu0 %v1329, 9
        %v1442 = vpop.permute.xlu0 %1441
        %1443 = vrot.lane.b32.xlu0 %v1330, 9
        %v1444 = vpop.permute.xlu0 %1443
        %1445 = vrot.lane.b32.xlu0 %v1331, 9
        %v1446 = vpop.permute.xlu0 %1445
        %1447 = vrot.lane.b32.xlu0 %v1332, 9
        %v1448 = vpop.permute.xlu0 %1447
        %1449 = vrot.lane.b32.xlu0 %v1333, 9
        %v1450 = vpop.permute.xlu0 %1449
        %1451 = vrot.lane.b32.xlu0 %v1334, 9
        %v1452 = vpop.permute.xlu0 %1451
        %1453 = vrot.lane.b32.xlu0 %v1335, 9
        %v1454 = vpop.permute.xlu0 %1453
        %1455 = vrot.lane.b32.xlu0 %v1336, 9
        %v1456 = vpop.permute.xlu0 %1455
        %1457 = vrot.lane.b32.xlu0 %v1337, 9
        %v1458 = vpop.permute.xlu0 %1457
        %1459 = vrot.lane.b32.xlu0 %v1338, 9
        %v1460 = vpop.permute.xlu0 %1459
        %1461 = vrot.lane.b32.xlu0 %v1339, 9
        %v1462 = vpop.permute.xlu0 %1461
        %1463 = vrot.lane.b32.xlu0 %v1340, 9
        %v1464 = vpop.permute.xlu0 %1463
        %1465 = vrot.lane.b32.xlu0 %v1341, 9
        %v1466 = vpop.permute.xlu0 %1465
        %1467 = vrot.lane.b32.xlu0 %v1342, 9
        %v1468 = vpop.permute.xlu0 %1467
        %1469 = vrot.lane.b32.xlu0 %v1343, 9
        %v1470 = vpop.permute.xlu0 %1469
        %1471 = vrot.lane.b32.xlu0 %v1344, 9
        %v1472 = vpop.permute.xlu0 %1471
        %1473 = vrot.lane.b32.xlu0 %v1345, 9
        %v1474 = vpop.permute.xlu0 %1473
        %1475 = vrot.lane.b32.xlu0 %v1346, 9
        %v1476 = vpop.permute.xlu0 %1475
        %1477 = vrot.lane.b32.xlu0 %v1347, 9
        %v1478 = vpop.permute.xlu0 %1477
        %1479 = vrot.lane.b32.xlu0 %v1348, 9
        %v1480 = vpop.permute.xlu0 %1479
        %1481 = vrot.lane.b32.xlu0 %v1349, 9
        %v1482 = vpop.permute.xlu0 %1481
        %1483 = vrot.lane.b32.xlu0 %v1350, 9
        %v1484 = vpop.permute.xlu0 %1483
        %1485 = vrot.lane.b32.xlu0 %v1351, 9
        %v1486 = vpop.permute.xlu0 %1485
        %1487 = vrot.lane.b32.xlu0 %v1352, 9
        %v1488 = vpop.permute.xlu0 %1487
        %1489 = vrot.lane.b32.xlu0 %v1353, 9
        %v1490 = vpop.permute.xlu0 %1489
        %1491 = vrot.lane.b32.xlu0 %v1354, 9
        %v1492 = vpop.permute.xlu0 %1491
        %1493 = vrot.lane.b32.xlu0 %v1355, 9
        %v1494 = vpop.permute.xlu0 %1493
        %1495 = vrot.lane.b32.xlu0 %v1356, 9
        %v1496 = vpop.permute.xlu0 %1495
        %1497 = vrot.lane.b32.xlu0 %v1357, 9
        %v1498 = vpop.permute.xlu0 %1497
        %1499 = vrot.lane.b32.xlu0 %v1358, 9
        %v1500 = vpop.permute.xlu0 %1499
        %1501 = vrot.lane.b32.xlu0 %v1359, 9
        %v1502 = vpop.permute.xlu0 %1501
        %1503 = vrot.lane.b32.xlu0 %v1360, 9
        %v1504 = vpop.permute.xlu0 %1503
        %1505 = vrot.lane.b32.xlu0 %v1361, 9
        %v1506 = vpop.permute.xlu0 %1505
        %1507 = vrot.lane.b32.xlu0 %v1362, 9
        %v1508 = vpop.permute.xlu0 %1507
        %1509 = vrot.lane.b32.xlu0 %v1363, 9
        %v1510 = vpop.permute.xlu0 %1509
        %1511 = vrot.lane.b32.xlu0 %v1364, 9
        %v1512 = vpop.permute.xlu0 %1511
        %1513 = vrot.lane.b32.xlu0 %v1365, 9
        %v1514 = vpop.permute.xlu0 %1513
        %1515 = vrot.lane.b32.xlu0 %v1366, 9
        %v1516 = vpop.permute.xlu0 %1515
        %1517 = vrot.lane.b32.xlu0 %v1367, 9
        %v1518 = vpop.permute.xlu0 %1517
        %1519 = vrot.lane.b32.xlu0 %v1368, 9
        %v1520 = vpop.permute.xlu0 %1519
        %1521 = vrot.lane.b32.xlu0 %v1369, 9
        %v1522 = vpop.permute.xlu0 %1521
        %1523 = vrot.lane.b32.xlu0 %v1370, 9
        %v1524 = vpop.permute.xlu0 %1523
        %1525 = vrot.lane.b32.xlu0 %v1371, 9
        %v1526 = vpop.permute.xlu0 %1525
        %1527 = vrot.lane.b32.xlu0 %v1372, 9
        %v1528 = vpop.permute.xlu0 %1527
        %1529 = vrot.lane.b32.xlu0 %v1373, 9
        %v1530 = vpop.permute.xlu0 %1529
        %1531 = vrot.lane.b32.xlu0 %v1374, 9
        %v1532 = vpop.permute.xlu0 %1531
        %1533 = vrot.lane.b32.xlu0 %v1375, 9
        %v1534 = vpop.permute.xlu0 %1533
        %1535 = vrot.lane.b32.xlu0 %v1376, 9
        %v1536 = vpop.permute.xlu0 %1535
        %1537 = vrot.lane.b32.xlu0 %v1377, 9
        %v1538 = vpop.permute.xlu0 %1537
        %1539 = vrot.lane.b32.xlu0 %v1378, 9
        %v1540 = vpop.permute.xlu0 %1539
        %1541 = vrot.lane.b32.xlu0 %v1379, 9
        %v1542 = vpop.permute.xlu0 %1541
        %1543 = vrot.lane.b32.xlu0 %v1380, 9
        %v1544 = vpop.permute.xlu0 %1543
        %1545 = vrot.lane.b32.xlu0 %v1381, 9
        %v1546 = vpop.permute.xlu0 %1545
        %vm1602 = vcmask 93256
        %1603 = vst.msk [vmem:[#allocation2] sm:$0xf] %vm1602, %v1438
        %1604 = vst.msk [vmem:[#allocation2 + $0x4] sm:$0xf] %vm1602, %v1440
        %1605 = vst.msk [vmem:[#allocation2 + $0x8] sm:$0xf] %vm1602, %v1442
        %1606 = vst.msk [vmem:[#allocation2 + $0xc] sm:$0xf] %vm1602, %v1444
        %1607 = vst.msk [vmem:[#allocation2 + $0x10] sm:$0xf] %vm1602, %v1446
        %1608 = vst.msk [vmem:[#allocation2 + $0x14] sm:$0xf] %vm1602, %v1448
        %1609 = vst.msk [vmem:[#allocation2 + $0x18] sm:$0xf] %vm1602, %v1450
        %1610 = vst.msk [vmem:[#allocation2 + $0x1c] sm:$0xf] %vm1602, %v1452
        %1611 = vst.msk [vmem:[#allocation2 + $0x20] sm:$0xf] %vm1602, %v1454
        %1612 = vst.msk [vmem:[#allocation2 + $0x24] sm:$0xf] %vm1602, %v1456
        %1613 = vst.msk [vmem:[#allocation2 + $0x28] sm:$0xf] %vm1602, %v1458
        %1614 = vst.msk [vmem:[#allocation2 + $0x2c] sm:$0xf] %vm1602, %v1460
        %1615 = vst.msk [vmem:[#allocation2 + $0x30] sm:$0xf] %vm1602, %v1462
        %1616 = vst.msk [vmem:[#allocation2 + $0x34] sm:$0xf] %vm1602, %v1464
        %1617 = vst.msk [vmem:[#allocation2 + $0x38] sm:$0xf] %vm1602, %v1466
        %1618 = vst.msk [vmem:[#allocation2 + $0x3c] sm:$0xf] %vm1602, %v1468
        %1619 = vst.msk [vmem:[#allocation2 + $0x40] sm:$0xf] %vm1602, %v1470
        %1620 = vst.msk [vmem:[#allocation2 + $0x44] sm:$0xf] %vm1602, %v1472
        %1621 = vst.msk [vmem:[#allocation2 + $0x48] sm:$0xf] %vm1602, %v1474
        %1622 = vst.msk [vmem:[#allocation2 + $0x4c] sm:$0xf] %vm1602, %v1476
        %1623 = vst.msk [vmem:[#allocation2 + $0x50] sm:$0xf] %vm1602, %v1478
        %1624 = vst.msk [vmem:[#allocation2 + $0x54] sm:$0xf] %vm1602, %v1480
        %1625 = vst.msk [vmem:[#allocation2 + $0x58] sm:$0xf] %vm1602, %v1482
        %1626 = vst.msk [vmem:[#allocation2 + $0x5c] sm:$0xf] %vm1602, %v1484
        %1627 = vst.msk [vmem:[#allocation2 + $0x60] sm:$0xf] %vm1602, %v1486
        %1628 = vst.msk [vmem:[#allocation2 + $0x64] sm:$0xf] %vm1602, %v1488
        %1629 = vst.msk [vmem:[#allocation2 + $0x68] sm:$0xf] %vm1602, %v1490
        %1630 = vst.msk [vmem:[#allocation2 + $0x6c] sm:$0xf] %vm1602, %v1492
        %1631 = vst.msk [vmem:[#allocation2 + $0x70] sm:$0xf] %vm1602, %v1494
        %1632 = vst.msk [vmem:[#allocation2 + $0x74] sm:$0xf] %vm1602, %v1496
        %1633 = vst.msk [vmem:[#allocation2 + $0x78] sm:$0xf] %vm1602, %v1498
        %1634 = vst.msk [vmem:[#allocation2 + $0x7c] sm:$0xf] %vm1602, %v1500
        %1635 = vst.msk [vmem:[#allocation2 + $0x80] sm:$0xf] %vm1602, %v1502
        %1636 = vst.msk [vmem:[#allocation2 + $0x84] sm:$0xf] %vm1602, %v1504
        %1637 = vst.msk [vmem:[#allocation2 + $0x88] sm:$0xf] %vm1602, %v1506
        %1638 = vst.msk [vmem:[#allocation2 + $0x8c] sm:$0xf] %vm1602, %v1508
        %1639 = vst.msk [vmem:[#allocation2 + $0x90] sm:$0xf] %vm1602, %v1510
        %1640 = vst.msk [vmem:[#allocation2 + $0x94] sm:$0xf] %vm1602, %v1512
        %1641 = vst.msk [vmem:[#allocation2 + $0x98] sm:$0xf] %vm1602, %v1514
        %1642 = vst.msk [vmem:[#allocation2 + $0x9c] sm:$0xf] %vm1602, %v1516
        %1643 = vst.msk [vmem:[#allocation2 + $0xa0] sm:$0xf] %vm1602, %v1518
        %1644 = vst.msk [vmem:[#allocation2 + $0xa4] sm:$0xf] %vm1602, %v1520
        %1645 = vst.msk [vmem:[#allocation2 + $0xa8] sm:$0xf] %vm1602, %v1522
        %1646 = vst.msk [vmem:[#allocation2 + $0xac] sm:$0xf] %vm1602, %v1524
        %1647 = vst.msk [vmem:[#allocation2 + $0xb0] sm:$0xf] %vm1602, %v1526
        %1648 = vst.msk [vmem:[#allocation2 + $0xb4] sm:$0xf] %vm1602, %v1528
        %1649 = vst.msk [vmem:[#allocation2 + $0xb8] sm:$0xf] %vm1602, %v1530
        %1650 = vst.msk [vmem:[#allocation2 + $0xbc] sm:$0xf] %vm1602, %v1532
        %1651 = vst.msk [vmem:[#allocation2 + $0xc0] sm:$0xf] %vm1602, %v1534
        %1652 = vst.msk [vmem:[#allocation2 + $0xc4] sm:$0xf] %vm1602, %v1536
        %1653 = vst.msk [vmem:[#allocation2 + $0xc8] sm:$0xf] %vm1602, %v1538
        %1654 = vst.msk [vmem:[#allocation2 + $0xcc] sm:$0xf] %vm1602, %v1540
        %1655 = vst.msk [vmem:[#allocation2 + $0xd0] sm:$0xf] %vm1602, %v1542
        %1656 = vst.msk [vmem:[#allocation2 + $0xd4] sm:$0xf] %vm1602, %v1544
        %vm1657 = vcmask 92232
        %1658 = vst.msk [vmem:[#allocation2 + $0xd8] sm:$0x7] %vm1657, %v1546
        %v1659 = vld [vmem:[%s329 + $0x17] sm:$0xff]
        %v1660 = vld [vmem:[%s329 + $0x1f] sm:$0xff]
        %v1661 = vld [vmem:[%s329 + $0x27] sm:$0xff]
        %v1662 = vld [vmem:[%s329 + $0x2f] sm:$0xff]
        %v1663 = vld [vmem:[%s329 + $0x37] sm:$0xff]
        %v1664 = vld [vmem:[%s329 + $0x3f] sm:$0xff]
        %v1665 = vld [vmem:[%s329 + $0x47] sm:$0xff]
        %v1666 = vld [vmem:[%s329 + $0x4f] sm:$0xff]
        %v1667 = vld [vmem:[%s329 + $0x57] sm:$0xff]
        %v1668 = vld [vmem:[%s329 + $0x5f] sm:$0xff]
        %v1669 = vld [vmem:[%s329 + $0x67] sm:$0xff]
        %v1670 = vld [vmem:[%s329 + $0x6f] sm:$0xff]
        %v1671 = vld [vmem:[%s329 + $0x77] sm:$0xff]
        %v1672 = vld [vmem:[%s329 + $0x7f] sm:$0xff]
        %v1673 = vld [vmem:[%s329 + $0x87] sm:$0xff]
        %v1674 = vld [vmem:[%s329 + $0x8f] sm:$0xff]
        %v1675 = vld [vmem:[%s329 + $0x97] sm:$0xff]
        %v1676 = vld [vmem:[%s329 + $0x9f] sm:$0xff]
        %v1677 = vld [vmem:[%s329 + $0xa7] sm:$0xff]
        %v1678 = vld [vmem:[%s329 + $0xaf] sm:$0xff]
        %v1679 = vld [vmem:[%s329 + $0xb7] sm:$0xff]
        %v1680 = vld [vmem:[%s329 + $0xbf] sm:$0xff]
        %v1681 = vld [vmem:[%s329 + $0xc7] sm:$0xff]
        %v1682 = vld [vmem:[%s329 + $0xcf] sm:$0xff]
        %v1683 = vld [vmem:[%s329 + $0xd7] sm:$0xff]
        %v1684 = vld [vmem:[%s329 + $0xdf] sm:$0xff]
        %v1685 = vld [vmem:[%s329 + $0xe7] sm:$0xff]
        %v1686 = vld [vmem:[%s329 + $0xef] sm:$0xff]
        %v1687 = vld [vmem:[%s329 + $0xf7] sm:$0xff]
        %v1688 = vld [vmem:[%s329 + $0xff] sm:$0xff]
        %v1689 = vld [vmem:[%s329 + $0x107] sm:$0xff]
        %v1690 = vld [vmem:[%s329 + $0x10f] sm:$0xff]
        %v1691 = vld [vmem:[%s329 + $0x117] sm:$0xff]
        %v1692 = vld [vmem:[%s329 + $0x11f] sm:$0xff]
        %v1693 = vld [vmem:[%s329 + $0x127] sm:$0xff]
        %v1694 = vld [vmem:[%s329 + $0x12f] sm:$0xff]
        %v1695 = vld [vmem:[%s329 + $0x137] sm:$0xff]
        %v1696 = vld [vmem:[%s329 + $0x13f] sm:$0xff]
        %v1697 = vld [vmem:[%s329 + $0x147] sm:$0xff]
        %v1698 = vld [vmem:[%s329 + $0x14f] sm:$0xff]
        %v1699 = vld [vmem:[%s329 + $0x157] sm:$0xff]
        %v1700 = vld [vmem:[%s329 + $0x15f] sm:$0xff]
        %v1701 = vld [vmem:[%s329 + $0x167] sm:$0xff]
        %v1702 = vld [vmem:[%s329 + $0x16f] sm:$0xff]
        %v1703 = vld [vmem:[%s329 + $0x177] sm:$0xff]
        %v1704 = vld [vmem:[%s329 + $0x17f] sm:$0xff]
        %v1705 = vld [vmem:[%s329 + $0x187] sm:$0xff]
        %v1706 = vld [vmem:[%s329 + $0x18f] sm:$0xff]
        %v1707 = vld [vmem:[%s329 + $0x197] sm:$0xff]
        %v1708 = vld [vmem:[%s329 + $0x19f] sm:$0xff]
        %v1709 = vld [vmem:[%s329 + $0x1a7] sm:$0xff]
        %v1710 = vld [vmem:[%s329 + $0x1af] sm:$0xff]
        %v1711 = vld [vmem:[%s329 + $0x1b7] sm:$0xff]
        %v1712 = vld [vmem:[%s329 + $0x1bf] sm:$0xff]
        %v1713 = vld [vmem:[%s329 + $0x1c7] sm:$0x3f]
        %v1714 = vpack.c.bf16 %v1659, %v1659
        %v1715 = vpack.c.bf16 %v1660, %v1660
        %v1716 = vpack.c.bf16 %v1661, %v1661
        %v1717 = vpack.c.bf16 %v1662, %v1662
        %v1718 = vpack.c.bf16 %v1663, %v1663
        %v1719 = vpack.c.bf16 %v1664, %v1664
        %v1720 = vpack.c.bf16 %v1665, %v1665
        %v1721 = vpack.c.bf16 %v1666, %v1666
        %v1722 = vpack.c.bf16 %v1667, %v1667
        %v1723 = vpack.c.bf16 %v1668, %v1668
        %v1724 = vpack.c.bf16 %v1669, %v1669
        %v1725 = vpack.c.bf16 %v1670, %v1670
        %v1726 = vpack.c.bf16 %v1671, %v1671
        %v1727 = vpack.c.bf16 %v1672, %v1672
        %v1728 = vpack.c.bf16 %v1673, %v1673
        %v1729 = vpack.c.bf16 %v1674, %v1674
        %v1730 = vpack.c.bf16 %v1675, %v1675
        %v1731 = vpack.c.bf16 %v1676, %v1676
        %v1732 = vpack.c.bf16 %v1677, %v1677
        %v1733 = vpack.c.bf16 %v1678, %v1678
        %v1734 = vpack.c.bf16 %v1679, %v1679
        %v1735 = vpack.c.bf16 %v1680, %v1680
        %v1736 = vpack.c.bf16 %v1681, %v1681
        %v1737 = vpack.c.bf16 %v1682, %v1682
        %v1738 = vpack.c.bf16 %v1683, %v1683
        %v1739 = vpack.c.bf16 %v1684, %v1684
        %v1740 = vpack.c.bf16 %v1685, %v1685
        %v1741 = vpack.c.bf16 %v1686, %v1686
        %v1742 = vpack.c.bf16 %v1687, %v1687
        %v1743 = vpack.c.bf16 %v1688, %v1688
        %v1744 = vpack.c.bf16 %v1689, %v1689
        %v1745 = vpack.c.bf16 %v1690, %v1690
        %v1746 = vpack.c.bf16 %v1691, %v1691
        %v1747 = vpack.c.bf16 %v1692, %v1692
        %v1748 = vpack.c.bf16 %v1693, %v1693
        %v1749 = vpack.c.bf16 %v1694, %v1694
        %v1750 = vpack.c.bf16 %v1695, %v1695
        %v1751 = vpack.c.bf16 %v1696, %v1696
        %v1752 = vpack.c.bf16 %v1697, %v1697
        %v1753 = vpack.c.bf16 %v1698, %v1698
        %v1754 = vpack.c.bf16 %v1699, %v1699
        %v1755 = vpack.c.bf16 %v1700, %v1700
        %v1756 = vpack.c.bf16 %v1701, %v1701
        %v1757 = vpack.c.bf16 %v1702, %v1702
        %v1758 = vpack.c.bf16 %v1703, %v1703
        %v1759 = vpack.c.bf16 %v1704, %v1704
        %v1760 = vpack.c.bf16 %v1705, %v1705
        %v1761 = vpack.c.bf16 %v1706, %v1706
        %v1762 = vpack.c.bf16 %v1707, %v1707
        %v1763 = vpack.c.bf16 %v1708, %v1708
        %v1764 = vpack.c.bf16 %v1709, %v1709
        %v1765 = vpack.c.bf16 %v1710, %v1710
        %v1766 = vpack.c.bf16 %v1711, %v1711
        %v1767 = vpack.c.bf16 %v1712, %v1712
        %v1768 = vpack.c.bf16 %v1713, %v1713
        %1824 = vrot.lane.b32.xlu0 %v1714, 12
        %v1825 = vpop.permute.xlu0 %1824
        %1826 = vrot.lane.b32.xlu0 %v1715, 12
        %v1827 = vpop.permute.xlu0 %1826
        %1828 = vrot.lane.b32.xlu0 %v1716, 12
        %v1829 = vpop.permute.xlu0 %1828
        %1830 = vrot.lane.b32.xlu0 %v1717, 12
        %v1831 = vpop.permute.xlu0 %1830
        %1832 = vrot.lane.b32.xlu0 %v1718, 12
        %v1833 = vpop.permute.xlu0 %1832
        %1834 = vrot.lane.b32.xlu0 %v1719, 12
        %v1835 = vpop.permute.xlu0 %1834
        %1836 = vrot.lane.b32.xlu0 %v1720, 12
        %v1837 = vpop.permute.xlu0 %1836
        %1838 = vrot.lane.b32.xlu0 %v1721, 12
        %v1839 = vpop.permute.xlu0 %1838
        %1840 = vrot.lane.b32.xlu0 %v1722, 12
        %v1841 = vpop.permute.xlu0 %1840
        %1842 = vrot.lane.b32.xlu0 %v1723, 12
        %v1843 = vpop.permute.xlu0 %1842
        %1844 = vrot.lane.b32.xlu0 %v1724, 12
        %v1845 = vpop.permute.xlu0 %1844
        %1846 = vrot.lane.b32.xlu0 %v1725, 12
        %v1847 = vpop.permute.xlu0 %1846
        %1848 = vrot.lane.b32.xlu0 %v1726, 12
        %v1849 = vpop.permute.xlu0 %1848
        %1850 = vrot.lane.b32.xlu0 %v1727, 12
        %v1851 = vpop.permute.xlu0 %1850
        %1852 = vrot.lane.b32.xlu0 %v1728, 12
        %v1853 = vpop.permute.xlu0 %1852
        %1854 = vrot.lane.b32.xlu0 %v1729, 12
        %v1855 = vpop.permute.xlu0 %1854
        %1856 = vrot.lane.b32.xlu0 %v1730, 12
        %v1857 = vpop.permute.xlu0 %1856
        %1858 = vrot.lane.b32.xlu0 %v1731, 12
        %v1859 = vpop.permute.xlu0 %1858
        %1860 = vrot.lane.b32.xlu0 %v1732, 12
        %v1861 = vpop.permute.xlu0 %1860
        %1862 = vrot.lane.b32.xlu0 %v1733, 12
        %v1863 = vpop.permute.xlu0 %1862
        %1864 = vrot.lane.b32.xlu0 %v1734, 12
        %v1865 = vpop.permute.xlu0 %1864
        %1866 = vrot.lane.b32.xlu0 %v1735, 12
        %v1867 = vpop.permute.xlu0 %1866
        %1868 = vrot.lane.b32.xlu0 %v1736, 12
        %v1869 = vpop.permute.xlu0 %1868
        %1870 = vrot.lane.b32.xlu0 %v1737, 12
        %v1871 = vpop.permute.xlu0 %1870
        %1872 = vrot.lane.b32.xlu0 %v1738, 12
        %v1873 = vpop.permute.xlu0 %1872
        %1874 = vrot.lane.b32.xlu0 %v1739, 12
        %v1875 = vpop.permute.xlu0 %1874
        %1876 = vrot.lane.b32.xlu0 %v1740, 12
        %v1877 = vpop.permute.xlu0 %1876
        %1878 = vrot.lane.b32.xlu0 %v1741, 12
        %v1879 = vpop.permute.xlu0 %1878
        %1880 = vrot.lane.b32.xlu0 %v1742, 12
        %v1881 = vpop.permute.xlu0 %1880
        %1882 = vrot.lane.b32.xlu0 %v1743, 12
        %v1883 = vpop.permute.xlu0 %1882
        %1884 = vrot.lane.b32.xlu0 %v1744, 12
        %v1885 = vpop.permute.xlu0 %1884
        %1886 = vrot.lane.b32.xlu0 %v1745, 12
        %v1887 = vpop.permute.xlu0 %1886
        %1888 = vrot.lane.b32.xlu0 %v1746, 12
        %v1889 = vpop.permute.xlu0 %1888
        %1890 = vrot.lane.b32.xlu0 %v1747, 12
        %v1891 = vpop.permute.xlu0 %1890
        %1892 = vrot.lane.b32.xlu0 %v1748, 12
        %v1893 = vpop.permute.xlu0 %1892
        %1894 = vrot.lane.b32.xlu0 %v1749, 12
        %v1895 = vpop.permute.xlu0 %1894
        %1896 = vrot.lane.b32.xlu0 %v1750, 12
        %v1897 = vpop.permute.xlu0 %1896
        %1898 = vrot.lane.b32.xlu0 %v1751, 12
        %v1899 = vpop.permute.xlu0 %1898
        %1900 = vrot.lane.b32.xlu0 %v1752, 12
        %v1901 = vpop.permute.xlu0 %1900
        %1902 = vrot.lane.b32.xlu0 %v1753, 12
        %v1903 = vpop.permute.xlu0 %1902
        %1904 = vrot.lane.b32.xlu0 %v1754, 12
        %v1905 = vpop.permute.xlu0 %1904
        %1906 = vrot.lane.b32.xlu0 %v1755, 12
        %v1907 = vpop.permute.xlu0 %1906
        %1908 = vrot.lane.b32.xlu0 %v1756, 12
        %v1909 = vpop.permute.xlu0 %1908
        %1910 = vrot.lane.b32.xlu0 %v1757, 12
        %v1911 = vpop.permute.xlu0 %1910
        %1912 = vrot.lane.b32.xlu0 %v1758, 12
        %v1913 = vpop.permute.xlu0 %1912
        %1914 = vrot.lane.b32.xlu0 %v1759, 12
        %v1915 = vpop.permute.xlu0 %1914
        %1916 = vrot.lane.b32.xlu0 %v1760, 12
        %v1917 = vpop.permute.xlu0 %1916
        %1918 = vrot.lane.b32.xlu0 %v1761, 12
        %v1919 = vpop.permute.xlu0 %1918
        %1920 = vrot.lane.b32.xlu0 %v1762, 12
        %v1921 = vpop.permute.xlu0 %1920
        %1922 = vrot.lane.b32.xlu0 %v1763, 12
        %v1923 = vpop.permute.xlu0 %1922
        %1924 = vrot.lane.b32.xlu0 %v1764, 12
        %v1925 = vpop.permute.xlu0 %1924
        %1926 = vrot.lane.b32.xlu0 %v1765, 12
        %v1927 = vpop.permute.xlu0 %1926
        %1928 = vrot.lane.b32.xlu0 %v1766, 12
        %v1929 = vpop.permute.xlu0 %1928
        %1930 = vrot.lane.b32.xlu0 %v1767, 12
        %v1931 = vpop.permute.xlu0 %1930
        %1932 = vrot.lane.b32.xlu0 %v1768, 12
        %v1933 = vpop.permute.xlu0 %1932
        %vm1989 = vcmask 117856
        %1990 = vst.msk [vmem:[#allocation2] sm:$0xf] %vm1989, %v1825
        %1991 = vst.msk [vmem:[#allocation2 + $0x4] sm:$0xf] %vm1989, %v1827
        %1992 = vst.msk [vmem:[#allocation2 + $0x8] sm:$0xf] %vm1989, %v1829
        %1993 = vst.msk [vmem:[#allocation2 + $0xc] sm:$0xf] %vm1989, %v1831
        %1994 = vst.msk [vmem:[#allocation2 + $0x10] sm:$0xf] %vm1989, %v1833
        %1995 = vst.msk [vmem:[#allocation2 + $0x14] sm:$0xf] %vm1989, %v1835
        %1996 = vst.msk [vmem:[#allocation2 + $0x18] sm:$0xf] %vm1989, %v1837
        %1997 = vst.msk [vmem:[#allocation2 + $0x1c] sm:$0xf] %vm1989, %v1839
        %1998 = vst.msk [vmem:[#allocation2 + $0x20] sm:$0xf] %vm1989, %v1841
        %1999 = vst.msk [vmem:[#allocation2 + $0x24] sm:$0xf] %vm1989, %v1843
        %2000 = vst.msk [vmem:[#allocation2 + $0x28] sm:$0xf] %vm1989, %v1845
        %2001 = vst.msk [vmem:[#allocation2 + $0x2c] sm:$0xf] %vm1989, %v1847
        %2002 = vst.msk [vmem:[#allocation2 + $0x30] sm:$0xf] %vm1989, %v1849
        %2003 = vst.msk [vmem:[#allocation2 + $0x34] sm:$0xf] %vm1989, %v1851
        %2004 = vst.msk [vmem:[#allocation2 + $0x38] sm:$0xf] %vm1989, %v1853
        %2005 = vst.msk [vmem:[#allocation2 + $0x3c] sm:$0xf] %vm1989, %v1855
        %2006 = vst.msk [vmem:[#allocation2 + $0x40] sm:$0xf] %vm1989, %v1857
        %2007 = vst.msk [vmem:[#allocation2 + $0x44] sm:$0xf] %vm1989, %v1859
        %2008 = vst.msk [vmem:[#allocation2 + $0x48] sm:$0xf] %vm1989, %v1861
        %2009 = vst.msk [vmem:[#allocation2 + $0x4c] sm:$0xf] %vm1989, %v1863
        %2010 = vst.msk [vmem:[#allocation2 + $0x50] sm:$0xf] %vm1989, %v1865
        %2011 = vst.msk [vmem:[#allocation2 + $0x54] sm:$0xf] %vm1989, %v1867
        %2012 = vst.msk [vmem:[#allocation2 + $0x58] sm:$0xf] %vm1989, %v1869
        %2013 = vst.msk [vmem:[#allocation2 + $0x5c] sm:$0xf] %vm1989, %v1871
        %2014 = vst.msk [vmem:[#allocation2 + $0x60] sm:$0xf] %vm1989, %v1873
        %2015 = vst.msk [vmem:[#allocation2 + $0x64] sm:$0xf] %vm1989, %v1875
        %2016 = vst.msk [vmem:[#allocation2 + $0x68] sm:$0xf] %vm1989, %v1877
        %2017 = vst.msk [vmem:[#allocation2 + $0x6c] sm:$0xf] %vm1989, %v1879
        %2018 = vst.msk [vmem:[#allocation2 + $0x70] sm:$0xf] %vm1989, %v1881
        %2019 = vst.msk [vmem:[#allocation2 + $0x74] sm:$0xf] %vm1989, %v1883
        %2020 = vst.msk [vmem:[#allocation2 + $0x78] sm:$0xf] %vm1989, %v1885
        %2021 = vst.msk [vmem:[#allocation2 + $0x7c] sm:$0xf] %vm1989, %v1887
        %2022 = vst.msk [vmem:[#allocation2 + $0x80] sm:$0xf] %vm1989, %v1889
        %2023 = vst.msk [vmem:[#allocation2 + $0x84] sm:$0xf] %vm1989, %v1891
        %2024 = vst.msk [vmem:[#allocation2 + $0x88] sm:$0xf] %vm1989, %v1893
        %2025 = vst.msk [vmem:[#allocation2 + $0x8c] sm:$0xf] %vm1989, %v1895
        %2026 = vst.msk [vmem:[#allocation2 + $0x90] sm:$0xf] %vm1989, %v1897
        %2027 = vst.msk [vmem:[#allocation2 + $0x94] sm:$0xf] %vm1989, %v1899
        %2028 = vst.msk [vmem:[#allocation2 + $0x98] sm:$0xf] %vm1989, %v1901
        %2029 = vst.msk [vmem:[#allocation2 + $0x9c] sm:$0xf] %vm1989, %v1903
        %2030 = vst.msk [vmem:[#allocation2 + $0xa0] sm:$0xf] %vm1989, %v1905
        %2031 = vst.msk [vmem:[#allocation2 + $0xa4] sm:$0xf] %vm1989, %v1907
        %2032 = vst.msk [vmem:[#allocation2 + $0xa8] sm:$0xf] %vm1989, %v1909
        %2033 = vst.msk [vmem:[#allocation2 + $0xac] sm:$0xf] %vm1989, %v1911
        %2034 = vst.msk [vmem:[#allocation2 + $0xb0] sm:$0xf] %vm1989, %v1913
        %2035 = vst.msk [vmem:[#allocation2 + $0xb4] sm:$0xf] %vm1989, %v1915
        %2036 = vst.msk [vmem:[#allocation2 + $0xb8] sm:$0xf] %vm1989, %v1917
        %2037 = vst.msk [vmem:[#allocation2 + $0xbc] sm:$0xf] %vm1989, %v1919
        %2038 = vst.msk [vmem:[#allocation2 + $0xc0] sm:$0xf] %vm1989, %v1921
        %2039 = vst.msk [vmem:[#allocation2 + $0xc4] sm:$0xf] %vm1989, %v1923
        %2040 = vst.msk [vmem:[#allocation2 + $0xc8] sm:$0xf] %vm1989, %v1925
        %2041 = vst.msk [vmem:[#allocation2 + $0xcc] sm:$0xf] %vm1989, %v1927
        %2042 = vst.msk [vmem:[#allocation2 + $0xd0] sm:$0xf] %vm1989, %v1929
        %2043 = vst.msk [vmem:[#allocation2 + $0xd4] sm:$0xf] %vm1989, %v1931
        %vm2044 = vcmask 116832
        %2045 = vst.msk [vmem:[#allocation2 + $0xd8] sm:$0x7] %vm2044, %v1933
        %v2046 = vld [vmem:[%s329 + $0x18] sm:$0xff]
        %v2047 = vld [vmem:[%s329 + $0x20] sm:$0xff]
        %v2048 = vld [vmem:[%s329 + $0x28] sm:$0xff]
        %v2049 = vld [vmem:[%s329 + $0x30] sm:$0xff]
        %v2050 = vld [vmem:[%s329 + $0x38] sm:$0xff]
        %v2051 = vld [vmem:[%s329 + $0x40] sm:$0xff]
        %v2052 = vld [vmem:[%s329 + $0x48] sm:$0xff]
        %v2053 = vld [vmem:[%s329 + $0x50] sm:$0xff]
        %v2054 = vld [vmem:[%s329 + $0x58] sm:$0xff]
        %v2055 = vld [vmem:[%s329 + $0x60] sm:$0xff]
        %v2056 = vld [vmem:[%s329 + $0x68] sm:$0xff]
        %v2057 = vld [vmem:[%s329 + $0x70] sm:$0xff]
        %v2058 = vld [vmem:[%s329 + $0x78] sm:$0xff]
        %v2059 = vld [vmem:[%s329 + $0x80] sm:$0xff]
        %v2060 = vld [vmem:[%s329 + $0x88] sm:$0xff]
        %v2061 = vld [vmem:[%s329 + $0x90] sm:$0xff]
        %v2062 = vld [vmem:[%s329 + $0x98] sm:$0xff]
        %v2063 = vld [vmem:[%s329 + $0xa0] sm:$0xff]
        %v2064 = vld [vmem:[%s329 + $0xa8] sm:$0xff]
        %v2065 = vld [vmem:[%s329 + $0xb0] sm:$0xff]
        %v2066 = vld [vmem:[%s329 + $0xb8] sm:$0xff]
        %v2067 = vld [vmem:[%s329 + $0xc0] sm:$0xff]
        %v2068 = vld [vmem:[%s329 + $0xc8] sm:$0xff]
        %v2069 = vld [vmem:[%s329 + $0xd0] sm:$0xff]
        %v2070 = vld [vmem:[%s329 + $0xd8] sm:$0xff]
        %v2071 = vld [vmem:[%s329 + $0xe0] sm:$0xff]
        %v2072 = vld [vmem:[%s329 + $0xe8] sm:$0xff]
        %v2073 = vld [vmem:[%s329 + $0xf0] sm:$0xff]
        %v2074 = vld [vmem:[%s329 + $0xf8] sm:$0xff]
        %v2075 = vld [vmem:[%s329 + $0x100] sm:$0xff]
        %v2076 = vld [vmem:[%s329 + $0x108] sm:$0xff]
        %v2077 = vld [vmem:[%s329 + $0x110] sm:$0xff]
        %v2078 = vld [vmem:[%s329 + $0x118] sm:$0xff]
        %v2079 = vld [vmem:[%s329 + $0x120] sm:$0xff]
        %v2080 = vld [vmem:[%s329 + $0x128] sm:$0xff]
        %v2081 = vld [vmem:[%s329 + $0x130] sm:$0xff]
        %v2082 = vld [vmem:[%s329 + $0x138] sm:$0xff]
        %v2083 = vld [vmem:[%s329 + $0x140] sm:$0xff]
        %v2084 = vld [vmem:[%s329 + $0x148] sm:$0xff]
        %v2085 = vld [vmem:[%s329 + $0x150] sm:$0xff]
        %v2086 = vld [vmem:[%s329 + $0x158] sm:$0xff]
        %v2087 = vld [vmem:[%s329 + $0x160] sm:$0xff]
        %v2088 = vld [vmem:[%s329 + $0x168] sm:$0xff]
        %v2089 = vld [vmem:[%s329 + $0x170] sm:$0xff]
        %v2090 = vld [vmem:[%s329 + $0x178] sm:$0xff]
        %v2091 = vld [vmem:[%s329 + $0x180] sm:$0xff]
        %v2092 = vld [vmem:[%s329 + $0x188] sm:$0xff]
        %v2093 = vld [vmem:[%s329 + $0x190] sm:$0xff]
        %v2094 = vld [vmem:[%s329 + $0x198] sm:$0xff]
        %v2095 = vld [vmem:[%s329 + $0x1a0] sm:$0xff]
        %v2096 = vld [vmem:[%s329 + $0x1a8] sm:$0xff]
        %v2097 = vld [vmem:[%s329 + $0x1b0] sm:$0xff]
        %v2098 = vld [vmem:[%s329 + $0x1b8] sm:$0xff]
        %v2099 = vld [vmem:[%s329 + $0x1c0] sm:$0xff]
        %v2100 = vld [vmem:[%s329 + $0x1c8] sm:$0x3f]
        %v2101 = vpack.c.bf16 %v2046, %v2046
        %v2102 = vpack.c.bf16 %v2047, %v2047
        %v2103 = vpack.c.bf16 %v2048, %v2048
        %v2104 = vpack.c.bf16 %v2049, %v2049
        %v2105 = vpack.c.bf16 %v2050, %v2050
        %v2106 = vpack.c.bf16 %v2051, %v2051
        %v2107 = vpack.c.bf16 %v2052, %v2052
        %v2108 = vpack.c.bf16 %v2053, %v2053
        %v2109 = vpack.c.bf16 %v2054, %v2054
        %v2110 = vpack.c.bf16 %v2055, %v2055
        %v2111 = vpack.c.bf16 %v2056, %v2056
        %v2112 = vpack.c.bf16 %v2057, %v2057
        %v2113 = vpack.c.bf16 %v2058, %v2058
        %v2114 = vpack.c.bf16 %v2059, %v2059
        %v2115 = vpack.c.bf16 %v2060, %v2060
        %v2116 = vpack.c.bf16 %v2061, %v2061
        %v2117 = vpack.c.bf16 %v2062, %v2062
        %v2118 = vpack.c.bf16 %v2063, %v2063
        %v2119 = vpack.c.bf16 %v2064, %v2064
        %v2120 = vpack.c.bf16 %v2065, %v2065
        %v2121 = vpack.c.bf16 %v2066, %v2066
        %v2122 = vpack.c.bf16 %v2067, %v2067
        %v2123 = vpack.c.bf16 %v2068, %v2068
        %v2124 = vpack.c.bf16 %v2069, %v2069
        %v2125 = vpack.c.bf16 %v2070, %v2070
        %v2126 = vpack.c.bf16 %v2071, %v2071
        %v2127 = vpack.c.bf16 %v2072, %v2072
        %v2128 = vpack.c.bf16 %v2073, %v2073
        %v2129 = vpack.c.bf16 %v2074, %v2074
        %v2130 = vpack.c.bf16 %v2075, %v2075
        %v2131 = vpack.c.bf16 %v2076, %v2076
        %v2132 = vpack.c.bf16 %v2077, %v2077
        %v2133 = vpack.c.bf16 %v2078, %v2078
        %v2134 = vpack.c.bf16 %v2079, %v2079
        %v2135 = vpack.c.bf16 %v2080, %v2080
        %v2136 = vpack.c.bf16 %v2081, %v2081
        %v2137 = vpack.c.bf16 %v2082, %v2082
        %v2138 = vpack.c.bf16 %v2083, %v2083
        %v2139 = vpack.c.bf16 %v2084, %v2084
        %v2140 = vpack.c.bf16 %v2085, %v2085
        %v2141 = vpack.c.bf16 %v2086, %v2086
        %v2142 = vpack.c.bf16 %v2087, %v2087
        %v2143 = vpack.c.bf16 %v2088, %v2088
        %v2144 = vpack.c.bf16 %v2089, %v2089
        %v2145 = vpack.c.bf16 %v2090, %v2090
        %v2146 = vpack.c.bf16 %v2091, %v2091
        %v2147 = vpack.c.bf16 %v2092, %v2092
        %v2148 = vpack.c.bf16 %v2093, %v2093
        %v2149 = vpack.c.bf16 %v2094, %v2094
        %v2150 = vpack.c.bf16 %v2095, %v2095
        %v2151 = vpack.c.bf16 %v2096, %v2096
        %v2152 = vpack.c.bf16 %v2097, %v2097
        %v2153 = vpack.c.bf16 %v2098, %v2098
        %v2154 = vpack.c.bf16 %v2099, %v2099
        %v2155 = vpack.c.bf16 %v2100, %v2100
        %2211 = vrot.lane.b32.xlu0 %v2101, 15
        %v2212 = vpop.permute.xlu0 %2211
        %2213 = vrot.lane.b32.xlu0 %v2102, 15
        %v2214 = vpop.permute.xlu0 %2213
        %2215 = vrot.lane.b32.xlu0 %v2103, 15
        %v2216 = vpop.permute.xlu0 %2215
        %2217 = vrot.lane.b32.xlu0 %v2104, 15
        %v2218 = vpop.permute.xlu0 %2217
        %2219 = vrot.lane.b32.xlu0 %v2105, 15
        %v2220 = vpop.permute.xlu0 %2219
        %2221 = vrot.lane.b32.xlu0 %v2106, 15
        %v2222 = vpop.permute.xlu0 %2221
        %2223 = vrot.lane.b32.xlu0 %v2107, 15
        %v2224 = vpop.permute.xlu0 %2223
        %2225 = vrot.lane.b32.xlu0 %v2108, 15
        %v2226 = vpop.permute.xlu0 %2225
        %2227 = vrot.lane.b32.xlu0 %v2109, 15
        %v2228 = vpop.permute.xlu0 %2227
        %2229 = vrot.lane.b32.xlu0 %v2110, 15
        %v2230 = vpop.permute.xlu0 %2229
        %2231 = vrot.lane.b32.xlu0 %v2111, 15
        %v2232 = vpop.permute.xlu0 %2231
        %2233 = vrot.lane.b32.xlu0 %v2112, 15
        %v2234 = vpop.permute.xlu0 %2233
        %2235 = vrot.lane.b32.xlu0 %v2113, 15
        %v2236 = vpop.permute.xlu0 %2235
        %2237 = vrot.lane.b32.xlu0 %v2114, 15
        %v2238 = vpop.permute.xlu0 %2237
        %2239 = vrot.lane.b32.xlu0 %v2115, 15
        %v2240 = vpop.permute.xlu0 %2239
        %2241 = vrot.lane.b32.xlu0 %v2116, 15
        %v2242 = vpop.permute.xlu0 %2241
        %2243 = vrot.lane.b32.xlu0 %v2117, 15
        %v2244 = vpop.permute.xlu0 %2243
        %2245 = vrot.lane.b32.xlu0 %v2118, 15
        %v2246 = vpop.permute.xlu0 %2245
        %2247 = vrot.lane.b32.xlu0 %v2119, 15
        %v2248 = vpop.permute.xlu0 %2247
        %2249 = vrot.lane.b32.xlu0 %v2120, 15
        %v2250 = vpop.permute.xlu0 %2249
        %2251 = vrot.lane.b32.xlu0 %v2121, 15
        %v2252 = vpop.permute.xlu0 %2251
        %2253 = vrot.lane.b32.xlu0 %v2122, 15
        %v2254 = vpop.permute.xlu0 %2253
        %2255 = vrot.lane.b32.xlu0 %v2123, 15
        %v2256 = vpop.permute.xlu0 %2255
        %2257 = vrot.lane.b32.xlu0 %v2124, 15
        %v2258 = vpop.permute.xlu0 %2257
        %2259 = vrot.lane.b32.xlu0 %v2125, 15
        %v2260 = vpop.permute.xlu0 %2259
        %2261 = vrot.lane.b32.xlu0 %v2126, 15
        %v2262 = vpop.permute.xlu0 %2261
        %2263 = vrot.lane.b32.xlu0 %v2127, 15
        %v2264 = vpop.permute.xlu0 %2263
        %2265 = vrot.lane.b32.xlu0 %v2128, 15
        %v2266 = vpop.permute.xlu0 %2265
        %2267 = vrot.lane.b32.xlu0 %v2129, 15
        %v2268 = vpop.permute.xlu0 %2267
        %2269 = vrot.lane.b32.xlu0 %v2130, 15
        %v2270 = vpop.permute.xlu0 %2269
        %2271 = vrot.lane.b32.xlu0 %v2131, 15
        %v2272 = vpop.permute.xlu0 %2271
        %2273 = vrot.lane.b32.xlu0 %v2132, 15
        %v2274 = vpop.permute.xlu0 %2273
        %2275 = vrot.lane.b32.xlu0 %v2133, 15
        %v2276 = vpop.permute.xlu0 %2275
        %2277 = vrot.lane.b32.xlu0 %v2134, 15
        %v2278 = vpop.permute.xlu0 %2277
        %2279 = vrot.lane.b32.xlu0 %v2135, 15
        %v2280 = vpop.permute.xlu0 %2279
        %2281 = vrot.lane.b32.xlu0 %v2136, 15
        %v2282 = vpop.permute.xlu0 %2281
        %2283 = vrot.lane.b32.xlu0 %v2137, 15
        %v2284 = vpop.permute.xlu0 %2283
        %2285 = vrot.lane.b32.xlu0 %v2138, 15
        %v2286 = vpop.permute.xlu0 %2285
        %2287 = vrot.lane.b32.xlu0 %v2139, 15
        %v2288 = vpop.permute.xlu0 %2287
        %2289 = vrot.lane.b32.xlu0 %v2140, 15
        %v2290 = vpop.permute.xlu0 %2289
        %2291 = vrot.lane.b32.xlu0 %v2141, 15
        %v2292 = vpop.permute.xlu0 %2291
        %2293 = vrot.lane.b32.xlu0 %v2142, 15
        %v2294 = vpop.permute.xlu0 %2293
        %2295 = vrot.lane.b32.xlu0 %v2143, 15
        %v2296 = vpop.permute.xlu0 %2295
        %2297 = vrot.lane.b32.xlu0 %v2144, 15
        %v2298 = vpop.permute.xlu0 %2297
        %2299 = vrot.lane.b32.xlu0 %v2145, 15
        %v2300 = vpop.permute.xlu0 %2299
        %2301 = vrot.lane.b32.xlu0 %v2146, 15
        %v2302 = vpop.permute.xlu0 %2301
        %2303 = vrot.lane.b32.xlu0 %v2147, 15
        %v2304 = vpop.permute.xlu0 %2303
        %2305 = vrot.lane.b32.xlu0 %v2148, 15
        %v2306 = vpop.permute.xlu0 %2305
        %2307 = vrot.lane.b32.xlu0 %v2149, 15
        %v2308 = vpop.permute.xlu0 %2307
        %2309 = vrot.lane.b32.xlu0 %v2150, 15
        %v2310 = vpop.permute.xlu0 %2309
        %2311 = vrot.lane.b32.xlu0 %v2151, 15
        %v2312 = vpop.permute.xlu0 %2311
        %2313 = vrot.lane.b32.xlu0 %v2152, 15
        %v2314 = vpop.permute.xlu0 %2313
        %2315 = vrot.lane.b32.xlu0 %v2153, 15
        %v2316 = vpop.permute.xlu0 %2315
        %2317 = vrot.lane.b32.xlu0 %v2154, 15
        %v2318 = vpop.permute.xlu0 %2317
        %2319 = vrot.lane.b32.xlu0 %v2155, 15
        %v2320 = vpop.permute.xlu0 %2319
        %vm2376 = vcmask 142456
        %2377 = vst.msk [vmem:[#allocation2] sm:$0xf] %vm2376, %v2212
        %2378 = vst.msk [vmem:[#allocation2 + $0x4] sm:$0xf] %vm2376, %v2214
        %2379 = vst.msk [vmem:[#allocation2 + $0x8] sm:$0xf] %vm2376, %v2216
        %2380 = vst.msk [vmem:[#allocation2 + $0xc] sm:$0xf] %vm2376, %v2218
        %2381 = vst.msk [vmem:[#allocation2 + $0x10] sm:$0xf] %vm2376, %v2220
        %2382 = vst.msk [vmem:[#allocation2 + $0x14] sm:$0xf] %vm2376, %v2222
        %2383 = vst.msk [vmem:[#allocation2 + $0x18] sm:$0xf] %vm2376, %v2224
        %2384 = vst.msk [vmem:[#allocation2 + $0x1c] sm:$0xf] %vm2376, %v2226
        %2385 = vst.msk [vmem:[#allocation2 + $0x20] sm:$0xf] %vm2376, %v2228
        %2386 = vst.msk [vmem:[#allocation2 + $0x24] sm:$0xf] %vm2376, %v2230
        %2387 = vst.msk [vmem:[#allocation2 + $0x28] sm:$0xf] %vm2376, %v2232
        %2388 = vst.msk [vmem:[#allocation2 + $0x2c] sm:$0xf] %vm2376, %v2234
        %2389 = vst.msk [vmem:[#allocation2 + $0x30] sm:$0xf] %vm2376, %v2236
        %2390 = vst.msk [vmem:[#allocation2 + $0x34] sm:$0xf] %vm2376, %v2238
        %2391 = vst.msk [vmem:[#allocation2 + $0x38] sm:$0xf] %vm2376, %v2240
        %2392 = vst.msk [vmem:[#allocation2 + $0x3c] sm:$0xf] %vm2376, %v2242
        %2393 = vst.msk [vmem:[#allocation2 + $0x40] sm:$0xf] %vm2376, %v2244
        %2394 = vst.msk [vmem:[#allocation2 + $0x44] sm:$0xf] %vm2376, %v2246
        %2395 = vst.msk [vmem:[#allocation2 + $0x48] sm:$0xf] %vm2376, %v2248
        %2396 = vst.msk [vmem:[#allocation2 + $0x4c] sm:$0xf] %vm2376, %v2250
        %2397 = vst.msk [vmem:[#allocation2 + $0x50] sm:$0xf] %vm2376, %v2252
        %2398 = vst.msk [vmem:[#allocation2 + $0x54] sm:$0xf] %vm2376, %v2254
        %2399 = vst.msk [vmem:[#allocation2 + $0x58] sm:$0xf] %vm2376, %v2256
        %2400 = vst.msk [vmem:[#allocation2 + $0x5c] sm:$0xf] %vm2376, %v2258
        %2401 = vst.msk [vmem:[#allocation2 + $0x60] sm:$0xf] %vm2376, %v2260
        %2402 = vst.msk [vmem:[#allocation2 + $0x64] sm:$0xf] %vm2376, %v2262
        %2403 = vst.msk [vmem:[#allocation2 + $0x68] sm:$0xf] %vm2376, %v2264
        %2404 = vst.msk [vmem:[#allocation2 + $0x6c] sm:$0xf] %vm2376, %v2266
        %2405 = vst.msk [vmem:[#allocation2 + $0x70] sm:$0xf] %vm2376, %v2268
        %2406 = vst.msk [vmem:[#allocation2 + $0x74] sm:$0xf] %vm2376, %v2270
        %2407 = vst.msk [vmem:[#allocation2 + $0x78] sm:$0xf] %vm2376, %v2272
        %2408 = vst.msk [vmem:[#allocation2 + $0x7c] sm:$0xf] %vm2376, %v2274
        %2409 = vst.msk [vmem:[#allocation2 + $0x80] sm:$0xf] %vm2376, %v2276
        %2410 = vst.msk [vmem:[#allocation2 + $0x84] sm:$0xf] %vm2376, %v2278
        %2411 = vst.msk [vmem:[#allocation2 + $0x88] sm:$0xf] %vm2376, %v2280
        %2412 = vst.msk [vmem:[#allocation2 + $0x8c] sm:$0xf] %vm2376, %v2282
        %2413 = vst.msk [vmem:[#allocation2 + $0x90] sm:$0xf] %vm2376, %v2284
        %2414 = vst.msk [vmem:[#allocation2 + $0x94] sm:$0xf] %vm2376, %v2286
        %2415 = vst.msk [vmem:[#allocation2 + $0x98] sm:$0xf] %vm2376, %v2288
        %2416 = vst.msk [vmem:[#allocation2 + $0x9c] sm:$0xf] %vm2376, %v2290
        %2417 = vst.msk [vmem:[#allocation2 + $0xa0] sm:$0xf] %vm2376, %v2292
        %2418 = vst.msk [vmem:[#allocation2 + $0xa4] sm:$0xf] %vm2376, %v2294
        %2419 = vst.msk [vmem:[#allocation2 + $0xa8] sm:$0xf] %vm2376, %v2296
        %2420 = vst.msk [vmem:[#allocation2 + $0xac] sm:$0xf] %vm2376, %v2298
        %2421 = vst.msk [vmem:[#allocation2 + $0xb0] sm:$0xf] %vm2376, %v2300
        %2422 = vst.msk [vmem:[#allocation2 + $0xb4] sm:$0xf] %vm2376, %v2302
        %2423 = vst.msk [vmem:[#allocation2 + $0xb8] sm:$0xf] %vm2376, %v2304
        %2424 = vst.msk [vmem:[#allocation2 + $0xbc] sm:$0xf] %vm2376, %v2306
        %2425 = vst.msk [vmem:[#allocation2 + $0xc0] sm:$0xf] %vm2376, %v2308
        %2426 = vst.msk [vmem:[#allocation2 + $0xc4] sm:$0xf] %vm2376, %v2310
        %2427 = vst.msk [vmem:[#allocation2 + $0xc8] sm:$0xf] %vm2376, %v2312
        %2428 = vst.msk [vmem:[#allocation2 + $0xcc] sm:$0xf] %vm2376, %v2314
        %2429 = vst.msk [vmem:[#allocation2 + $0xd0] sm:$0xf] %vm2376, %v2316
        %2430 = vst.msk [vmem:[#allocation2 + $0xd4] sm:$0xf] %vm2376, %v2318
        %vm2431 = vcmask 141432
        %2432 = vst.msk [vmem:[#allocation2 + $0xd8] sm:$0x7] %vm2431, %v2320
        %v2433 = vld [vmem:[%s329 + $0x2c] sm:$0xff]
        %v2434 = vld [vmem:[%s329 + $0x34] sm:$0xff]
        %v2435 = vld [vmem:[%s329 + $0x3c] sm:$0xff]
        %v2436 = vld [vmem:[%s329 + $0x44] sm:$0xff]
        %v2437 = vld [vmem:[%s329 + $0x4c] sm:$0xff]
        %v2438 = vld [vmem:[%s329 + $0x54] sm:$0xff]
        %v2439 = vld [vmem:[%s329 + $0x5c] sm:$0xff]
        %v2440 = vld [vmem:[%s329 + $0x64] sm:$0xff]
        %v2441 = vld [vmem:[%s329 + $0x6c] sm:$0xff]
        %v2442 = vld [vmem:[%s329 + $0x74] sm:$0xff]
        %v2443 = vld [vmem:[%s329 + $0x7c] sm:$0xff]
        %v2444 = vld [vmem:[%s329 + $0x84] sm:$0xff]
        %v2445 = vld [vmem:[%s329 + $0x8c] sm:$0xff]
        %v2446 = vld [vmem:[%s329 + $0x94] sm:$0xff]
        %v2447 = vld [vmem:[%s329 + $0x9c] sm:$0xff]
        %v2448 = vld [vmem:[%s329 + $0xa4] sm:$0xff]
        %v2449 = vld [vmem:[%s329 + $0xac] sm:$0xff]
        %v2450 = vld [vmem:[%s329 + $0xb4] sm:$0xff]
        %v2451 = vld [vmem:[%s329 + $0xbc] sm:$0xff]
        %v2452 = vld [vmem:[%s329 + $0xc4] sm:$0xff]
        %v2453 = vld [vmem:[%s329 + $0xcc] sm:$0xff]
        %v2454 = vld [vmem:[%s329 + $0xd4] sm:$0xff]
        %v2455 = vld [vmem:[%s329 + $0xdc] sm:$0xff]
        %v2456 = vld [vmem:[%s329 + $0xe4] sm:$0xff]
        %v2457 = vld [vmem:[%s329 + $0xec] sm:$0xff]
        %v2458 = vld [vmem:[%s329 + $0xf4] sm:$0xff]
        %v2459 = vld [vmem:[%s329 + $0xfc] sm:$0xff]
        %v2460 = vld [vmem:[%s329 + $0x104] sm:$0xff]
        %v2461 = vld [vmem:[%s329 + $0x10c] sm:$0xff]
        %v2462 = vld [vmem:[%s329 + $0x114] sm:$0xff]
        %v2463 = vld [vmem:[%s329 + $0x11c] sm:$0xff]
        %v2464 = vld [vmem:[%s329 + $0x124] sm:$0xff]
        %v2465 = vld [vmem:[%s329 + $0x12c] sm:$0xff]
        %v2466 = vld [vmem:[%s329 + $0x134] sm:$0xff]
        %v2467 = vld [vmem:[%s329 + $0x13c] sm:$0xff]
        %v2468 = vld [vmem:[%s329 + $0x144] sm:$0xff]
        %v2469 = vld [vmem:[%s329 + $0x14c] sm:$0xff]
        %v2470 = vld [vmem:[%s329 + $0x154] sm:$0xff]
        %v2471 = vld [vmem:[%s329 + $0x15c] sm:$0xff]
        %v2472 = vld [vmem:[%s329 + $0x164] sm:$0xff]
        %v2473 = vld [vmem:[%s329 + $0x16c] sm:$0xff]
        %v2474 = vld [vmem:[%s329 + $0x174] sm:$0xff]
        %v2475 = vld [vmem:[%s329 + $0x17c] sm:$0xff]
        %v2476 = vld [vmem:[%s329 + $0x184] sm:$0xff]
        %v2477 = vld [vmem:[%s329 + $0x18c] sm:$0xff]
        %v2478 = vld [vmem:[%s329 + $0x194] sm:$0xff]
        %v2479 = vld [vmem:[%s329 + $0x19c] sm:$0xff]
        %v2480 = vld [vmem:[%s329 + $0x1a4] sm:$0xff]
        %v2481 = vld [vmem:[%s329 + $0x1ac] sm:$0xff]
        %v2482 = vld [vmem:[%s329 + $0x1b4] sm:$0xff]
        %v2483 = vld [vmem:[%s329 + $0x1bc] sm:$0xff]
        %v2484 = vld [vmem:[%s329 + $0x1c4] sm:$0xff]
        %v2485 = vld [vmem:[%s329 + $0x1cc] sm:$0xff]
        %v2486 = vld [vmem:[%s329 + $0x1d4] sm:$0xff]
        %v2487 = vld [vmem:[%s329 + $0x1dc] sm:$0x3f]
        %v2488 = vpack.c.bf16 %v2433, %v2433
        %v2489 = vpack.c.bf16 %v2434, %v2434
        %v2490 = vpack.c.bf16 %v2435, %v2435
        %v2491 = vpack.c.bf16 %v2436, %v2436
        %v2492 = vpack.c.bf16 %v2437, %v2437
        %v2493 = vpack.c.bf16 %v2438, %v2438
        %v2494 = vpack.c.bf16 %v2439, %v2439
        %v2495 = vpack.c.bf16 %v2440, %v2440
        %v2496 = vpack.c.bf16 %v2441, %v2441
        %v2497 = vpack.c.bf16 %v2442, %v2442
        %v2498 = vpack.c.bf16 %v2443, %v2443
        %v2499 = vpack.c.bf16 %v2444, %v2444
        %v2500 = vpack.c.bf16 %v2445, %v2445
        %v2501 = vpack.c.bf16 %v2446, %v2446
        %v2502 = vpack.c.bf16 %v2447, %v2447
        %v2503 = vpack.c.bf16 %v2448, %v2448
        %v2504 = vpack.c.bf16 %v2449, %v2449
        %v2505 = vpack.c.bf16 %v2450, %v2450
        %v2506 = vpack.c.bf16 %v2451, %v2451
        %v2507 = vpack.c.bf16 %v2452, %v2452
        %v2508 = vpack.c.bf16 %v2453, %v2453
        %v2509 = vpack.c.bf16 %v2454, %v2454
        %v2510 = vpack.c.bf16 %v2455, %v2455
        %v2511 = vpack.c.bf16 %v2456, %v2456
        %v2512 = vpack.c.bf16 %v2457, %v2457
        %v2513 = vpack.c.bf16 %v2458, %v2458
        %v2514 = vpack.c.bf16 %v2459, %v2459
        %v2515 = vpack.c.bf16 %v2460, %v2460
        %v2516 = vpack.c.bf16 %v2461, %v2461
        %v2517 = vpack.c.bf16 %v2462, %v2462
        %v2518 = vpack.c.bf16 %v2463, %v2463
        %v2519 = vpack.c.bf16 %v2464, %v2464
        %v2520 = vpack.c.bf16 %v2465, %v2465
        %v2521 = vpack.c.bf16 %v2466, %v2466
        %v2522 = vpack.c.bf16 %v2467, %v2467
        %v2523 = vpack.c.bf16 %v2468, %v2468
        %v2524 = vpack.c.bf16 %v2469, %v2469
        %v2525 = vpack.c.bf16 %v2470, %v2470
        %v2526 = vpack.c.bf16 %v2471, %v2471
        %v2527 = vpack.c.bf16 %v2472, %v2472
        %v2528 = vpack.c.bf16 %v2473, %v2473
        %v2529 = vpack.c.bf16 %v2474, %v2474
        %v2530 = vpack.c.bf16 %v2475, %v2475
        %v2531 = vpack.c.bf16 %v2476, %v2476
        %v2532 = vpack.c.bf16 %v2477, %v2477
        %v2533 = vpack.c.bf16 %v2478, %v2478
        %v2534 = vpack.c.bf16 %v2479, %v2479
        %v2535 = vpack.c.bf16 %v2480, %v2480
        %v2536 = vpack.c.bf16 %v2481, %v2481
        %v2537 = vpack.c.bf16 %v2482, %v2482
        %v2538 = vpack.c.bf16 %v2483, %v2483
        %v2539 = vpack.c.bf16 %v2484, %v2484
        %v2540 = vpack.c.bf16 %v2485, %v2485
        %v2541 = vpack.c.bf16 %v2486, %v2486
        %v2542 = vpack.c.bf16 %v2487, %v2487
        %2598 = vrot.lane.b32.xlu0 %v2488, 18
        %v2599 = vpop.permute.xlu0 %2598
        %2600 = vrot.lane.b32.xlu0 %v2489, 18
        %v2601 = vpop.permute.xlu0 %2600
        %2602 = vrot.lane.b32.xlu0 %v2490, 18
        %v2603 = vpop.permute.xlu0 %2602
        %2604 = vrot.lane.b32.xlu0 %v2491, 18
        %v2605 = vpop.permute.xlu0 %2604
        %2606 = vrot.lane.b32.xlu0 %v2492, 18
        %v2607 = vpop.permute.xlu0 %2606
        %2608 = vrot.lane.b32.xlu0 %v2493, 18
        %v2609 = vpop.permute.xlu0 %2608
        %2610 = vrot.lane.b32.xlu0 %v2494, 18
        %v2611 = vpop.permute.xlu0 %2610
        %2612 = vrot.lane.b32.xlu0 %v2495, 18
        %v2613 = vpop.permute.xlu0 %2612
        %2614 = vrot.lane.b32.xlu0 %v2496, 18
        %v2615 = vpop.permute.xlu0 %2614
        %2616 = vrot.lane.b32.xlu0 %v2497, 18
        %v2617 = vpop.permute.xlu0 %2616
        %2618 = vrot.lane.b32.xlu0 %v2498, 18
        %v2619 = vpop.permute.xlu0 %2618
        %2620 = vrot.lane.b32.xlu0 %v2499, 18
        %v2621 = vpop.permute.xlu0 %2620
        %2622 = vrot.lane.b32.xlu0 %v2500, 18
        %v2623 = vpop.permute.xlu0 %2622
        %2624 = vrot.lane.b32.xlu0 %v2501, 18
        %v2625 = vpop.permute.xlu0 %2624
        %2626 = vrot.lane.b32.xlu0 %v2502, 18
        %v2627 = vpop.permute.xlu0 %2626
        %2628 = vrot.lane.b32.xlu0 %v2503, 18
        %v2629 = vpop.permute.xlu0 %2628
        %2630 = vrot.lane.b32.xlu0 %v2504, 18
        %v2631 = vpop.permute.xlu0 %2630
        %2632 = vrot.lane.b32.xlu0 %v2505, 18
        %v2633 = vpop.permute.xlu0 %2632
        %2634 = vrot.lane.b32.xlu0 %v2506, 18
        %v2635 = vpop.permute.xlu0 %2634
        %2636 = vrot.lane.b32.xlu0 %v2507, 18
        %v2637 = vpop.permute.xlu0 %2636
        %2638 = vrot.lane.b32.xlu0 %v2508, 18
        %v2639 = vpop.permute.xlu0 %2638
        %2640 = vrot.lane.b32.xlu0 %v2509, 18
        %v2641 = vpop.permute.xlu0 %2640
        %2642 = vrot.lane.b32.xlu0 %v2510, 18
        %v2643 = vpop.permute.xlu0 %2642
        %2644 = vrot.lane.b32.xlu0 %v2511, 18
        %v2645 = vpop.permute.xlu0 %2644
        %2646 = vrot.lane.b32.xlu0 %v2512, 18
        %v2647 = vpop.permute.xlu0 %2646
        %2648 = vrot.lane.b32.xlu0 %v2513, 18
        %v2649 = vpop.permute.xlu0 %2648
        %2650 = vrot.lane.b32.xlu0 %v2514, 18
        %v2651 = vpop.permute.xlu0 %2650
        %2652 = vrot.lane.b32.xlu0 %v2515, 18
        %v2653 = vpop.permute.xlu0 %2652
        %2654 = vrot.lane.b32.xlu0 %v2516, 18
        %v2655 = vpop.permute.xlu0 %2654
        %2656 = vrot.lane.b32.xlu0 %v2517, 18
        %v2657 = vpop.permute.xlu0 %2656
        %2658 = vrot.lane.b32.xlu0 %v2518, 18
        %v2659 = vpop.permute.xlu0 %2658
        %2660 = vrot.lane.b32.xlu0 %v2519, 18
        %v2661 = vpop.permute.xlu0 %2660
        %2662 = vrot.lane.b32.xlu0 %v2520, 18
        %v2663 = vpop.permute.xlu0 %2662
        %2664 = vrot.lane.b32.xlu0 %v2521, 18
        %v2665 = vpop.permute.xlu0 %2664
        %2666 = vrot.lane.b32.xlu0 %v2522, 18
        %v2667 = vpop.permute.xlu0 %2666
        %2668 = vrot.lane.b32.xlu0 %v2523, 18
        %v2669 = vpop.permute.xlu0 %2668
        %2670 = vrot.lane.b32.xlu0 %v2524, 18
        %v2671 = vpop.permute.xlu0 %2670
        %2672 = vrot.lane.b32.xlu0 %v2525, 18
        %v2673 = vpop.permute.xlu0 %2672
        %2674 = vrot.lane.b32.xlu0 %v2526, 18
        %v2675 = vpop.permute.xlu0 %2674
        %2676 = vrot.lane.b32.xlu0 %v2527, 18
        %v2677 = vpop.permute.xlu0 %2676
        %2678 = vrot.lane.b32.xlu0 %v2528, 18
        %v2679 = vpop.permute.xlu0 %2678
        %2680 = vrot.lane.b32.xlu0 %v2529, 18
        %v2681 = vpop.permute.xlu0 %2680
        %2682 = vrot.lane.b32.xlu0 %v2530, 18
        %v2683 = vpop.permute.xlu0 %2682
        %2684 = vrot.lane.b32.xlu0 %v2531, 18
        %v2685 = vpop.permute.xlu0 %2684
        %2686 = vrot.lane.b32.xlu0 %v2532, 18
        %v2687 = vpop.permute.xlu0 %2686
        %2688 = vrot.lane.b32.xlu0 %v2533, 18
        %v2689 = vpop.permute.xlu0 %2688
        %2690 = vrot.lane.b32.xlu0 %v2534, 18
        %v2691 = vpop.permute.xlu0 %2690
        %2692 = vrot.lane.b32.xlu0 %v2535, 18
        %v2693 = vpop.permute.xlu0 %2692
        %2694 = vrot.lane.b32.xlu0 %v2536, 18
        %v2695 = vpop.permute.xlu0 %2694
        %2696 = vrot.lane.b32.xlu0 %v2537, 18
        %v2697 = vpop.permute.xlu0 %2696
        %2698 = vrot.lane.b32.xlu0 %v2538, 18
        %v2699 = vpop.permute.xlu0 %2698
        %2700 = vrot.lane.b32.xlu0 %v2539, 18
        %v2701 = vpop.permute.xlu0 %2700
        %2702 = vrot.lane.b32.xlu0 %v2540, 18
        %v2703 = vpop.permute.xlu0 %2702
        %2704 = vrot.lane.b32.xlu0 %v2541, 18
        %v2705 = vpop.permute.xlu0 %2704
        %2706 = vrot.lane.b32.xlu0 %v2542, 18
        %v2707 = vpop.permute.xlu0 %2706
        %vm2763 = vcmask 167056
        %2764 = vst.msk [vmem:[#allocation2] sm:$0xf] %vm2763, %v2599
        %2765 = vst.msk [vmem:[#allocation2 + $0x4] sm:$0xf] %vm2763, %v2601
        %2766 = vst.msk [vmem:[#allocation2 + $0x8] sm:$0xf] %vm2763, %v2603
        %2767 = vst.msk [vmem:[#allocation2 + $0xc] sm:$0xf] %vm2763, %v2605
        %2768 = vst.msk [vmem:[#allocation2 + $0x10] sm:$0xf] %vm2763, %v2607
        %2769 = vst.msk [vmem:[#allocation2 + $0x14] sm:$0xf] %vm2763, %v2609
        %2770 = vst.msk [vmem:[#allocation2 + $0x18] sm:$0xf] %vm2763, %v2611
        %2771 = vst.msk [vmem:[#allocation2 + $0x1c] sm:$0xf] %vm2763, %v2613
        %2772 = vst.msk [vmem:[#allocation2 + $0x20] sm:$0xf] %vm2763, %v2615
        %2773 = vst.msk [vmem:[#allocation2 + $0x24] sm:$0xf] %vm2763, %v2617
        %2774 = vst.msk [vmem:[#allocation2 + $0x28] sm:$0xf] %vm2763, %v2619
        %2775 = vst.msk [vmem:[#allocation2 + $0x2c] sm:$0xf] %vm2763, %v2621
        %2776 = vst.msk [vmem:[#allocation2 + $0x30] sm:$0xf] %vm2763, %v2623
        %2777 = vst.msk [vmem:[#allocation2 + $0x34] sm:$0xf] %vm2763, %v2625
        %2778 = vst.msk [vmem:[#allocation2 + $0x38] sm:$0xf] %vm2763, %v2627
        %2779 = vst.msk [vmem:[#allocation2 + $0x3c] sm:$0xf] %vm2763, %v2629
        %2780 = vst.msk [vmem:[#allocation2 + $0x40] sm:$0xf] %vm2763, %v2631
        %2781 = vst.msk [vmem:[#allocation2 + $0x44] sm:$0xf] %vm2763, %v2633
        %2782 = vst.msk [vmem:[#allocation2 + $0x48] sm:$0xf] %vm2763, %v2635
        %2783 = vst.msk [vmem:[#allocation2 + $0x4c] sm:$0xf] %vm2763, %v2637
        %2784 = vst.msk [vmem:[#allocation2 + $0x50] sm:$0xf] %vm2763, %v2639
        %2785 = vst.msk [vmem:[#allocation2 + $0x54] sm:$0xf] %vm2763, %v2641
        %2786 = vst.msk [vmem:[#allocation2 + $0x58] sm:$0xf] %vm2763, %v2643
        %2787 = vst.msk [vmem:[#allocation2 + $0x5c] sm:$0xf] %vm2763, %v2645
        %2788 = vst.msk [vmem:[#allocation2 + $0x60] sm:$0xf] %vm2763, %v2647
        %2789 = vst.msk [vmem:[#allocation2 + $0x64] sm:$0xf] %vm2763, %v2649
        %2790 = vst.msk [vmem:[#allocation2 + $0x68] sm:$0xf] %vm2763, %v2651
        %2791 = vst.msk [vmem:[#allocation2 + $0x6c] sm:$0xf] %vm2763, %v2653
        %2792 = vst.msk [vmem:[#allocation2 + $0x70] sm:$0xf] %vm2763, %v2655
        %2793 = vst.msk [vmem:[#allocation2 + $0x74] sm:$0xf] %vm2763, %v2657
        %2794 = vst.msk [vmem:[#allocation2 + $0x78] sm:$0xf] %vm2763, %v2659
        %2795 = vst.msk [vmem:[#allocation2 + $0x7c] sm:$0xf] %vm2763, %v2661
        %2796 = vst.msk [vmem:[#allocation2 + $0x80] sm:$0xf] %vm2763, %v2663
        %2797 = vst.msk [vmem:[#allocation2 + $0x84] sm:$0xf] %vm2763, %v2665
        %2798 = vst.msk [vmem:[#allocation2 + $0x88] sm:$0xf] %vm2763, %v2667
        %2799 = vst.msk [vmem:[#allocation2 + $0x8c] sm:$0xf] %vm2763, %v2669
        %2800 = vst.msk [vmem:[#allocation2 + $0x90] sm:$0xf] %vm2763, %v2671
        %2801 = vst.msk [vmem:[#allocation2 + $0x94] sm:$0xf] %vm2763, %v2673
        %2802 = vst.msk [vmem:[#allocation2 + $0x98] sm:$0xf] %vm2763, %v2675
        %2803 = vst.msk [vmem:[#allocation2 + $0x9c] sm:$0xf] %vm2763, %v2677
        %2804 = vst.msk [vmem:[#allocation2 + $0xa0] sm:$0xf] %vm2763, %v2679
        %2805 = vst.msk [vmem:[#allocation2 + $0xa4] sm:$0xf] %vm2763, %v2681
        %2806 = vst.msk [vmem:[#allocation2 + $0xa8] sm:$0xf] %vm2763, %v2683
        %2807 = vst.msk [vmem:[#allocation2 + $0xac] sm:$0xf] %vm2763, %v2685
        %2808 = vst.msk [vmem:[#allocation2 + $0xb0] sm:$0xf] %vm2763, %v2687
        %2809 = vst.msk [vmem:[#allocation2 + $0xb4] sm:$0xf] %vm2763, %v2689
        %2810 = vst.msk [vmem:[#allocation2 + $0xb8] sm:$0xf] %vm2763, %v2691
        %2811 = vst.msk [vmem:[#allocation2 + $0xbc] sm:$0xf] %vm2763, %v2693
        %2812 = vst.msk [vmem:[#allocation2 + $0xc0] sm:$0xf] %vm2763, %v2695
        %2813 = vst.msk [vmem:[#allocation2 + $0xc4] sm:$0xf] %vm2763, %v2697
        %2814 = vst.msk [vmem:[#allocation2 + $0xc8] sm:$0xf] %vm2763, %v2699
        %2815 = vst.msk [vmem:[#allocation2 + $0xcc] sm:$0xf] %vm2763, %v2701
        %2816 = vst.msk [vmem:[#allocation2 + $0xd0] sm:$0xf] %vm2763, %v2703
        %2817 = vst.msk [vmem:[#allocation2 + $0xd4] sm:$0xf] %vm2763, %v2705
        %vm2818 = vcmask 166032
        %2819 = vst.msk [vmem:[#allocation2 + $0xd8] sm:$0x7] %vm2818, %v2707
        %v2820 = vld [vmem:[%s329 + $0x2d] sm:$0xff]
        %v2821 = vld [vmem:[%s329 + $0x35] sm:$0xff]
        %v2822 = vld [vmem:[%s329 + $0x3d] sm:$0xff]
        %v2823 = vld [vmem:[%s329 + $0x45] sm:$0xff]
        %v2824 = vld [vmem:[%s329 + $0x4d] sm:$0xff]
        %v2825 = vld [vmem:[%s329 + $0x55] sm:$0xff]
        %v2826 = vld [vmem:[%s329 + $0x5d] sm:$0xff]
        %v2827 = vld [vmem:[%s329 + $0x65] sm:$0xff]
        %v2828 = vld [vmem:[%s329 + $0x6d] sm:$0xff]
        %v2829 = vld [vmem:[%s329 + $0x75] sm:$0xff]
        %v2830 = vld [vmem:[%s329 + $0x7d] sm:$0xff]
        %v2831 = vld [vmem:[%s329 + $0x85] sm:$0xff]
        %v2832 = vld [vmem:[%s329 + $0x8d] sm:$0xff]
        %v2833 = vld [vmem:[%s329 + $0x95] sm:$0xff]
        %v2834 = vld [vmem:[%s329 + $0x9d] sm:$0xff]
        %v2835 = vld [vmem:[%s329 + $0xa5] sm:$0xff]
        %v2836 = vld [vmem:[%s329 + $0xad] sm:$0xff]
        %v2837 = vld [vmem:[%s329 + $0xb5] sm:$0xff]
        %v2838 = vld [vmem:[%s329 + $0xbd] sm:$0xff]
        %v2839 = vld [vmem:[%s329 + $0xc5] sm:$0xff]
        %v2840 = vld [vmem:[%s329 + $0xcd] sm:$0xff]
        %v2841 = vld [vmem:[%s329 + $0xd5] sm:$0xff]
        %v2842 = vld [vmem:[%s329 + $0xdd] sm:$0xff]
        %v2843 = vld [vmem:[%s329 + $0xe5] sm:$0xff]
        %v2844 = vld [vmem:[%s329 + $0xed] sm:$0xff]
        %v2845 = vld [vmem:[%s329 + $0xf5] sm:$0xff]
        %v2846 = vld [vmem:[%s329 + $0xfd] sm:$0xff]
        %v2847 = vld [vmem:[%s329 + $0x105] sm:$0xff]
        %v2848 = vld [vmem:[%s329 + $0x10d] sm:$0xff]
        %v2849 = vld [vmem:[%s329 + $0x115] sm:$0xff]
        %v2850 = vld [vmem:[%s329 + $0x11d] sm:$0xff]
        %v2851 = vld [vmem:[%s329 + $0x125] sm:$0xff]
        %v2852 = vld [vmem:[%s329 + $0x12d] sm:$0xff]
        %v2853 = vld [vmem:[%s329 + $0x135] sm:$0xff]
        %v2854 = vld [vmem:[%s329 + $0x13d] sm:$0xff]
        %v2855 = vld [vmem:[%s329 + $0x145] sm:$0xff]
        %v2856 = vld [vmem:[%s329 + $0x14d] sm:$0xff]
        %v2857 = vld [vmem:[%s329 + $0x155] sm:$0xff]
        %v2858 = vld [vmem:[%s329 + $0x15d] sm:$0xff]
        %v2859 = vld [vmem:[%s329 + $0x165] sm:$0xff]
        %v2860 = vld [vmem:[%s329 + $0x16d] sm:$0xff]
        %v2861 = vld [vmem:[%s329 + $0x175] sm:$0xff]
        %v2862 = vld [vmem:[%s329 + $0x17d] sm:$0xff]
        %v2863 = vld [vmem:[%s329 + $0x185] sm:$0xff]
        %v2864 = vld [vmem:[%s329 + $0x18d] sm:$0xff]
        %v2865 = vld [vmem:[%s329 + $0x195] sm:$0xff]
        %v2866 = vld [vmem:[%s329 + $0x19d] sm:$0xff]
        %v2867 = vld [vmem:[%s329 + $0x1a5] sm:$0xff]
        %v2868 = vld [vmem:[%s329 + $0x1ad] sm:$0xff]
        %v2869 = vld [vmem:[%s329 + $0x1b5] sm:$0xff]
        %v2870 = vld [vmem:[%s329 + $0x1bd] sm:$0xff]
        %v2871 = vld [vmem:[%s329 + $0x1c5] sm:$0xff]
        %v2872 = vld [vmem:[%s329 + $0x1cd] sm:$0xff]
        %v2873 = vld [vmem:[%s329 + $0x1d5] sm:$0xff]
        %v2874 = vld [vmem:[%s329 + $0x1dd] sm:$0x3f]
        %v2875 = vpack.c.bf16 %v2820, %v2820
        %v2876 = vpack.c.bf16 %v2821, %v2821
        %v2877 = vpack.c.bf16 %v2822, %v2822
        %v2878 = vpack.c.bf16 %v2823, %v2823
        %v2879 = vpack.c.bf16 %v2824, %v2824
        %v2880 = vpack.c.bf16 %v2825, %v2825
        %v2881 = vpack.c.bf16 %v2826, %v2826
        %v2882 = vpack.c.bf16 %v2827, %v2827
        %v2883 = vpack.c.bf16 %v2828, %v2828
        %v2884 = vpack.c.bf16 %v2829, %v2829
        %v2885 = vpack.c.bf16 %v2830, %v2830
        %v2886 = vpack.c.bf16 %v2831, %v2831
        %v2887 = vpack.c.bf16 %v2832, %v2832
        %v2888 = vpack.c.bf16 %v2833, %v2833
        %v2889 = vpack.c.bf16 %v2834, %v2834
        %v2890 = vpack.c.bf16 %v2835, %v2835
        %v2891 = vpack.c.bf16 %v2836, %v2836
        %v2892 = vpack.c.bf16 %v2837, %v2837
        %v2893 = vpack.c.bf16 %v2838, %v2838
        %v2894 = vpack.c.bf16 %v2839, %v2839
        %v2895 = vpack.c.bf16 %v2840, %v2840
        %v2896 = vpack.c.bf16 %v2841, %v2841
        %v2897 = vpack.c.bf16 %v2842, %v2842
        %v2898 = vpack.c.bf16 %v2843, %v2843
        %v2899 = vpack.c.bf16 %v2844, %v2844
        %v2900 = vpack.c.bf16 %v2845, %v2845
        %v2901 = vpack.c.bf16 %v2846, %v2846
        %v2902 = vpack.c.bf16 %v2847, %v2847
        %v2903 = vpack.c.bf16 %v2848, %v2848
        %v2904 = vpack.c.bf16 %v2849, %v2849
        %v2905 = vpack.c.bf16 %v2850, %v2850
        %v2906 = vpack.c.bf16 %v2851, %v2851
        %v2907 = vpack.c.bf16 %v2852, %v2852
        %v2908 = vpack.c.bf16 %v2853, %v2853
        %v2909 = vpack.c.bf16 %v2854, %v2854
        %v2910 = vpack.c.bf16 %v2855, %v2855
        %v2911 = vpack.c.bf16 %v2856, %v2856
        %v2912 = vpack.c.bf16 %v2857, %v2857
        %v2913 = vpack.c.bf16 %v2858, %v2858
        %v2914 = vpack.c.bf16 %v2859, %v2859
        %v2915 = vpack.c.bf16 %v2860, %v2860
        %v2916 = vpack.c.bf16 %v2861, %v2861
        %v2917 = vpack.c.bf16 %v2862, %v2862
        %v2918 = vpack.c.bf16 %v2863, %v2863
        %v2919 = vpack.c.bf16 %v2864, %v2864
        %v2920 = vpack.c.bf16 %v2865, %v2865
        %v2921 = vpack.c.bf16 %v2866, %v2866
        %v2922 = vpack.c.bf16 %v2867, %v2867
        %v2923 = vpack.c.bf16 %v2868, %v2868
        %v2924 = vpack.c.bf16 %v2869, %v2869
        %v2925 = vpack.c.bf16 %v2870, %v2870
        %v2926 = vpack.c.bf16 %v2871, %v2871
        %v2927 = vpack.c.bf16 %v2872, %v2872
        %v2928 = vpack.c.bf16 %v2873, %v2873
        %v2929 = vpack.c.bf16 %v2874, %v2874
        %2985 = vrot.lane.b32.xlu0 %v2875, 21
        %v2986 = vpop.permute.xlu0 %2985
        %2987 = vrot.lane.b32.xlu0 %v2876, 21
        %v2988 = vpop.permute.xlu0 %2987
        %2989 = vrot.lane.b32.xlu0 %v2877, 21
        %v2990 = vpop.permute.xlu0 %2989
        %2991 = vrot.lane.b32.xlu0 %v2878, 21
        %v2992 = vpop.permute.xlu0 %2991
        %2993 = vrot.lane.b32.xlu0 %v2879, 21
        %v2994 = vpop.permute.xlu0 %2993
        %2995 = vrot.lane.b32.xlu0 %v2880, 21
        %v2996 = vpop.permute.xlu0 %2995
        %2997 = vrot.lane.b32.xlu0 %v2881, 21
        %v2998 = vpop.permute.xlu0 %2997
        %2999 = vrot.lane.b32.xlu0 %v2882, 21
        %v3000 = vpop.permute.xlu0 %2999
        %3001 = vrot.lane.b32.xlu0 %v2883, 21
        %v3002 = vpop.permute.xlu0 %3001
        %3003 = vrot.lane.b32.xlu0 %v2884, 21
        %v3004 = vpop.permute.xlu0 %3003
        %3005 = vrot.lane.b32.xlu0 %v2885, 21
        %v3006 = vpop.permute.xlu0 %3005
        %3007 = vrot.lane.b32.xlu0 %v2886, 21
        %v3008 = vpop.permute.xlu0 %3007
        %3009 = vrot.lane.b32.xlu0 %v2887, 21
        %v3010 = vpop.permute.xlu0 %3009
        %3011 = vrot.lane.b32.xlu0 %v2888, 21
        %v3012 = vpop.permute.xlu0 %3011
        %3013 = vrot.lane.b32.xlu0 %v2889, 21
        %v3014 = vpop.permute.xlu0 %3013
        %3015 = vrot.lane.b32.xlu0 %v2890, 21
        %v3016 = vpop.permute.xlu0 %3015
        %3017 = vrot.lane.b32.xlu0 %v2891, 21
        %v3018 = vpop.permute.xlu0 %3017
        %3019 = vrot.lane.b32.xlu0 %v2892, 21
        %v3020 = vpop.permute.xlu0 %3019
        %3021 = vrot.lane.b32.xlu0 %v2893, 21
        %v3022 = vpop.permute.xlu0 %3021
        %3023 = vrot.lane.b32.xlu0 %v2894, 21
        %v3024 = vpop.permute.xlu0 %3023
        %3025 = vrot.lane.b32.xlu0 %v2895, 21
        %v3026 = vpop.permute.xlu0 %3025
        %3027 = vrot.lane.b32.xlu0 %v2896, 21
        %v3028 = vpop.permute.xlu0 %3027
        %3029 = vrot.lane.b32.xlu0 %v2897, 21
        %v3030 = vpop.permute.xlu0 %3029
        %3031 = vrot.lane.b32.xlu0 %v2898, 21
        %v3032 = vpop.permute.xlu0 %3031
        %3033 = vrot.lane.b32.xlu0 %v2899, 21
        %v3034 = vpop.permute.xlu0 %3033
        %3035 = vrot.lane.b32.xlu0 %v2900, 21
        %v3036 = vpop.permute.xlu0 %3035
        %3037 = vrot.lane.b32.xlu0 %v2901, 21
        %v3038 = vpop.permute.xlu0 %3037
        %3039 = vrot.lane.b32.xlu0 %v2902, 21
        %v3040 = vpop.permute.xlu0 %3039
        %3041 = vrot.lane.b32.xlu0 %v2903, 21
        %v3042 = vpop.permute.xlu0 %3041
        %3043 = vrot.lane.b32.xlu0 %v2904, 21
        %v3044 = vpop.permute.xlu0 %3043
        %3045 = vrot.lane.b32.xlu0 %v2905, 21
        %v3046 = vpop.permute.xlu0 %3045
        %3047 = vrot.lane.b32.xlu0 %v2906, 21
        %v3048 = vpop.permute.xlu0 %3047
        %3049 = vrot.lane.b32.xlu0 %v2907, 21
        %v3050 = vpop.permute.xlu0 %3049
        %3051 = vrot.lane.b32.xlu0 %v2908, 21
        %v3052 = vpop.permute.xlu0 %3051
        %3053 = vrot.lane.b32.xlu0 %v2909, 21
        %v3054 = vpop.permute.xlu0 %3053
        %3055 = vrot.lane.b32.xlu0 %v2910, 21
        %v3056 = vpop.permute.xlu0 %3055
        %3057 = vrot.lane.b32.xlu0 %v2911, 21
        %v3058 = vpop.permute.xlu0 %3057
        %3059 = vrot.lane.b32.xlu0 %v2912, 21
        %v3060 = vpop.permute.xlu0 %3059
        %3061 = vrot.lane.b32.xlu0 %v2913, 21
        %v3062 = vpop.permute.xlu0 %3061
        %3063 = vrot.lane.b32.xlu0 %v2914, 21
        %v3064 = vpop.permute.xlu0 %3063
        %3065 = vrot.lane.b32.xlu0 %v2915, 21
        %v3066 = vpop.permute.xlu0 %3065
        %3067 = vrot.lane.b32.xlu0 %v2916, 21
        %v3068 = vpop.permute.xlu0 %3067
        %3069 = vrot.lane.b32.xlu0 %v2917, 21
        %v3070 = vpop.permute.xlu0 %3069
        %3071 = vrot.lane.b32.xlu0 %v2918, 21
        %v3072 = vpop.permute.xlu0 %3071
        %3073 = vrot.lane.b32.xlu0 %v2919, 21
        %v3074 = vpop.permute.xlu0 %3073
        %3075 = vrot.lane.b32.xlu0 %v2920, 21
        %v3076 = vpop.permute.xlu0 %3075
        %3077 = vrot.lane.b32.xlu0 %v2921, 21
        %v3078 = vpop.permute.xlu0 %3077
        %3079 = vrot.lane.b32.xlu0 %v2922, 21
        %v3080 = vpop.permute.xlu0 %3079
        %3081 = vrot.lane.b32.xlu0 %v2923, 21
        %v3082 = vpop.permute.xlu0 %3081
        %3083 = vrot.lane.b32.xlu0 %v2924, 21
        %v3084 = vpop.permute.xlu0 %3083
        %3085 = vrot.lane.b32.xlu0 %v2925, 21
        %v3086 = vpop.permute.xlu0 %3085
        %3087 = vrot.lane.b32.xlu0 %v2926, 21
        %v3088 = vpop.permute.xlu0 %3087
        %3089 = vrot.lane.b32.xlu0 %v2927, 21
        %v3090 = vpop.permute.xlu0 %3089
        %3091 = vrot.lane.b32.xlu0 %v2928, 21
        %v3092 = vpop.permute.xlu0 %3091
        %3093 = vrot.lane.b32.xlu0 %v2929, 21
        %v3094 = vpop.permute.xlu0 %3093
        %vm3150 = vcmask 191656
        %3151 = vst.msk [vmem:[#allocation2] sm:$0xf] %vm3150, %v2986
        %3152 = vst.msk [vmem:[#allocation2 + $0x4] sm:$0xf] %vm3150, %v2988
        %3153 = vst.msk [vmem:[#allocation2 + $0x8] sm:$0xf] %vm3150, %v2990
        %3154 = vst.msk [vmem:[#allocation2 + $0xc] sm:$0xf] %vm3150, %v2992
        %3155 = vst.msk [vmem:[#allocation2 + $0x10] sm:$0xf] %vm3150, %v2994
        %3156 = vst.msk [vmem:[#allocation2 + $0x14] sm:$0xf] %vm3150, %v2996
        %3157 = vst.msk [vmem:[#allocation2 + $0x18] sm:$0xf] %vm3150, %v2998
        %3158 = vst.msk [vmem:[#allocation2 + $0x1c] sm:$0xf] %vm3150, %v3000
        %3159 = vst.msk [vmem:[#allocation2 + $0x20] sm:$0xf] %vm3150, %v3002
        %3160 = vst.msk [vmem:[#allocation2 + $0x24] sm:$0xf] %vm3150, %v3004
        %3161 = vst.msk [vmem:[#allocation2 + $0x28] sm:$0xf] %vm3150, %v3006
        %3162 = vst.msk [vmem:[#allocation2 + $0x2c] sm:$0xf] %vm3150, %v3008
        %3163 = vst.msk [vmem:[#allocation2 + $0x30] sm:$0xf] %vm3150, %v3010
        %3164 = vst.msk [vmem:[#allocation2 + $0x34] sm:$0xf] %vm3150, %v3012
        %3165 = vst.msk [vmem:[#allocation2 + $0x38] sm:$0xf] %vm3150, %v3014
        %3166 = vst.msk [vmem:[#allocation2 + $0x3c] sm:$0xf] %vm3150, %v3016
        %3167 = vst.msk [vmem:[#allocation2 + $0x40] sm:$0xf] %vm3150, %v3018
        %3168 = vst.msk [vmem:[#allocation2 + $0x44] sm:$0xf] %vm3150, %v3020
        %3169 = vst.msk [vmem:[#allocation2 + $0x48] sm:$0xf] %vm3150, %v3022
        %3170 = vst.msk [vmem:[#allocation2 + $0x4c] sm:$0xf] %vm3150, %v3024
        %3171 = vst.msk [vmem:[#allocation2 + $0x50] sm:$0xf] %vm3150, %v3026
        %3172 = vst.msk [vmem:[#allocation2 + $0x54] sm:$0xf] %vm3150, %v3028
        %3173 = vst.msk [vmem:[#allocation2 + $0x58] sm:$0xf] %vm3150, %v3030
        %3174 = vst.msk [vmem:[#allocation2 + $0x5c] sm:$0xf] %vm3150, %v3032
        %3175 = vst.msk [vmem:[#allocation2 + $0x60] sm:$0xf] %vm3150, %v3034
        %3176 = vst.msk [vmem:[#allocation2 + $0x64] sm:$0xf] %vm3150, %v3036
        %3177 = vst.msk [vmem:[#allocation2 + $0x68] sm:$0xf] %vm3150, %v3038
        %3178 = vst.msk [vmem:[#allocation2 + $0x6c] sm:$0xf] %vm3150, %v3040
        %3179 = vst.msk [vmem:[#allocation2 + $0x70] sm:$0xf] %vm3150, %v3042
        %3180 = vst.msk [vmem:[#allocation2 + $0x74] sm:$0xf] %vm3150, %v3044
        %3181 = vst.msk [vmem:[#allocation2 + $0x78] sm:$0xf] %vm3150, %v3046
        %3182 = vst.msk [vmem:[#allocation2 + $0x7c] sm:$0xf] %vm3150, %v3048
        %3183 = vst.msk [vmem:[#allocation2 + $0x80] sm:$0xf] %vm3150, %v3050
        %3184 = vst.msk [vmem:[#allocation2 + $0x84] sm:$0xf] %vm3150, %v3052
        %3185 = vst.msk [vmem:[#allocation2 + $0x88] sm:$0xf] %vm3150, %v3054
        %3186 = vst.msk [vmem:[#allocation2 + $0x8c] sm:$0xf] %vm3150, %v3056
        %3187 = vst.msk [vmem:[#allocation2 + $0x90] sm:$0xf] %vm3150, %v3058
        %3188 = vst.msk [vmem:[#allocation2 + $0x94] sm:$0xf] %vm3150, %v3060
        %3189 = vst.msk [vmem:[#allocation2 + $0x98] sm:$0xf] %vm3150, %v3062
        %3190 = vst.msk [vmem:[#allocation2 + $0x9c] sm:$0xf] %vm3150, %v3064
        %3191 = vst.msk [vmem:[#allocation2 + $0xa0] sm:$0xf] %vm3150, %v3066
        %3192 = vst.msk [vmem:[#allocation2 + $0xa4] sm:$0xf] %vm3150, %v3068
        %3193 = vst.msk [vmem:[#allocation2 + $0xa8] sm:$0xf] %vm3150, %v3070
        %3194 = vst.msk [vmem:[#allocation2 + $0xac] sm:$0xf] %vm3150, %v3072
        %3195 = vst.msk [vmem:[#allocation2 + $0xb0] sm:$0xf] %vm3150, %v3074
        %3196 = vst.msk [vmem:[#allocation2 + $0xb4] sm:$0xf] %vm3150, %v3076
        %3197 = vst.msk [vmem:[#allocation2 + $0xb8] sm:$0xf] %vm3150, %v3078
        %3198 = vst.msk [vmem:[#allocation2 + $0xbc] sm:$0xf] %vm3150, %v3080
        %3199 = vst.msk [vmem:[#allocation2 + $0xc0] sm:$0xf] %vm3150, %v3082
        %3200 = vst.msk [vmem:[#allocation2 + $0xc4] sm:$0xf] %vm3150, %v3084
        %3201 = vst.msk [vmem:[#allocation2 + $0xc8] sm:$0xf] %vm3150, %v3086
        %3202 = vst.msk [vmem:[#allocation2 + $0xcc] sm:$0xf] %vm3150, %v3088
        %3203 = vst.msk [vmem:[#allocation2 + $0xd0] sm:$0xf] %vm3150, %v3090
        %3204 = vst.msk [vmem:[#allocation2 + $0xd4] sm:$0xf] %vm3150, %v3092
        %vm3205 = vcmask 190632
        %3206 = vst.msk [vmem:[#allocation2 + $0xd8] sm:$0x7] %vm3205, %v3094
        %v3207 = vld [vmem:[%s329 + $0x2e] sm:$0xff]
        %v3208 = vld [vmem:[%s329 + $0x36] sm:$0xff]
        %v3209 = vld [vmem:[%s329 + $0x3e] sm:$0xff]
        %v3210 = vld [vmem:[%s329 + $0x46] sm:$0xff]
        %v3211 = vld [vmem:[%s329 + $0x4e] sm:$0xff]
        %v3212 = vld [vmem:[%s329 + $0x56] sm:$0xff]
        %v3213 = vld [vmem:[%s329 + $0x5e] sm:$0xff]
        %v3214 = vld [vmem:[%s329 + $0x66] sm:$0xff]
        %v3215 = vld [vmem:[%s329 + $0x6e] sm:$0xff]
        %v3216 = vld [vmem:[%s329 + $0x76] sm:$0xff]
        %v3217 = vld [vmem:[%s329 + $0x7e] sm:$0xff]
        %v3218 = vld [vmem:[%s329 + $0x86] sm:$0xff]
        %v3219 = vld [vmem:[%s329 + $0x8e] sm:$0xff]
        %v3220 = vld [vmem:[%s329 + $0x96] sm:$0xff]
        %v3221 = vld [vmem:[%s329 + $0x9e] sm:$0xff]
        %v3222 = vld [vmem:[%s329 + $0xa6] sm:$0xff]
        %v3223 = vld [vmem:[%s329 + $0xae] sm:$0xff]
        %v3224 = vld [vmem:[%s329 + $0xb6] sm:$0xff]
        %v3225 = vld [vmem:[%s329 + $0xbe] sm:$0xff]
        %v3226 = vld [vmem:[%s329 + $0xc6] sm:$0xff]
        %v3227 = vld [vmem:[%s329 + $0xce] sm:$0xff]
        %v3228 = vld [vmem:[%s329 + $0xd6] sm:$0xff]
        %v3229 = vld [vmem:[%s329 + $0xde] sm:$0xff]
        %v3230 = vld [vmem:[%s329 + $0xe6] sm:$0xff]
        %v3231 = vld [vmem:[%s329 + $0xee] sm:$0xff]
        %v3232 = vld [vmem:[%s329 + $0xf6] sm:$0xff]
        %v3233 = vld [vmem:[%s329 + $0xfe] sm:$0xff]
        %v3234 = vld [vmem:[%s329 + $0x106] sm:$0xff]
        %v3235 = vld [vmem:[%s329 + $0x10e] sm:$0xff]
        %v3236 = vld [vmem:[%s329 + $0x116] sm:$0xff]
        %v3237 = vld [vmem:[%s329 + $0x11e] sm:$0xff]
        %v3238 = vld [vmem:[%s329 + $0x126] sm:$0xff]
        %v3239 = vld [vmem:[%s329 + $0x12e] sm:$0xff]
        %v3240 = vld [vmem:[%s329 + $0x136] sm:$0xff]
        %v3241 = vld [vmem:[%s329 + $0x13e] sm:$0xff]
        %v3242 = vld [vmem:[%s329 + $0x146] sm:$0xff]
        %v3243 = vld [vmem:[%s329 + $0x14e] sm:$0xff]
        %v3244 = vld [vmem:[%s329 + $0x156] sm:$0xff]
        %v3245 = vld [vmem:[%s329 + $0x15e] sm:$0xff]
        %v3246 = vld [vmem:[%s329 + $0x166] sm:$0xff]
        %v3247 = vld [vmem:[%s329 + $0x16e] sm:$0xff]
        %v3248 = vld [vmem:[%s329 + $0x176] sm:$0xff]
        %v3249 = vld [vmem:[%s329 + $0x17e] sm:$0xff]
        %v3250 = vld [vmem:[%s329 + $0x186] sm:$0xff]
        %v3251 = vld [vmem:[%s329 + $0x18e] sm:$0xff]
        %v3252 = vld [vmem:[%s329 + $0x196] sm:$0xff]
        %v3253 = vld [vmem:[%s329 + $0x19e] sm:$0xff]
        %v3254 = vld [vmem:[%s329 + $0x1a6] sm:$0xff]
        %v3255 = vld [vmem:[%s329 + $0x1ae] sm:$0xff]
        %v3256 = vld [vmem:[%s329 + $0x1b6] sm:$0xff]
        %v3257 = vld [vmem:[%s329 + $0x1be] sm:$0xff]
        %v3258 = vld [vmem:[%s329 + $0x1c6] sm:$0xff]
        %v3259 = vld [vmem:[%s329 + $0x1ce] sm:$0xff]
        %v3260 = vld [vmem:[%s329 + $0x1d6] sm:$0xff]
        %v3261 = vld [vmem:[%s329 + $0x1de] sm:$0x3f]
        %v3262 = vpack.c.bf16 %v3207, %v3207
        %v3263 = vpack.c.bf16 %v3208, %v3208
        %v3264 = vpack.c.bf16 %v3209, %v3209
        %v3265 = vpack.c.bf16 %v3210, %v3210
        %v3266 = vpack.c.bf16 %v3211, %v3211
        %v3267 = vpack.c.bf16 %v3212, %v3212
        %v3268 = vpack.c.bf16 %v3213, %v3213
        %v3269 = vpack.c.bf16 %v3214, %v3214
        %v3270 = vpack.c.bf16 %v3215, %v3215
        %v3271 = vpack.c.bf16 %v3216, %v3216
        %v3272 = vpack.c.bf16 %v3217, %v3217
        %v3273 = vpack.c.bf16 %v3218, %v3218
        %v3274 = vpack.c.bf16 %v3219, %v3219
        %v3275 = vpack.c.bf16 %v3220, %v3220
        %v3276 = vpack.c.bf16 %v3221, %v3221
        %v3277 = vpack.c.bf16 %v3222, %v3222
        %v3278 = vpack.c.bf16 %v3223, %v3223
        %v3279 = vpack.c.bf16 %v3224, %v3224
        %v3280 = vpack.c.bf16 %v3225, %v3225
        %v3281 = vpack.c.bf16 %v3226, %v3226
        %v3282 = vpack.c.bf16 %v3227, %v3227
        %v3283 = vpack.c.bf16 %v3228, %v3228
        %v3284 = vpack.c.bf16 %v3229, %v3229
        %v3285 = vpack.c.bf16 %v3230, %v3230
        %v3286 = vpack.c.bf16 %v3231, %v3231
        %v3287 = vpack.c.bf16 %v3232, %v3232
        %v3288 = vpack.c.bf16 %v3233, %v3233
        %v3289 = vpack.c.bf16 %v3234, %v3234
        %v3290 = vpack.c.bf16 %v3235, %v3235
        %v3291 = vpack.c.bf16 %v3236, %v3236
        %v3292 = vpack.c.bf16 %v3237, %v3237
        %v3293 = vpack.c.bf16 %v3238, %v3238
        %v3294 = vpack.c.bf16 %v3239, %v3239
        %v3295 = vpack.c.bf16 %v3240, %v3240
        %v3296 = vpack.c.bf16 %v3241, %v3241
        %v3297 = vpack.c.bf16 %v3242, %v3242
        %v3298 = vpack.c.bf16 %v3243, %v3243
        %v3299 = vpack.c.bf16 %v3244, %v3244
        %v3300 = vpack.c.bf16 %v3245, %v3245
        %v3301 = vpack.c.bf16 %v3246, %v3246
        %v3302 = vpack.c.bf16 %v3247, %v3247
        %v3303 = vpack.c.bf16 %v3248, %v3248
        %v3304 = vpack.c.bf16 %v3249, %v3249
        %v3305 = vpack.c.bf16 %v3250, %v3250
        %v3306 = vpack.c.bf16 %v3251, %v3251
        %v3307 = vpack.c.bf16 %v3252, %v3252
        %v3308 = vpack.c.bf16 %v3253, %v3253
        %v3309 = vpack.c.bf16 %v3254, %v3254
        %v3310 = vpack.c.bf16 %v3255, %v3255
        %v3311 = vpack.c.bf16 %v3256, %v3256
        %v3312 = vpack.c.bf16 %v3257, %v3257
        %v3313 = vpack.c.bf16 %v3258, %v3258
        %v3314 = vpack.c.bf16 %v3259, %v3259
        %v3315 = vpack.c.bf16 %v3260, %v3260
        %v3316 = vpack.c.bf16 %v3261, %v3261
        %3372 = vrot.lane.b32.xlu0 %v3262, 24
        %v3373 = vpop.permute.xlu0 %3372
        %3374 = vrot.lane.b32.xlu0 %v3263, 24
        %v3375 = vpop.permute.xlu0 %3374
        %3376 = vrot.lane.b32.xlu0 %v3264, 24
        %v3377 = vpop.permute.xlu0 %3376
        %3378 = vrot.lane.b32.xlu0 %v3265, 24
        %v3379 = vpop.permute.xlu0 %3378
        %3380 = vrot.lane.b32.xlu0 %v3266, 24
        %v3381 = vpop.permute.xlu0 %3380
        %3382 = vrot.lane.b32.xlu0 %v3267, 24
        %v3383 = vpop.permute.xlu0 %3382
        %3384 = vrot.lane.b32.xlu0 %v3268, 24
        %v3385 = vpop.permute.xlu0 %3384
        %3386 = vrot.lane.b32.xlu0 %v3269, 24
        %v3387 = vpop.permute.xlu0 %3386
        %3388 = vrot.lane.b32.xlu0 %v3270, 24
        %v3389 = vpop.permute.xlu0 %3388
        %3390 = vrot.lane.b32.xlu0 %v3271, 24
        %v3391 = vpop.permute.xlu0 %3390
        %3392 = vrot.lane.b32.xlu0 %v3272, 24
        %v3393 = vpop.permute.xlu0 %3392
        %3394 = vrot.lane.b32.xlu0 %v3273, 24
        %v3395 = vpop.permute.xlu0 %3394
        %3396 = vrot.lane.b32.xlu0 %v3274, 24
        %v3397 = vpop.permute.xlu0 %3396
        %3398 = vrot.lane.b32.xlu0 %v3275, 24
        %v3399 = vpop.permute.xlu0 %3398
        %3400 = vrot.lane.b32.xlu0 %v3276, 24
        %v3401 = vpop.permute.xlu0 %3400
        %3402 = vrot.lane.b32.xlu0 %v3277, 24
        %v3403 = vpop.permute.xlu0 %3402
        %3404 = vrot.lane.b32.xlu0 %v3278, 24
        %v3405 = vpop.permute.xlu0 %3404
        %3406 = vrot.lane.b32.xlu0 %v3279, 24
        %v3407 = vpop.permute.xlu0 %3406
        %3408 = vrot.lane.b32.xlu0 %v3280, 24
        %v3409 = vpop.permute.xlu0 %3408
        %3410 = vrot.lane.b32.xlu0 %v3281, 24
        %v3411 = vpop.permute.xlu0 %3410
        %3412 = vrot.lane.b32.xlu0 %v3282, 24
        %v3413 = vpop.permute.xlu0 %3412
        %3414 = vrot.lane.b32.xlu0 %v3283, 24
        %v3415 = vpop.permute.xlu0 %3414
        %3416 = vrot.lane.b32.xlu0 %v3284, 24
        %v3417 = vpop.permute.xlu0 %3416
        %3418 = vrot.lane.b32.xlu0 %v3285, 24
        %v3419 = vpop.permute.xlu0 %3418
        %3420 = vrot.lane.b32.xlu0 %v3286, 24
        %v3421 = vpop.permute.xlu0 %3420
        %3422 = vrot.lane.b32.xlu0 %v3287, 24
        %v3423 = vpop.permute.xlu0 %3422
        %3424 = vrot.lane.b32.xlu0 %v3288, 24
        %v3425 = vpop.permute.xlu0 %3424
        %3426 = vrot.lane.b32.xlu0 %v3289, 24
        %v3427 = vpop.permute.xlu0 %3426
        %3428 = vrot.lane.b32.xlu0 %v3290, 24
        %v3429 = vpop.permute.xlu0 %3428
        %3430 = vrot.lane.b32.xlu0 %v3291, 24
        %v3431 = vpop.permute.xlu0 %3430
        %3432 = vrot.lane.b32.xlu0 %v3292, 24
        %v3433 = vpop.permute.xlu0 %3432
        %3434 = vrot.lane.b32.xlu0 %v3293, 24
        %v3435 = vpop.permute.xlu0 %3434
        %3436 = vrot.lane.b32.xlu0 %v3294, 24
        %v3437 = vpop.permute.xlu0 %3436
        %3438 = vrot.lane.b32.xlu0 %v3295, 24
        %v3439 = vpop.permute.xlu0 %3438
        %3440 = vrot.lane.b32.xlu0 %v3296, 24
        %v3441 = vpop.permute.xlu0 %3440
        %3442 = vrot.lane.b32.xlu0 %v3297, 24
        %v3443 = vpop.permute.xlu0 %3442
        %3444 = vrot.lane.b32.xlu0 %v3298, 24
        %v3445 = vpop.permute.xlu0 %3444
        %3446 = vrot.lane.b32.xlu0 %v3299, 24
        %v3447 = vpop.permute.xlu0 %3446
        %3448 = vrot.lane.b32.xlu0 %v3300, 24
        %v3449 = vpop.permute.xlu0 %3448
        %3450 = vrot.lane.b32.xlu0 %v3301, 24
        %v3451 = vpop.permute.xlu0 %3450
        %3452 = vrot.lane.b32.xlu0 %v3302, 24
        %v3453 = vpop.permute.xlu0 %3452
        %3454 = vrot.lane.b32.xlu0 %v3303, 24
        %v3455 = vpop.permute.xlu0 %3454
        %3456 = vrot.lane.b32.xlu0 %v3304, 24
        %v3457 = vpop.permute.xlu0 %3456
        %3458 = vrot.lane.b32.xlu0 %v3305, 24
        %v3459 = vpop.permute.xlu0 %3458
        %3460 = vrot.lane.b32.xlu0 %v3306, 24
        %v3461 = vpop.permute.xlu0 %3460
        %3462 = vrot.lane.b32.xlu0 %v3307, 24
        %v3463 = vpop.permute.xlu0 %3462
        %3464 = vrot.lane.b32.xlu0 %v3308, 24
        %v3465 = vpop.permute.xlu0 %3464
        %3466 = vrot.lane.b32.xlu0 %v3309, 24
        %v3467 = vpop.permute.xlu0 %3466
        %3468 = vrot.lane.b32.xlu0 %v3310, 24
        %v3469 = vpop.permute.xlu0 %3468
        %3470 = vrot.lane.b32.xlu0 %v3311, 24
        %v3471 = vpop.permute.xlu0 %3470
        %3472 = vrot.lane.b32.xlu0 %v3312, 24
        %v3473 = vpop.permute.xlu0 %3472
        %3474 = vrot.lane.b32.xlu0 %v3313, 24
        %v3475 = vpop.permute.xlu0 %3474
        %3476 = vrot.lane.b32.xlu0 %v3314, 24
        %v3477 = vpop.permute.xlu0 %3476
        %3478 = vrot.lane.b32.xlu0 %v3315, 24
        %v3479 = vpop.permute.xlu0 %3478
        %3480 = vrot.lane.b32.xlu0 %v3316, 24
        %v3481 = vpop.permute.xlu0 %3480
        %vm3537 = vcmask 216256
        %3538 = vst.msk [vmem:[#allocation2] sm:$0xf] %vm3537, %v3373
        %3539 = vst.msk [vmem:[#allocation2 + $0x4] sm:$0xf] %vm3537, %v3375
        %3540 = vst.msk [vmem:[#allocation2 + $0x8] sm:$0xf] %vm3537, %v3377
        %3541 = vst.msk [vmem:[#allocation2 + $0xc] sm:$0xf] %vm3537, %v3379
        %3542 = vst.msk [vmem:[#allocation2 + $0x10] sm:$0xf] %vm3537, %v3381
        %3543 = vst.msk [vmem:[#allocation2 + $0x14] sm:$0xf] %vm3537, %v3383
        %3544 = vst.msk [vmem:[#allocation2 + $0x18] sm:$0xf] %vm3537, %v3385
        %3545 = vst.msk [vmem:[#allocation2 + $0x1c] sm:$0xf] %vm3537, %v3387
        %3546 = vst.msk [vmem:[#allocation2 + $0x20] sm:$0xf] %vm3537, %v3389
        %3547 = vst.msk [vmem:[#allocation2 + $0x24] sm:$0xf] %vm3537, %v3391
        %3548 = vst.msk [vmem:[#allocation2 + $0x28] sm:$0xf] %vm3537, %v3393
        %3549 = vst.msk [vmem:[#allocation2 + $0x2c] sm:$0xf] %vm3537, %v3395
        %3550 = vst.msk [vmem:[#allocation2 + $0x30] sm:$0xf] %vm3537, %v3397
        %3551 = vst.msk [vmem:[#allocation2 + $0x34] sm:$0xf] %vm3537, %v3399
        %3552 = vst.msk [vmem:[#allocation2 + $0x38] sm:$0xf] %vm3537, %v3401
        %3553 = vst.msk [vmem:[#allocation2 + $0x3c] sm:$0xf] %vm3537, %v3403
        %3554 = vst.msk [vmem:[#allocation2 + $0x40] sm:$0xf] %vm3537, %v3405
        %3555 = vst.msk [vmem:[#allocation2 + $0x44] sm:$0xf] %vm3537, %v3407
        %3556 = vst.msk [vmem:[#allocation2 + $0x48] sm:$0xf] %vm3537, %v3409
        %3557 = vst.msk [vmem:[#allocation2 + $0x4c] sm:$0xf] %vm3537, %v3411
        %3558 = vst.msk [vmem:[#allocation2 + $0x50] sm:$0xf] %vm3537, %v3413
        %3559 = vst.msk [vmem:[#allocation2 + $0x54] sm:$0xf] %vm3537, %v3415
        %3560 = vst.msk [vmem:[#allocation2 + $0x58] sm:$0xf] %vm3537, %v3417
        %3561 = vst.msk [vmem:[#allocation2 + $0x5c] sm:$0xf] %vm3537, %v3419
        %3562 = vst.msk [vmem:[#allocation2 + $0x60] sm:$0xf] %vm3537, %v3421
        %3563 = vst.msk [vmem:[#allocation2 + $0x64] sm:$0xf] %vm3537, %v3423
        %3564 = vst.msk [vmem:[#allocation2 + $0x68] sm:$0xf] %vm3537, %v3425
        %3565 = vst.msk [vmem:[#allocation2 + $0x6c] sm:$0xf] %vm3537, %v3427
        %3566 = vst.msk [vmem:[#allocation2 + $0x70] sm:$0xf] %vm3537, %v3429
        %3567 = vst.msk [vmem:[#allocation2 + $0x74] sm:$0xf] %vm3537, %v3431
        %3568 = vst.msk [vmem:[#allocation2 + $0x78] sm:$0xf] %vm3537, %v3433
        %3569 = vst.msk [vmem:[#allocation2 + $0x7c] sm:$0xf] %vm3537, %v3435
        %3570 = vst.msk [vmem:[#allocation2 + $0x80] sm:$0xf] %vm3537, %v3437
        %3571 = vst.msk [vmem:[#allocation2 + $0x84] sm:$0xf] %vm3537, %v3439
        %3572 = vst.msk [vmem:[#allocation2 + $0x88] sm:$0xf] %vm3537, %v3441
        %3573 = vst.msk [vmem:[#allocation2 + $0x8c] sm:$0xf] %vm3537, %v3443
        %3574 = vst.msk [vmem:[#allocation2 + $0x90] sm:$0xf] %vm3537, %v3445
        %3575 = vst.msk [vmem:[#allocation2 + $0x94] sm:$0xf] %vm3537, %v3447
        %3576 = vst.msk [vmem:[#allocation2 + $0x98] sm:$0xf] %vm3537, %v3449
        %3577 = vst.msk [vmem:[#allocation2 + $0x9c] sm:$0xf] %vm3537, %v3451
        %3578 = vst.msk [vmem:[#allocation2 + $0xa0] sm:$0xf] %vm3537, %v3453
        %3579 = vst.msk [vmem:[#allocation2 + $0xa4] sm:$0xf] %vm3537, %v3455
        %3580 = vst.msk [vmem:[#allocation2 + $0xa8] sm:$0xf] %vm3537, %v3457
        %3581 = vst.msk [vmem:[#allocation2 + $0xac] sm:$0xf] %vm3537, %v3459
        %3582 = vst.msk [vmem:[#allocation2 + $0xb0] sm:$0xf] %vm3537, %v3461
        %3583 = vst.msk [vmem:[#allocation2 + $0xb4] sm:$0xf] %vm3537, %v3463
        %3584 = vst.msk [vmem:[#allocation2 + $0xb8] sm:$0xf] %vm3537, %v3465
        %3585 = vst.msk [vmem:[#allocation2 + $0xbc] sm:$0xf] %vm3537, %v3467
        %3586 = vst.msk [vmem:[#allocation2 + $0xc0] sm:$0xf] %vm3537, %v3469
        %3587 = vst.msk [vmem:[#allocation2 + $0xc4] sm:$0xf] %vm3537, %v3471
        %3588 = vst.msk [vmem:[#allocation2 + $0xc8] sm:$0xf] %vm3537, %v3473
        %3589 = vst.msk [vmem:[#allocation2 + $0xcc] sm:$0xf] %vm3537, %v3475
        %3590 = vst.msk [vmem:[#allocation2 + $0xd0] sm:$0xf] %vm3537, %v3477
        %3591 = vst.msk [vmem:[#allocation2 + $0xd4] sm:$0xf] %vm3537, %v3479
        %vm3592 = vcmask 215232
        %3593 = vst.msk [vmem:[#allocation2 + $0xd8] sm:$0x7] %vm3592, %v3481
        %v3594 = vld [vmem:[#allocation2] sm:$0xf]
        %v3595 = vld [vmem:[#allocation2 + $0x4] sm:$0xf]
        %v3596 = vld [vmem:[#allocation2 + $0x8] sm:$0xf]
        %v3597 = vld [vmem:[#allocation2 + $0xc] sm:$0xf]
        %v3598 = vld [vmem:[#allocation2 + $0x10] sm:$0xf]
        %v3599 = vld [vmem:[#allocation2 + $0x14] sm:$0xf]
        %v3600 = vld [vmem:[#allocation2 + $0x18] sm:$0xf]
        %v3601 = vld [vmem:[#allocation2 + $0x1c] sm:$0xf]
        %v3602 = vld [vmem:[#allocation2 + $0x20] sm:$0xf]
        %v3603 = vld [vmem:[#allocation2 + $0x24] sm:$0xf]
        %v3604 = vld [vmem:[#allocation2 + $0x28] sm:$0xf]
        %v3605 = vld [vmem:[#allocation2 + $0x2c] sm:$0xf]
        %v3606 = vld [vmem:[#allocation2 + $0x30] sm:$0xf]
        %v3607 = vld [vmem:[#allocation2 + $0x34] sm:$0xf]
        %v3608 = vld [vmem:[#allocation2 + $0x38] sm:$0xf]
        %v3609 = vld [vmem:[#allocation2 + $0x3c] sm:$0xf]
        %v3610 = vld [vmem:[#allocation2 + $0x40] sm:$0xf]
        %v3611 = vld [vmem:[#allocation2 + $0x44] sm:$0xf]
        %v3612 = vld [vmem:[#allocation2 + $0x48] sm:$0xf]
        %v3613 = vld [vmem:[#allocation2 + $0x4c] sm:$0xf]
        %v3614 = vld [vmem:[#allocation2 + $0x50] sm:$0xf]
        %v3615 = vld [vmem:[#allocation2 + $0x54] sm:$0xf]
        %v3616 = vld [vmem:[#allocation2 + $0x58] sm:$0xf]
        %v3617 = vld [vmem:[#allocation2 + $0x5c] sm:$0xf]
        %v3618 = vld [vmem:[#allocation2 + $0x60] sm:$0xf]
        %v3619 = vld [vmem:[#allocation2 + $0x64] sm:$0xf]
        %v3620 = vld [vmem:[#allocation2 + $0x68] sm:$0xf]
        %v3621 = vld [vmem:[#allocation2 + $0x6c] sm:$0xf]
        %v3622 = vld [vmem:[#allocation2 + $0x70] sm:$0xf]
        %v3623 = vld [vmem:[#allocation2 + $0x74] sm:$0xf]
        %v3624 = vld [vmem:[#allocation2 + $0x78] sm:$0xf]
        %v3625 = vld [vmem:[#allocation2 + $0x7c] sm:$0xf]
        %v3626 = vld [vmem:[#allocation2 + $0x80] sm:$0xf]
        %v3627 = vld [vmem:[#allocation2 + $0x84] sm:$0xf]
        %v3628 = vld [vmem:[#allocation2 + $0x88] sm:$0xf]
        %v3629 = vld [vmem:[#allocation2 + $0x8c] sm:$0xf]
        %v3630 = vld [vmem:[#allocation2 + $0x90] sm:$0xf]
        %v3631 = vld [vmem:[#allocation2 + $0x94] sm:$0xf]
        %v3632 = vld [vmem:[#allocation2 + $0x98] sm:$0xf]
        %v3633 = vld [vmem:[#allocation2 + $0x9c] sm:$0xf]
        %v3634 = vld [vmem:[#allocation2 + $0xa0] sm:$0xf]
        %v3635 = vld [vmem:[#allocation2 + $0xa4] sm:$0xf]
        %v3636 = vld [vmem:[#allocation2 + $0xa8] sm:$0xf]
        %v3637 = vld [vmem:[#allocation2 + $0xac] sm:$0xf]
        %v3638 = vld [vmem:[#allocation2 + $0xb0] sm:$0xf]
        %v3639 = vld [vmem:[#allocation2 + $0xb4] sm:$0xf]
        %v3640 = vld [vmem:[#allocation2 + $0xb8] sm:$0xf]
        %v3641 = vld [vmem:[#allocation2 + $0xbc] sm:$0xf]
        %v3642 = vld [vmem:[#allocation2 + $0xc0] sm:$0xf]
        %v3643 = vld [vmem:[#allocation2 + $0xc4] sm:$0xf]
        %v3644 = vld [vmem:[#allocation2 + $0xc8] sm:$0xf]
        %v3645 = vld [vmem:[#allocation2 + $0xcc] sm:$0xf]
        %v3646 = vld [vmem:[#allocation2 + $0xd0] sm:$0xf]
        %v3647 = vld [vmem:[#allocation2 + $0xd4] sm:$0xf]
        %v3648 = vld [vmem:[#allocation2 + $0xd8] sm:$0x7]
        %v3649 = vld [vmem:[%s1] sm:$0xf]
        %v3650 = vld [vmem:[%s1 + $0x4] sm:$0xf]
        %v3651 = vld [vmem:[%s1 + $0x8] sm:$0xf]
        %v3652 = vld [vmem:[%s1 + $0xc] sm:$0x3]
        %v3653 = vld [vmem:[%s2] sm:$0x1]
        %v3655 = vperm.slane %v3653, 0
        %v3712 = vunpack.c.l.b16 %v3594
        %v3713 = vunpack.c.l.b16 %v3595
        %v3714 = vunpack.c.l.b16 %v3596
        %v3715 = vunpack.c.l.b16 %v3597
        %v3716 = vunpack.c.l.b16 %v3598
        %v3717 = vunpack.c.l.b16 %v3599
        %v3718 = vunpack.c.l.b16 %v3600
        %v3719 = vunpack.c.l.b16 %v3601
        %v3720 = vunpack.c.l.b16 %v3602
        %v3721 = vunpack.c.l.b16 %v3603
        %v3722 = vunpack.c.l.b16 %v3604
        %v3723 = vunpack.c.l.b16 %v3605
        %v3724 = vunpack.c.l.b16 %v3606
        %v3725 = vunpack.c.l.b16 %v3607
        %v3726 = vunpack.c.l.b16 %v3608
        %v3727 = vunpack.c.l.b16 %v3609
        %v3728 = vunpack.c.l.b16 %v3610
        %v3729 = vunpack.c.l.b16 %v3611
        %v3730 = vunpack.c.l.b16 %v3612
        %v3731 = vunpack.c.l.b16 %v3613
        %v3732 = vunpack.c.l.b16 %v3614
        %v3733 = vunpack.c.l.b16 %v3615
        %v3734 = vunpack.c.l.b16 %v3616
        %v3735 = vunpack.c.l.b16 %v3617
        %v3736 = vunpack.c.l.b16 %v3618
        %v3737 = vunpack.c.l.b16 %v3619
        %v3738 = vunpack.c.l.b16 %v3620
        %v3739 = vunpack.c.l.b16 %v3621
        %v3740 = vunpack.c.l.b16 %v3622
        %v3741 = vunpack.c.l.b16 %v3623
        %v3742 = vunpack.c.l.b16 %v3624
        %v3743 = vunpack.c.l.b16 %v3625
        %v3744 = vunpack.c.l.b16 %v3626
        %v3745 = vunpack.c.l.b16 %v3627
        %v3746 = vunpack.c.l.b16 %v3628
        %v3747 = vunpack.c.l.b16 %v3629
        %v3748 = vunpack.c.l.b16 %v3630
        %v3749 = vunpack.c.l.b16 %v3631
        %v3750 = vunpack.c.l.b16 %v3632
        %v3751 = vunpack.c.l.b16 %v3633
        %v3752 = vunpack.c.l.b16 %v3634
        %v3753 = vunpack.c.l.b16 %v3635
        %v3754 = vunpack.c.l.b16 %v3636
        %v3755 = vunpack.c.l.b16 %v3637
        %v3756 = vunpack.c.l.b16 %v3638
        %v3757 = vunpack.c.l.b16 %v3639
        %v3758 = vunpack.c.l.b16 %v3640
        %v3759 = vunpack.c.l.b16 %v3641
        %v3760 = vunpack.c.l.b16 %v3642
        %v3761 = vunpack.c.l.b16 %v3643
        %v3762 = vunpack.c.l.b16 %v3644
        %v3763 = vunpack.c.l.b16 %v3645
        %v3764 = vunpack.c.l.b16 %v3646
        %v3765 = vunpack.c.l.b16 %v3647
        %v3766 = vunpack.c.l.b16 %v3648
        %v3767 = vpack.c.b16 %v3713, %v3712
        %v3768 = vpack.c.b16 %v3715, %v3714
        %v3769 = vpack.c.b16 %v3717, %v3716
        %v3770 = vpack.c.b16 %v3719, %v3718
        %v3771 = vpack.c.b16 %v3721, %v3720
        %v3772 = vpack.c.b16 %v3723, %v3722
        %v3773 = vpack.c.b16 %v3725, %v3724
        %v3774 = vpack.c.b16 %v3727, %v3726
        %v3775 = vpack.c.b16 %v3729, %v3728
        %v3776 = vpack.c.b16 %v3731, %v3730
        %v3777 = vpack.c.b16 %v3733, %v3732
        %v3778 = vpack.c.b16 %v3735, %v3734
        %v3779 = vpack.c.b16 %v3737, %v3736
        %v3780 = vpack.c.b16 %v3739, %v3738
        %v3781 = vpack.c.b16 %v3741, %v3740
        %v3782 = vpack.c.b16 %v3743, %v3742
        %v3783 = vpack.c.b16 %v3745, %v3744
        %v3784 = vpack.c.b16 %v3747, %v3746
        %v3785 = vpack.c.b16 %v3749, %v3748
        %v3786 = vpack.c.b16 %v3751, %v3750
        %v3787 = vpack.c.b16 %v3753, %v3752
        %v3788 = vpack.c.b16 %v3755, %v3754
        %v3789 = vpack.c.b16 %v3757, %v3756
        %v3790 = vpack.c.b16 %v3759, %v3758
        %v3791 = vpack.c.b16 %v3761, %v3760
        %v3792 = vpack.c.b16 %v3763, %v3762
        %v3793 = vpack.c.b16 %v3765, %v3764
        %v3794 = vpack.c.b16 %v3766, %v3766
        %v3799 = vunpack.c.l.b16 %v3649
        %v3800 = vunpack.c.l.b16 %v3650
        %v3801 = vunpack.c.l.b16 %v3651
        %v3802 = vunpack.c.l.b16 %v3652
        %v3803 = vpack.c.b16 %v3800, %v3799
        %v3804 = vpack.c.b16 %v3802, %v3801
        %vm3806 = vcmask 220160
        %v3808 = vsel %vm3806, %v3767, 0
        %v3811 = vsel %vm3806, %v3768, 0
        %v3814 = vsel %vm3806, %v3769, 0
        %v3817 = vsel %vm3806, %v3770, 0
        %v3820 = vsel %vm3806, %v3771, 0
        %v3823 = vsel %vm3806, %v3772, 0
        %v3826 = vsel %vm3806, %v3773, 0
        %v3829 = vsel %vm3806, %v3774, 0
        %v3832 = vsel %vm3806, %v3775, 0
        %v3835 = vsel %vm3806, %v3776, 0
        %v3838 = vsel %vm3806, %v3777, 0
        %v3841 = vsel %vm3806, %v3778, 0
        %v3844 = vsel %vm3806, %v3779, 0
        %v3847 = vsel %vm3806, %v3780, 0
        %v3850 = vsel %vm3806, %v3781, 0
        %v3853 = vsel %vm3806, %v3782, 0
        %v3856 = vsel %vm3806, %v3783, 0
        %v3859 = vsel %vm3806, %v3784, 0
        %v3862 = vsel %vm3806, %v3785, 0
        %v3865 = vsel %vm3806, %v3786, 0
        %v3868 = vsel %vm3806, %v3787, 0
        %v3871 = vsel %vm3806, %v3788, 0
        %v3874 = vsel %vm3806, %v3789, 0
        %v3877 = vsel %vm3806, %v3790, 0
        %v3880 = vsel %vm3806, %v3791, 0
        %v3883 = vsel %vm3806, %v3792, 0
        %v3886 = vsel %vm3806, %v3793, 0
        %v3889 = vsel %vm3806, %v3794, 0
        %vm3891 = vcmask 1044480
        %vm3892 = vcmask 1045504
        %v3893 = vsel %vm3891, 4294967295, 65535
        %v3894 = vsel %vm3892, %v3893, 0
        %v3896 = vand.u32 %v3804, %v3894
        %3898 = vmatpush.bf16.msra.mxu0 0
        %3899 = vmatpush.bf16.msra.mxu0 0
        %3900 = vmatpush.bf16.msra.mxu0 0
        %3901 = vmatpush.bf16.msra.mxu0 0
        %3902 = vmatpush.bf16.msra.mxu0 0
        %3903 = vmatpush.bf16.msra.mxu0 0
        %3904 = vmatpush.bf16.msra.mxu0 %v3896
        %3905 = vmatpush.bf16.msra.mxu0 %v3803
        %3906 = vmatmul.bf16.gmra.mxu0 %v3808
        %v3907 = vpop.f32.mrf.mxu0
        %v3908 = vadd.f32 %v3655, %v3907
        %v3909 = vpop.f32.mrf.mxu0
        %v3910 = vadd.f32 %v3655, %v3909
        %3911 = vmatmul.bf16.gmra.mxu0 %v3811
        %v3912 = vpop.f32.mrf.mxu0
        %v3913 = vadd.f32 %v3655, %v3912
        %v3914 = vpop.f32.mrf.mxu0
        %v3915 = vadd.f32 %v3655, %v3914
        %3916 = vmatmul.bf16.gmra.mxu0 %v3814
        %v3917 = vpop.f32.mrf.mxu0
        %v3918 = vadd.f32 %v3655, %v3917
        %v3919 = vpop.f32.mrf.mxu0
        %v3920 = vadd.f32 %v3655, %v3919
        %3921 = vmatmul.bf16.gmra.mxu0 %v3817
        %v3922 = vpop.f32.mrf.mxu0
        %v3923 = vadd.f32 %v3655, %v3922
        %v3924 = vpop.f32.mrf.mxu0
        %v3925 = vadd.f32 %v3655, %v3924
        %3926 = vmatmul.bf16.gmra.mxu0 %v3820
        %v3927 = vpop.f32.mrf.mxu0
        %v3928 = vadd.f32 %v3655, %v3927
        %v3929 = vpop.f32.mrf.mxu0
        %v3930 = vadd.f32 %v3655, %v3929
        %3931 = vmatmul.bf16.gmra.mxu0 %v3823
        %v3932 = vpop.f32.mrf.mxu0
        %v3933 = vadd.f32 %v3655, %v3932
        %v3934 = vpop.f32.mrf.mxu0
        %v3935 = vadd.f32 %v3655, %v3934
        %3936 = vmatmul.bf16.gmra.mxu0 %v3826
        %v3937 = vpop.f32.mrf.mxu0
        %v3938 = vadd.f32 %v3655, %v3937
        %v3939 = vpop.f32.mrf.mxu0
        %v3940 = vadd.f32 %v3655, %v3939
        %3941 = vmatmul.bf16.gmra.mxu0 %v3829
        %v3942 = vpop.f32.mrf.mxu0
        %v3943 = vadd.f32 %v3655, %v3942
        %v3944 = vpop.f32.mrf.mxu0
        %v3945 = vadd.f32 %v3655, %v3944
        %3946 = vmatmul.bf16.gmra.mxu0 %v3832
        %v3947 = vpop.f32.mrf.mxu0
        %v3948 = vadd.f32 %v3655, %v3947
        %v3949 = vpop.f32.mrf.mxu0
        %v3950 = vadd.f32 %v3655, %v3949
        %3951 = vmatmul.bf16.gmra.mxu0 %v3835
        %v3952 = vpop.f32.mrf.mxu0
        %v3953 = vadd.f32 %v3655, %v3952
        %v3954 = vpop.f32.mrf.mxu0
        %v3955 = vadd.f32 %v3655, %v3954
        %3956 = vmatmul.bf16.gmra.mxu0 %v3838
        %v3957 = vpop.f32.mrf.mxu0
        %v3958 = vadd.f32 %v3655, %v3957
        %v3959 = vpop.f32.mrf.mxu0
        %v3960 = vadd.f32 %v3655, %v3959
        %3961 = vmatmul.bf16.gmra.mxu0 %v3841
        %v3962 = vpop.f32.mrf.mxu0
        %v3963 = vadd.f32 %v3655, %v3962
        %v3964 = vpop.f32.mrf.mxu0
        %v3965 = vadd.f32 %v3655, %v3964
        %3966 = vmatmul.bf16.gmra.mxu0 %v3844
        %v3967 = vpop.f32.mrf.mxu0
        %v3968 = vadd.f32 %v3655, %v3967
        %v3969 = vpop.f32.mrf.mxu0
        %v3970 = vadd.f32 %v3655, %v3969
        %3971 = vmatmul.bf16.gmra.mxu0 %v3847
        %v3972 = vpop.f32.mrf.mxu0
        %v3973 = vadd.f32 %v3655, %v3972
        %v3974 = vpop.f32.mrf.mxu0
        %v3975 = vadd.f32 %v3655, %v3974
        %3976 = vmatmul.bf16.gmra.mxu0 %v3850
        %v3977 = vpop.f32.mrf.mxu0
        %v3978 = vadd.f32 %v3655, %v3977
        %v3979 = vpop.f32.mrf.mxu0
        %v3980 = vadd.f32 %v3655, %v3979
        %3981 = vmatmul.bf16.gmra.mxu0 %v3853
        %v3982 = vpop.f32.mrf.mxu0
        %v3983 = vadd.f32 %v3655, %v3982
        %v3984 = vpop.f32.mrf.mxu0
        %v3985 = vadd.f32 %v3655, %v3984
        %3986 = vmatmul.bf16.gmra.mxu0 %v3856
        %v3987 = vpop.f32.mrf.mxu0
        %v3988 = vadd.f32 %v3655, %v3987
        %v3989 = vpop.f32.mrf.mxu0
        %v3990 = vadd.f32 %v3655, %v3989
        %3991 = vmatmul.bf16.gmra.mxu0 %v3859
        %v3992 = vpop.f32.mrf.mxu0
        %v3993 = vadd.f32 %v3655, %v3992
        %v3994 = vpop.f32.mrf.mxu0
        %v3995 = vadd.f32 %v3655, %v3994
        %3996 = vmatmul.bf16.gmra.mxu0 %v3862
        %v3997 = vpop.f32.mrf.mxu0
        %v3998 = vadd.f32 %v3655, %v3997
        %v3999 = vpop.f32.mrf.mxu0
        %v4000 = vadd.f32 %v3655, %v3999
        %4001 = vmatmul.bf16.gmra.mxu0 %v3865
        %v4002 = vpop.f32.mrf.mxu0
        %v4003 = vadd.f32 %v3655, %v4002
        %v4004 = vpop.f32.mrf.mxu0
        %v4005 = vadd.f32 %v3655, %v4004
        %4006 = vmatmul.bf16.gmra.mxu0 %v3868
        %v4007 = vpop.f32.mrf.mxu0
        %v4008 = vadd.f32 %v3655, %v4007
        %v4009 = vpop.f32.mrf.mxu0
        %v4010 = vadd.f32 %v3655, %v4009
        %4011 = vmatmul.bf16.gmra.mxu0 %v3871
        %v4012 = vpop.f32.mrf.mxu0
        %v4013 = vadd.f32 %v3655, %v4012
        %v4014 = vpop.f32.mrf.mxu0
        %v4015 = vadd.f32 %v3655, %v4014
        %4016 = vmatmul.bf16.gmra.mxu0 %v3874
        %v4017 = vpop.f32.mrf.mxu0
        %v4018 = vadd.f32 %v3655, %v4017
        %v4019 = vpop.f32.mrf.mxu0
        %v4020 = vadd.f32 %v3655, %v4019
        %4021 = vmatmul.bf16.gmra.mxu0 %v3877
        %v4022 = vpop.f32.mrf.mxu0
        %v4023 = vadd.f32 %v3655, %v4022
        %v4024 = vpop.f32.mrf.mxu0
        %v4025 = vadd.f32 %v3655, %v4024
        %4026 = vmatmul.bf16.gmra.mxu0 %v3880
        %v4027 = vpop.f32.mrf.mxu0
        %v4028 = vadd.f32 %v3655, %v4027
        %v4029 = vpop.f32.mrf.mxu0
        %v4030 = vadd.f32 %v3655, %v4029
        %4031 = vmatmul.bf16.gmra.mxu0 %v3883
        %v4032 = vpop.f32.mrf.mxu0
        %v4033 = vadd.f32 %v3655, %v4032
        %v4034 = vpop.f32.mrf.mxu0
        %v4035 = vadd.f32 %v3655, %v4034
        %4036 = vmatmul.bf16.gmra.mxu0 %v3886
        %v4037 = vpop.f32.mrf.mxu0
        %v4038 = vadd.f32 %v3655, %v4037
        %v4039 = vpop.f32.mrf.mxu0
        %v4040 = vadd.f32 %v3655, %v4039
        %4041 = vmatmul.bf16.gmra.mxu0 %v3889
        %v4042 = vpop.f32.mrf.mxu0
        %v4043 = vadd.f32 %v3655, %v4042
        %v4044 = vpop.f32.mrf.mxu0
        %4045 = vdwg.mxu0
        %v4046 = vmax.f32 %v3908, 0.0
        %v4047 = vmax.f32 %v3910, 0.0
        %v4048 = vmax.f32 %v3913, 0.0
        %v4049 = vmax.f32 %v3915, 0.0
        %v4050 = vmax.f32 %v3918, 0.0
        %v4051 = vmax.f32 %v3920, 0.0
        %v4052 = vmax.f32 %v3923, 0.0
        %v4053 = vmax.f32 %v3925, 0.0
        %v4054 = vmax.f32 %v3928, 0.0
        %v4055 = vmax.f32 %v3930, 0.0
        %v4056 = vmax.f32 %v3933, 0.0
        %v4057 = vmax.f32 %v3935, 0.0
        %v4058 = vmax.f32 %v3938, 0.0
        %v4059 = vmax.f32 %v3940, 0.0
        %v4060 = vmax.f32 %v3943, 0.0
        %v4061 = vmax.f32 %v3945, 0.0
        %v4062 = vmax.f32 %v3948, 0.0
        %v4063 = vmax.f32 %v3950, 0.0
        %v4064 = vmax.f32 %v3953, 0.0
        %v4065 = vmax.f32 %v3955, 0.0
        %v4066 = vmax.f32 %v3958, 0.0
        %v4067 = vmax.f32 %v3960, 0.0
        %v4068 = vmax.f32 %v3963, 0.0
        %v4069 = vmax.f32 %v3965, 0.0
        %v4070 = vmax.f32 %v3968, 0.0
        %v4071 = vmax.f32 %v3970, 0.0
        %v4072 = vmax.f32 %v3973, 0.0
        %v4073 = vmax.f32 %v3975, 0.0
        %v4074 = vmax.f32 %v3978, 0.0
        %v4075 = vmax.f32 %v3980, 0.0
        %v4076 = vmax.f32 %v3983, 0.0
        %v4077 = vmax.f32 %v3985, 0.0
        %v4078 = vmax.f32 %v3988, 0.0
        %v4079 = vmax.f32 %v3990, 0.0
        %v4080 = vmax.f32 %v3993, 0.0
        %v4081 = vmax.f32 %v3995, 0.0
        %v4082 = vmax.f32 %v3998, 0.0
        %v4083 = vmax.f32 %v4000, 0.0
        %v4084 = vmax.f32 %v4003, 0.0
        %v4085 = vmax.f32 %v4005, 0.0
        %v4086 = vmax.f32 %v4008, 0.0
        %v4087 = vmax.f32 %v4010, 0.0
        %v4088 = vmax.f32 %v4013, 0.0
        %v4089 = vmax.f32 %v4015, 0.0
        %v4090 = vmax.f32 %v4018, 0.0
        %v4091 = vmax.f32 %v4020, 0.0
        %v4092 = vmax.f32 %v4023, 0.0
        %v4093 = vmax.f32 %v4025, 0.0
        %v4094 = vmax.f32 %v4028, 0.0
        %v4095 = vmax.f32 %v4030, 0.0
        %v4096 = vmax.f32 %v4033, 0.0
        %v4097 = vmax.f32 %v4035, 0.0
        %v4098 = vmax.f32 %v4038, 0.0
        %v4099 = vmax.f32 %v4040, 0.0
        %v4100 = vmax.f32 %v4043, 0.0
        %vm4101 = vcmask 130048
        %4102 = vst.msk [vmem:[#allocation3] sm:$0xff] %vm4101, %v4046
        %4103 = vst.msk [vmem:[#allocation3 + $0x8] sm:$0xff] %vm4101, %v4047
        %4104 = vst.msk [vmem:[#allocation3 + $0x10] sm:$0xff] %vm4101, %v4048
        %4105 = vst.msk [vmem:[#allocation3 + $0x18] sm:$0xff] %vm4101, %v4049
        %4106 = vst.msk [vmem:[#allocation3 + $0x20] sm:$0xff] %vm4101, %v4050
        %4107 = vst.msk [vmem:[#allocation3 + $0x28] sm:$0xff] %vm4101, %v4051
        %4108 = vst.msk [vmem:[#allocation3 + $0x30] sm:$0xff] %vm4101, %v4052
        %4109 = vst.msk [vmem:[#allocation3 + $0x38] sm:$0xff] %vm4101, %v4053
        %4110 = vst.msk [vmem:[#allocation3 + $0x40] sm:$0xff] %vm4101, %v4054
        %4111 = vst.msk [vmem:[#allocation3 + $0x48] sm:$0xff] %vm4101, %v4055
        %4112 = vst.msk [vmem:[#allocation3 + $0x50] sm:$0xff] %vm4101, %v4056
        %4113 = vst.msk [vmem:[#allocation3 + $0x58] sm:$0xff] %vm4101, %v4057
        %4114 = vst.msk [vmem:[#allocation3 + $0x60] sm:$0xff] %vm4101, %v4058
        %4115 = vst.msk [vmem:[#allocation3 + $0x68] sm:$0xff] %vm4101, %v4059
        %4116 = vst.msk [vmem:[#allocation3 + $0x70] sm:$0xff] %vm4101, %v4060
        %4117 = vst.msk [vmem:[#allocation3 + $0x78] sm:$0xff] %vm4101, %v4061
        %4118 = vst.msk [vmem:[#allocation3 + $0x80] sm:$0xff] %vm4101, %v4062
        %4119 = vst.msk [vmem:[#allocation3 + $0x88] sm:$0xff] %vm4101, %v4063
        %4120 = vst.msk [vmem:[#allocation3 + $0x90] sm:$0xff] %vm4101, %v4064
        %4121 = vst.msk [vmem:[#allocation3 + $0x98] sm:$0xff] %vm4101, %v4065
        %4122 = vst.msk [vmem:[#allocation3 + $0xa0] sm:$0xff] %vm4101, %v4066
        %4123 = vst.msk [vmem:[#allocation3 + $0xa8] sm:$0xff] %vm4101, %v4067
        %4124 = vst.msk [vmem:[#allocation3 + $0xb0] sm:$0xff] %vm4101, %v4068
        %4125 = vst.msk [vmem:[#allocation3 + $0xb8] sm:$0xff] %vm4101, %v4069
        %4126 = vst.msk [vmem:[#allocation3 + $0xc0] sm:$0xff] %vm4101, %v4070
        %4127 = vst.msk [vmem:[#allocation3 + $0xc8] sm:$0xff] %vm4101, %v4071
        %4128 = vst.msk [vmem:[#allocation3 + $0xd0] sm:$0xff] %vm4101, %v4072
        %4129 = vst.msk [vmem:[#allocation3 + $0xd8] sm:$0xff] %vm4101, %v4073
        %4130 = vst.msk [vmem:[#allocation3 + $0xe0] sm:$0xff] %vm4101, %v4074
        %4131 = vst.msk [vmem:[#allocation3 + $0xe8] sm:$0xff] %vm4101, %v4075
        %4132 = vst.msk [vmem:[#allocation3 + $0xf0] sm:$0xff] %vm4101, %v4076
        %4133 = vst.msk [vmem:[#allocation3 + $0xf8] sm:$0xff] %vm4101, %v4077
        %4134 = vst.msk [vmem:[#allocation3 + $0x100] sm:$0xff] %vm4101, %v4078
        %4135 = vst.msk [vmem:[#allocation3 + $0x108] sm:$0xff] %vm4101, %v4079
        %4136 = vst.msk [vmem:[#allocation3 + $0x110] sm:$0xff] %vm4101, %v4080
        %4137 = vst.msk [vmem:[#allocation3 + $0x118] sm:$0xff] %vm4101, %v4081
        %4138 = vst.msk [vmem:[#allocation3 + $0x120] sm:$0xff] %vm4101, %v4082
        %4139 = vst.msk [vmem:[#allocation3 + $0x128] sm:$0xff] %vm4101, %v4083
        %4140 = vst.msk [vmem:[#allocation3 + $0x130] sm:$0xff] %vm4101, %v4084
        %4141 = vst.msk [vmem:[#allocation3 + $0x138] sm:$0xff] %vm4101, %v4085
        %4142 = vst.msk [vmem:[#allocation3 + $0x140] sm:$0xff] %vm4101, %v4086
        %4143 = vst.msk [vmem:[#allocation3 + $0x148] sm:$0xff] %vm4101, %v4087
        %4144 = vst.msk [vmem:[#allocation3 + $0x150] sm:$0xff] %vm4101, %v4088
        %4145 = vst.msk [vmem:[#allocation3 + $0x158] sm:$0xff] %vm4101, %v4089
        %4146 = vst.msk [vmem:[#allocation3 + $0x160] sm:$0xff] %vm4101, %v4090
        %4147 = vst.msk [vmem:[#allocation3 + $0x168] sm:$0xff] %vm4101, %v4091
        %4148 = vst.msk [vmem:[#allocation3 + $0x170] sm:$0xff] %vm4101, %v4092
        %4149 = vst.msk [vmem:[#allocation3 + $0x178] sm:$0xff] %vm4101, %v4093
        %4150 = vst.msk [vmem:[#allocation3 + $0x180] sm:$0xff] %vm4101, %v4094
        %4151 = vst.msk [vmem:[#allocation3 + $0x188] sm:$0xff] %vm4101, %v4095
        %4152 = vst.msk [vmem:[#allocation3 + $0x190] sm:$0xff] %vm4101, %v4096
        %4153 = vst.msk [vmem:[#allocation3 + $0x198] sm:$0xff] %vm4101, %v4097
        %4154 = vst.msk [vmem:[#allocation3 + $0x1a0] sm:$0xff] %vm4101, %v4098
        %4155 = vst.msk [vmem:[#allocation3 + $0x1a8] sm:$0xff] %vm4101, %v4099
        %vm4156 = vcmask 128000
        %4157 = vst.msk [vmem:[#allocation3 + $0x1b0] sm:$0x3f] %vm4156, %v4100
        %v4158 = vld [vmem:[#allocation3] ss:$2 sm:$0xff]
        %s4159 = scalar_lea.vmem [#allocation3], 16
        %v4160 = vld [vmem:[%s4159] ss:$2 sm:$0x3]
        %s4161 = scalar_lea.vmem [#allocation3], 1
        %v4162 = vld [vmem:[%s4161] ss:$2 sm:$0xff]
        %s4163 = scalar_lea.vmem [#allocation3], 17
        %v4164 = vld [vmem:[%s4163] ss:$2 sm:$0x3]
        %s4165 = scalar_lea.vmem [#allocation3], 22
        %v4166 = vld [vmem:[%s4165] ss:$2 sm:$0xff]
        %s4167 = scalar_lea.vmem [#allocation3], 38
        %v4168 = vld [vmem:[%s4167] ss:$2 sm:$0x3]
        %s4169 = scalar_lea.vmem [#allocation3], 23
        %v4170 = vld [vmem:[%s4169] ss:$2 sm:$0xff]
        %s4171 = scalar_lea.vmem [#allocation3], 39
        %v4172 = vld [vmem:[%s4171] ss:$2 sm:$0x3]
        %v4173 = vmax.f32 %v4158, %v4162
        %v4174 = vmax.f32 %v4160, %v4164
        %v4175 = vmax.f32 %v4166, %v4170
        %v4176 = vmax.f32 %v4168, %v4172
        %v4177 = vmax.f32 %v4173, %v4175
        %v4178 = vmax.f32 %v4174, %v4176
        %4179 = vst.msk [vmem:[#allocation4] sm:$0xff] %vm4101, %v4177
        %vm4180 = vcmask 123904
        %4181 = vst.msk [vmem:[#allocation4 + $0x8] sm:$0x3] %vm4180, %v4178
        %s4182 = scalar_lea.vmem [#allocation3], 44
        %v4183 = vld [vmem:[%s4182] ss:$2 sm:$0xff]
        %s4184 = scalar_lea.vmem [#allocation3], 60
        %v4185 = vld [vmem:[%s4184] ss:$2 sm:$0x3]
        %s4186 = scalar_lea.vmem [#allocation3], 45
        %v4187 = vld [vmem:[%s4186] ss:$2 sm:$0xff]
        %s4188 = scalar_lea.vmem [#allocation3], 61
        %v4189 = vld [vmem:[%s4188] ss:$2 sm:$0x3]
        %s4190 = scalar_lea.vmem [#allocation3], 66
        %v4191 = vld [vmem:[%s4190] ss:$2 sm:$0xff]
        %s4192 = scalar_lea.vmem [#allocation3], 82
        %v4193 = vld [vmem:[%s4192] ss:$2 sm:$0x3]
        %s4194 = scalar_lea.vmem [#allocation3], 67
        %v4195 = vld [vmem:[%s4194] ss:$2 sm:$0xff]
        %s4196 = scalar_lea.vmem [#allocation3], 83
        %v4197 = vld [vmem:[%s4196] ss:$2 sm:$0x3]
        %v4198 = vmax.f32 %v4183, %v4187
        %v4199 = vmax.f32 %v4185, %v4189
        %v4200 = vmax.f32 %v4191, %v4195
        %v4201 = vmax.f32 %v4193, %v4197
        %v4202 = vmax.f32 %v4198, %v4200
        %v4203 = vmax.f32 %v4199, %v4201
        %4204 = vst.msk [vmem:[#allocation4 + $0xa] sm:$0xff] %vm4101, %v4202
        %4205 = vst.msk [vmem:[#allocation4 + $0x12] sm:$0x3] %vm4180, %v4203
        %s4206 = scalar_lea.vmem [#allocation3], 88
        %v4207 = vld [vmem:[%s4206] ss:$2 sm:$0xff]
        %s4208 = scalar_lea.vmem [#allocation3], 104
        %v4209 = vld [vmem:[%s4208] ss:$2 sm:$0x3]
        %s4210 = scalar_lea.vmem [#allocation3], 89
        %v4211 = vld [vmem:[%s4210] ss:$2 sm:$0xff]
        %s4212 = scalar_lea.vmem [#allocation3], 105
        %v4213 = vld [vmem:[%s4212] ss:$2 sm:$0x3]
        %s4214 = scalar_lea.vmem [#allocation3], 110
        %v4215 = vld [vmem:[%s4214] ss:$2 sm:$0xff]
        %s4216 = scalar_lea.vmem [#allocation3], 126
        %v4217 = vld [vmem:[%s4216] ss:$2 sm:$0x3]
        %s4218 = scalar_lea.vmem [#allocation3], 111
        %v4219 = vld [vmem:[%s4218] ss:$2 sm:$0xff]
        %s4220 = scalar_lea.vmem [#allocation3], 127
        %v4221 = vld [vmem:[%s4220] ss:$2 sm:$0x3]
        %v4222 = vmax.f32 %v4207, %v4211
        %v4223 = vmax.f32 %v4209, %v4213
        %v4224 = vmax.f32 %v4215, %v4219
        %v4225 = vmax.f32 %v4217, %v4221
        %v4226 = vmax.f32 %v4222, %v4224
        %v4227 = vmax.f32 %v4223, %v4225
        %4228 = vst.msk [vmem:[#allocation4 + $0x14] sm:$0xff] %vm4101, %v4226
        %4229 = vst.msk [vmem:[#allocation4 + $0x1c] sm:$0x3] %vm4180, %v4227
        %s4230 = scalar_lea.vmem [#allocation3], 132
        %v4231 = vld [vmem:[%s4230] ss:$2 sm:$0xff]
        %s4232 = scalar_lea.vmem [#allocation3], 148
        %v4233 = vld [vmem:[%s4232] ss:$2 sm:$0x3]
        %s4234 = scalar_lea.vmem [#allocation3], 133
        %v4235 = vld [vmem:[%s4234] ss:$2 sm:$0xff]
        %s4236 = scalar_lea.vmem [#allocation3], 149
        %v4237 = vld [vmem:[%s4236] ss:$2 sm:$0x3]
        %s4238 = scalar_lea.vmem [#allocation3], 154
        %v4239 = vld [vmem:[%s4238] ss:$2 sm:$0xff]
        %s4240 = scalar_lea.vmem [#allocation3], 170
        %v4241 = vld [vmem:[%s4240] ss:$2 sm:$0x3]
        %s4242 = scalar_lea.vmem [#allocation3], 155
        %v4243 = vld [vmem:[%s4242] ss:$2 sm:$0xff]
        %s4244 = scalar_lea.vmem [#allocation3], 171
        %v4245 = vld [vmem:[%s4244] ss:$2 sm:$0x3]
        %v4246 = vmax.f32 %v4231, %v4235
        %v4247 = vmax.f32 %v4233, %v4237
        %v4248 = vmax.f32 %v4239, %v4243
        %v4249 = vmax.f32 %v4241, %v4245
        %v4250 = vmax.f32 %v4246, %v4248
        %v4251 = vmax.f32 %v4247, %v4249
        %4252 = vst.msk [vmem:[#allocation4 + $0x1e] sm:$0xff] %vm4101, %v4250
        %4253 = vst.msk [vmem:[#allocation4 + $0x26] sm:$0x3] %vm4180, %v4251
        %s4254 = scalar_lea.vmem [#allocation3], 176
        %v4255 = vld [vmem:[%s4254] ss:$2 sm:$0xff]
        %s4256 = scalar_lea.vmem [#allocation3], 192
        %v4257 = vld [vmem:[%s4256] ss:$2 sm:$0x3]
        %s4258 = scalar_lea.vmem [#allocation3], 177
        %v4259 = vld [vmem:[%s4258] ss:$2 sm:$0xff]
        %s4260 = scalar_lea.vmem [#allocation3], 193
        %v4261 = vld [vmem:[%s4260] ss:$2 sm:$0x3]
        %s4262 = scalar_lea.vmem [#allocation3], 198
        %v4263 = vld [vmem:[%s4262] ss:$2 sm:$0xff]
        %s4264 = scalar_lea.vmem [#allocation3], 214
        %v4265 = vld [vmem:[%s4264] ss:$2 sm:$0x3]
        %s4266 = scalar_lea.vmem [#allocation3], 199
        %v4267 = vld [vmem:[%s4266] ss:$2 sm:$0xff]
        %s4268 = scalar_lea.vmem [#allocation3], 215
        %v4269 = vld [vmem:[%s4268] ss:$2 sm:$0x3]
        %v4270 = vmax.f32 %v4255, %v4259
        %v4271 = vmax.f32 %v4257, %v4261
        %v4272 = vmax.f32 %v4263, %v4267
        %v4273 = vmax.f32 %v4265, %v4269
        %v4274 = vmax.f32 %v4270, %v4272
        %v4275 = vmax.f32 %v4271, %v4273
        %4276 = vst.msk [vmem:[#allocation4 + $0x28] sm:$0xff] %vm4101, %v4274
        %4277 = vst.msk [vmem:[#allocation4 + $0x30] sm:$0x3] %vm4180, %v4275
        %s4278 = scalar_lea.vmem [#allocation3], 220
        %v4279 = vld [vmem:[%s4278] ss:$2 sm:$0xff]
        %s4280 = scalar_lea.vmem [#allocation3], 236
        %v4281 = vld [vmem:[%s4280] ss:$2 sm:$0x3]
        %s4282 = scalar_lea.vmem [#allocation3], 221
        %v4283 = vld [vmem:[%s4282] ss:$2 sm:$0xff]
        %s4284 = scalar_lea.vmem [#allocation3], 237
        %v4285 = vld [vmem:[%s4284] ss:$2 sm:$0x3]
        %s4286 = scalar_lea.vmem [#allocation3], 242
        %v4287 = vld [vmem:[%s4286] ss:$2 sm:$0xff]
        %s4288 = scalar_lea.vmem [#allocation3], 258
        %v4289 = vld [vmem:[%s4288] ss:$2 sm:$0x3]
        %s4290 = scalar_lea.vmem [#allocation3], 243
        %v4291 = vld [vmem:[%s4290] ss:$2 sm:$0xff]
        %s4292 = scalar_lea.vmem [#allocation3], 259
        %v4293 = vld [vmem:[%s4292] ss:$2 sm:$0x3]
        %v4294 = vmax.f32 %v4279, %v4283
        %v4295 = vmax.f32 %v4281, %v4285
        %v4296 = vmax.f32 %v4287, %v4291
        %v4297 = vmax.f32 %v4289, %v4293
        %v4298 = vmax.f32 %v4294, %v4296
        %v4299 = vmax.f32 %v4295, %v4297
        %4300 = vst.msk [vmem:[#allocation4 + $0x32] sm:$0xff] %vm4101, %v4298
        %4301 = vst.msk [vmem:[#allocation4 + $0x3a] sm:$0x3] %vm4180, %v4299
        %s4302 = scalar_lea.vmem [#allocation3], 264
        %v4303 = vld [vmem:[%s4302] ss:$2 sm:$0xff]
        %s4304 = scalar_lea.vmem [#allocation3], 280
        %v4305 = vld [vmem:[%s4304] ss:$2 sm:$0x3]
        %s4306 = scalar_lea.vmem [#allocation3], 265
        %v4307 = vld [vmem:[%s4306] ss:$2 sm:$0xff]
        %s4308 = scalar_lea.vmem [#allocation3], 281
        %v4309 = vld [vmem:[%s4308] ss:$2 sm:$0x3]
        %s4310 = scalar_lea.vmem [#allocation3], 286
        %v4311 = vld [vmem:[%s4310] ss:$2 sm:$0xff]
        %s4312 = scalar_lea.vmem [#allocation3], 302
        %v4313 = vld [vmem:[%s4312] ss:$2 sm:$0x3]
        %s4314 = scalar_lea.vmem [#allocation3], 287
        %v4315 = vld [vmem:[%s4314] ss:$2 sm:$0xff]
        %s4316 = scalar_lea.vmem [#allocation3], 303
        %v4317 = vld [vmem:[%s4316] ss:$2 sm:$0x3]
        %v4318 = vmax.f32 %v4303, %v4307
        %v4319 = vmax.f32 %v4305, %v4309
        %v4320 = vmax.f32 %v4311, %v4315
        %v4321 = vmax.f32 %v4313, %v4317
        %v4322 = vmax.f32 %v4318, %v4320
        %v4323 = vmax.f32 %v4319, %v4321
        %4324 = vst.msk [vmem:[#allocation4 + $0x3c] sm:$0xff] %vm4101, %v4322
        %4325 = vst.msk [vmem:[#allocation4 + $0x44] sm:$0x3] %vm4180, %v4323
        %s4326 = scalar_lea.vmem [#allocation3], 308
        %v4327 = vld [vmem:[%s4326] ss:$2 sm:$0xff]
        %s4328 = scalar_lea.vmem [#allocation3], 324
        %v4329 = vld [vmem:[%s4328] ss:$2 sm:$0x3]
        %s4330 = scalar_lea.vmem [#allocation3], 309
        %v4331 = vld [vmem:[%s4330] ss:$2 sm:$0xff]
        %s4332 = scalar_lea.vmem [#allocation3], 325
        %v4333 = vld [vmem:[%s4332] ss:$2 sm:$0x3]
        %s4334 = scalar_lea.vmem [#allocation3], 330
        %v4335 = vld [vmem:[%s4334] ss:$2 sm:$0xff]
        %s4336 = scalar_lea.vmem [#allocation3], 346
        %v4337 = vld [vmem:[%s4336] ss:$2 sm:$0x3]
        %s4338 = scalar_lea.vmem [#allocation3], 331
        %v4339 = vld [vmem:[%s4338] ss:$2 sm:$0xff]
        %s4340 = scalar_lea.vmem [#allocation3], 347
        %v4341 = vld [vmem:[%s4340] ss:$2 sm:$0x3]
        %v4342 = vmax.f32 %v4327, %v4331
        %v4343 = vmax.f32 %v4329, %v4333
        %v4344 = vmax.f32 %v4335, %v4339
        %v4345 = vmax.f32 %v4337, %v4341
        %v4346 = vmax.f32 %v4342, %v4344
        %v4347 = vmax.f32 %v4343, %v4345
        %4348 = vst.msk [vmem:[#allocation4 + $0x46] sm:$0xff] %vm4101, %v4346
        %4349 = vst.msk [vmem:[#allocation4 + $0x4e] sm:$0x3] %vm4180, %v4347
        %s4350 = scalar_lea.vmem [#allocation3], 352
        %v4351 = vld [vmem:[%s4350] ss:$2 sm:$0xff]
        %s4352 = scalar_lea.vmem [#allocation3], 368
        %v4353 = vld [vmem:[%s4352] ss:$2 sm:$0x3]
        %s4354 = scalar_lea.vmem [#allocation3], 353
        %v4355 = vld [vmem:[%s4354] ss:$2 sm:$0xff]
        %s4356 = scalar_lea.vmem [#allocation3], 369
        %v4357 = vld [vmem:[%s4356] ss:$2 sm:$0x3]
        %s4358 = scalar_lea.vmem [#allocation3], 374
        %v4359 = vld [vmem:[%s4358] ss:$2 sm:$0xff]
        %s4360 = scalar_lea.vmem [#allocation3], 390
        %v4361 = vld [vmem:[%s4360] ss:$2 sm:$0x3]
        %s4362 = scalar_lea.vmem [#allocation3], 375
        %v4363 = vld [vmem:[%s4362] ss:$2 sm:$0xff]
        %s4364 = scalar_lea.vmem [#allocation3], 391
        %v4365 = vld [vmem:[%s4364] ss:$2 sm:$0x3]
        %v4366 = vmax.f32 %v4351, %v4355
        %v4367 = vmax.f32 %v4353, %v4357
        %v4368 = vmax.f32 %v4359, %v4363
        %v4369 = vmax.f32 %v4361, %v4365
        %v4370 = vmax.f32 %v4366, %v4368
        %v4371 = vmax.f32 %v4367, %v4369
        %4372 = vst.msk [vmem:[#allocation4 + $0x50] sm:$0xff] %vm4101, %v4370
        %4373 = vst.msk [vmem:[#allocation4 + $0x58] sm:$0x3] %vm4180, %v4371
        %s4374 = scalar_lea.vmem [#allocation3], 396
        %v4375 = vld [vmem:[%s4374] ss:$2 sm:$0xff]
        %s4376 = scalar_lea.vmem [#allocation3], 412
        %v4377 = vld [vmem:[%s4376] ss:$2 sm:$0x3]
        %s4378 = scalar_lea.vmem [#allocation3], 397
        %v4379 = vld [vmem:[%s4378] ss:$2 sm:$0xff]
        %s4380 = scalar_lea.vmem [#allocation3], 413
        %v4381 = vld [vmem:[%s4380] ss:$2 sm:$0x3]
        %s4382 = scalar_lea.vmem [#allocation3], 418
        %v4383 = vld [vmem:[%s4382] ss:$2 sm:$0xff]
        %s4384 = scalar_lea.vmem [#allocation3], 434
        %v4385 = vld [vmem:[%s4384] ss:$2 sm:$0x3]
        %s4386 = scalar_lea.vmem [#allocation3], 419
        %v4387 = vld [vmem:[%s4386] ss:$2 sm:$0xff]
        %s4388 = scalar_lea.vmem [#allocation3], 435
        %v4389 = vld [vmem:[%s4388] ss:$2 sm:$0x3]
        %v4390 = vmax.f32 %v4375, %v4379
        %v4391 = vmax.f32 %v4377, %v4381
        %v4392 = vmax.f32 %v4383, %v4387
        %v4393 = vmax.f32 %v4385, %v4389
        %v4394 = vmax.f32 %v4390, %v4392
        %v4395 = vmax.f32 %v4391, %v4393
        %4396 = vst.msk [vmem:[#allocation4 + $0x5a] sm:$0xff] %vm4101, %v4394
        %4397 = vst.msk [vmem:[#allocation4 + $0x62] sm:$0x3] %vm4180, %v4395
        %v4398 = vld [vmem:[#allocation4] sm:$0xff]
        %v4399 = vld [vmem:[#allocation4 + $0x8] sm:$0xff]
        %v4400 = vld [vmem:[#allocation4 + $0x10] sm:$0xff]
        %v4401 = vld [vmem:[#allocation4 + $0x18] sm:$0xff]
        %v4402 = vld [vmem:[#allocation4 + $0x20] sm:$0xff]
        %v4403 = vld [vmem:[#allocation4 + $0x28] sm:$0xff]
        %v4404 = vld [vmem:[#allocation4 + $0x30] sm:$0xff]
        %v4405 = vld [vmem:[#allocation4 + $0x38] sm:$0xff]
        %v4406 = vld [vmem:[#allocation4 + $0x40] sm:$0xff]
        %v4407 = vld [vmem:[#allocation4 + $0x48] sm:$0x3f]
        %v4408 = vpack.c.bf16 %v4398, %v4398
        %v4409 = vpack.c.bf16 %v4399, %v4399
        %v4410 = vpack.c.bf16 %v4400, %v4400
        %v4411 = vpack.c.bf16 %v4401, %v4401
        %v4412 = vpack.c.bf16 %v4402, %v4402
        %v4413 = vpack.c.bf16 %v4403, %v4403
        %v4414 = vpack.c.bf16 %v4404, %v4404
        %v4415 = vpack.c.bf16 %v4405, %v4405
        %v4416 = vpack.c.bf16 %v4406, %v4406
        %v4417 = vpack.c.bf16 %v4407, %v4407
        %vm4418 = vcmask 125952
        %4419 = vst.msk [vmem:[#allocation5] sm:$0xf] %vm4418, %v4408
        %4420 = vst.msk [vmem:[#allocation5 + $0x8] sm:$0xf] %vm4418, %v4409
        %4421 = vst.msk [vmem:[#allocation5 + $0x10] sm:$0xf] %vm4418, %v4410
        %4422 = vst.msk [vmem:[#allocation5 + $0x18] sm:$0xf] %vm4418, %v4411
        %4423 = vst.msk [vmem:[#allocation5 + $0x20] sm:$0xf] %vm4418, %v4412
        %4424 = vst.msk [vmem:[#allocation5 + $0x28] sm:$0xf] %vm4418, %v4413
        %4425 = vst.msk [vmem:[#allocation5 + $0x30] sm:$0xf] %vm4418, %v4414
        %4426 = vst.msk [vmem:[#allocation5 + $0x38] sm:$0xf] %vm4418, %v4415
        %4427 = vst.msk [vmem:[#allocation5 + $0x40] sm:$0xf] %vm4418, %v4416
        %vm4428 = vcmask 124928
        %4429 = vst.msk [vmem:[#allocation5 + $0x48] sm:$0x7] %vm4428, %v4417
        %v4430 = vld [vmem:[#allocation4 + $0x1] sm:$0xff]
        %v4431 = vld [vmem:[#allocation4 + $0x9] sm:$0xff]
        %v4432 = vld [vmem:[#allocation4 + $0x11] sm:$0xff]
        %v4433 = vld [vmem:[#allocation4 + $0x19] sm:$0xff]
        %v4434 = vld [vmem:[#allocation4 + $0x21] sm:$0xff]
        %v4435 = vld [vmem:[#allocation4 + $0x29] sm:$0xff]
        %v4436 = vld [vmem:[#allocation4 + $0x31] sm:$0xff]
        %v4437 = vld [vmem:[#allocation4 + $0x39] sm:$0xff]
        %v4438 = vld [vmem:[#allocation4 + $0x41] sm:$0xff]
        %v4439 = vld [vmem:[#allocation4 + $0x49] sm:$0x3f]
        %v4440 = vpack.c.bf16 %v4430, %v4430
        %v4441 = vpack.c.bf16 %v4431, %v4431
        %v4442 = vpack.c.bf16 %v4432, %v4432
        %v4443 = vpack.c.bf16 %v4433, %v4433
        %v4444 = vpack.c.bf16 %v4434, %v4434
        %v4445 = vpack.c.bf16 %v4435, %v4435
        %v4446 = vpack.c.bf16 %v4436, %v4436
        %v4447 = vpack.c.bf16 %v4437, %v4437
        %v4448 = vpack.c.bf16 %v4438, %v4438
        %v4449 = vpack.c.bf16 %v4439, %v4439
        %4460 = vrot.lane.b32.xlu0 %v4440, 16
        %v4461 = vpop.permute.xlu0 %4460
        %4462 = vrot.lane.b32.xlu0 %v4441, 16
        %v4463 = vpop.permute.xlu0 %4462
        %4464 = vrot.lane.b32.xlu0 %v4442, 16
        %v4465 = vpop.permute.xlu0 %4464
        %4466 = vrot.lane.b32.xlu0 %v4443, 16
        %v4467 = vpop.permute.xlu0 %4466
        %4468 = vrot.lane.b32.xlu0 %v4444, 16
        %v4469 = vpop.permute.xlu0 %4468
        %4470 = vrot.lane.b32.xlu0 %v4445, 16
        %v4471 = vpop.permute.xlu0 %4470
        %4472 = vrot.lane.b32.xlu0 %v4446, 16
        %v4473 = vpop.permute.xlu0 %4472
        %4474 = vrot.lane.b32.xlu0 %v4447, 16
        %v4475 = vpop.permute.xlu0 %4474
        %4476 = vrot.lane.b32.xlu0 %v4448, 16
        %v4477 = vpop.permute.xlu0 %4476
        %4478 = vrot.lane.b32.xlu0 %v4449, 16
        %v4479 = vpop.permute.xlu0 %4478
        %vm4490 = vcmask 257152
        %4491 = vst.msk [vmem:[#allocation5] sm:$0xf] %vm4490, %v4461
        %4492 = vst.msk [vmem:[#allocation5 + $0x8] sm:$0xf] %vm4490, %v4463
        %4493 = vst.msk [vmem:[#allocation5 + $0x10] sm:$0xf] %vm4490, %v4465
        %4494 = vst.msk [vmem:[#allocation5 + $0x18] sm:$0xf] %vm4490, %v4467
        %4495 = vst.msk [vmem:[#allocation5 + $0x20] sm:$0xf] %vm4490, %v4469
        %4496 = vst.msk [vmem:[#allocation5 + $0x28] sm:$0xf] %vm4490, %v4471
        %4497 = vst.msk [vmem:[#allocation5 + $0x30] sm:$0xf] %vm4490, %v4473
        %4498 = vst.msk [vmem:[#allocation5 + $0x38] sm:$0xf] %vm4490, %v4475
        %4499 = vst.msk [vmem:[#allocation5 + $0x40] sm:$0xf] %vm4490, %v4477
        %vm4500 = vcmask 256128
        %4501 = vst.msk [vmem:[#allocation5 + $0x48] sm:$0x7] %vm4500, %v4479
        %v4502 = vld [vmem:[#allocation4 + $0x2] sm:$0xff]
        %v4503 = vld [vmem:[#allocation4 + $0xa] sm:$0xff]
        %v4504 = vld [vmem:[#allocation4 + $0x12] sm:$0xff]
        %v4505 = vld [vmem:[#allocation4 + $0x1a] sm:$0xff]
        %v4506 = vld [vmem:[#allocation4 + $0x22] sm:$0xff]
        %v4507 = vld [vmem:[#allocation4 + $0x2a] sm:$0xff]
        %v4508 = vld [vmem:[#allocation4 + $0x32] sm:$0xff]
        %v4509 = vld [vmem:[#allocation4 + $0x3a] sm:$0xff]
        %v4510 = vld [vmem:[#allocation4 + $0x42] sm:$0xff]
        %v4511 = vld [vmem:[#allocation4 + $0x4a] sm:$0x3f]
        %v4512 = vpack.c.bf16 %v4502, %v4502
        %v4513 = vpack.c.bf16 %v4503, %v4503
        %v4514 = vpack.c.bf16 %v4504, %v4504
        %v4515 = vpack.c.bf16 %v4505, %v4505
        %v4516 = vpack.c.bf16 %v4506, %v4506
        %v4517 = vpack.c.bf16 %v4507, %v4507
        %v4518 = vpack.c.bf16 %v4508, %v4508
        %v4519 = vpack.c.bf16 %v4509, %v4509
        %v4520 = vpack.c.bf16 %v4510, %v4510
        %v4521 = vpack.c.bf16 %v4511, %v4511
        %4532 = vrot.lane.b32.xlu0 %v4512, 32
        %v4533 = vpop.permute.xlu0 %4532
        %4534 = vrot.lane.b32.xlu0 %v4513, 32
        %v4535 = vpop.permute.xlu0 %4534
        %4536 = vrot.lane.b32.xlu0 %v4514, 32
        %v4537 = vpop.permute.xlu0 %4536
        %4538 = vrot.lane.b32.xlu0 %v4515, 32
        %v4539 = vpop.permute.xlu0 %4538
        %4540 = vrot.lane.b32.xlu0 %v4516, 32
        %v4541 = vpop.permute.xlu0 %4540
        %4542 = vrot.lane.b32.xlu0 %v4517, 32
        %v4543 = vpop.permute.xlu0 %4542
        %4544 = vrot.lane.b32.xlu0 %v4518, 32
        %v4545 = vpop.permute.xlu0 %4544
        %4546 = vrot.lane.b32.xlu0 %v4519, 32
        %v4547 = vpop.permute.xlu0 %4546
        %4548 = vrot.lane.b32.xlu0 %v4520, 32
        %v4549 = vpop.permute.xlu0 %4548
        %4550 = vrot.lane.b32.xlu0 %v4521, 32
        %v4551 = vpop.permute.xlu0 %4550
        %vm4562 = vcmask 388352
        %4563 = vst.msk [vmem:[#allocation5] sm:$0xf] %vm4562, %v4533
        %4564 = vst.msk [vmem:[#allocation5 + $0x8] sm:$0xf] %vm4562, %v4535
        %4565 = vst.msk [vmem:[#allocation5 + $0x10] sm:$0xf] %vm4562, %v4537
        %4566 = vst.msk [vmem:[#allocation5 + $0x18] sm:$0xf] %vm4562, %v4539
        %4567 = vst.msk [vmem:[#allocation5 + $0x20] sm:$0xf] %vm4562, %v4541
        %4568 = vst.msk [vmem:[#allocation5 + $0x28] sm:$0xf] %vm4562, %v4543
        %4569 = vst.msk [vmem:[#allocation5 + $0x30] sm:$0xf] %vm4562, %v4545
        %4570 = vst.msk [vmem:[#allocation5 + $0x38] sm:$0xf] %vm4562, %v4547
        %4571 = vst.msk [vmem:[#allocation5 + $0x40] sm:$0xf] %vm4562, %v4549
        %vm4572 = vcmask 387328
        %4573 = vst.msk [vmem:[#allocation5 + $0x48] sm:$0x7] %vm4572, %v4551
        %v4574 = vld [vmem:[#allocation4 + $0xa] sm:$0xff]
        %v4575 = vld [vmem:[#allocation4 + $0x12] sm:$0xff]
        %v4576 = vld [vmem:[#allocation4 + $0x1a] sm:$0xff]
        %v4577 = vld [vmem:[#allocation4 + $0x22] sm:$0xff]
        %v4578 = vld [vmem:[#allocation4 + $0x2a] sm:$0xff]
        %v4579 = vld [vmem:[#allocation4 + $0x32] sm:$0xff]
        %v4580 = vld [vmem:[#allocation4 + $0x3a] sm:$0xff]
        %v4581 = vld [vmem:[#allocation4 + $0x42] sm:$0xff]
        %v4582 = vld [vmem:[#allocation4 + $0x4a] sm:$0xff]
        %v4583 = vld [vmem:[#allocation4 + $0x52] sm:$0x3f]
        %v4584 = vpack.c.bf16 %v4574, %v4574
        %v4585 = vpack.c.bf16 %v4575, %v4575
        %v4586 = vpack.c.bf16 %v4576, %v4576
        %v4587 = vpack.c.bf16 %v4577, %v4577
        %v4588 = vpack.c.bf16 %v4578, %v4578
        %v4589 = vpack.c.bf16 %v4579, %v4579
        %v4590 = vpack.c.bf16 %v4580, %v4580
        %v4591 = vpack.c.bf16 %v4581, %v4581
        %v4592 = vpack.c.bf16 %v4582, %v4582
        %v4593 = vpack.c.bf16 %v4583, %v4583
        %4604 = vrot.lane.b32.xlu0 %v4584, 48
        %v4605 = vpop.permute.xlu0 %4604
        %4606 = vrot.lane.b32.xlu0 %v4585, 48
        %v4607 = vpop.permute.xlu0 %4606
        %4608 = vrot.lane.b32.xlu0 %v4586, 48
        %v4609 = vpop.permute.xlu0 %4608
        %4610 = vrot.lane.b32.xlu0 %v4587, 48
        %v4611 = vpop.permute.xlu0 %4610
        %4612 = vrot.lane.b32.xlu0 %v4588, 48
        %v4613 = vpop.permute.xlu0 %4612
        %4614 = vrot.lane.b32.xlu0 %v4589, 48
        %v4615 = vpop.permute.xlu0 %4614
        %4616 = vrot.lane.b32.xlu0 %v4590, 48
        %v4617 = vpop.permute.xlu0 %4616
        %4618 = vrot.lane.b32.xlu0 %v4591, 48
        %v4619 = vpop.permute.xlu0 %4618
        %4620 = vrot.lane.b32.xlu0 %v4592, 48
        %v4621 = vpop.permute.xlu0 %4620
        %4622 = vrot.lane.b32.xlu0 %v4593, 48
        %v4623 = vpop.permute.xlu0 %4622
        %vm4634 = vcmask 519552
        %4635 = vst.msk [vmem:[#allocation5] sm:$0xf] %vm4634, %v4605
        %4636 = vst.msk [vmem:[#allocation5 + $0x8] sm:$0xf] %vm4634, %v4607
        %4637 = vst.msk [vmem:[#allocation5 + $0x10] sm:$0xf] %vm4634, %v4609
        %4638 = vst.msk [vmem:[#allocation5 + $0x18] sm:$0xf] %vm4634, %v4611
        %4639 = vst.msk [vmem:[#allocation5 + $0x20] sm:$0xf] %vm4634, %v4613
        %4640 = vst.msk [vmem:[#allocation5 + $0x28] sm:$0xf] %vm4634, %v4615
        %4641 = vst.msk [vmem:[#allocation5 + $0x30] sm:$0xf] %vm4634, %v4617
        %4642 = vst.msk [vmem:[#allocation5 + $0x38] sm:$0xf] %vm4634, %v4619
        %4643 = vst.msk [vmem:[#allocation5 + $0x40] sm:$0xf] %vm4634, %v4621
        %vm4644 = vcmask 518528
        %4645 = vst.msk [vmem:[#allocation5 + $0x48] sm:$0x7] %vm4644, %v4623
        %v4646 = vld [vmem:[#allocation4 + $0xb] sm:$0xff]
        %v4647 = vld [vmem:[#allocation4 + $0x13] sm:$0xff]
        %v4648 = vld [vmem:[#allocation4 + $0x1b] sm:$0xff]
        %v4649 = vld [vmem:[#allocation4 + $0x23] sm:$0xff]
        %v4650 = vld [vmem:[#allocation4 + $0x2b] sm:$0xff]
        %v4651 = vld [vmem:[#allocation4 + $0x33] sm:$0xff]
        %v4652 = vld [vmem:[#allocation4 + $0x3b] sm:$0xff]
        %v4653 = vld [vmem:[#allocation4 + $0x43] sm:$0xff]
        %v4654 = vld [vmem:[#allocation4 + $0x4b] sm:$0xff]
        %v4655 = vld [vmem:[#allocation4 + $0x53] sm:$0x3f]
        %v4656 = vpack.c.bf16 %v4646, %v4646
        %v4657 = vpack.c.bf16 %v4647, %v4647
        %v4658 = vpack.c.bf16 %v4648, %v4648
        %v4659 = vpack.c.bf16 %v4649, %v4649
        %v4660 = vpack.c.bf16 %v4650, %v4650
        %v4661 = vpack.c.bf16 %v4651, %v4651
        %v4662 = vpack.c.bf16 %v4652, %v4652
        %v4663 = vpack.c.bf16 %v4653, %v4653
        %v4664 = vpack.c.bf16 %v4654, %v4654
        %v4665 = vpack.c.bf16 %v4655, %v4655
        %4676 = vrot.lane.b32.xlu0 %v4656, 64
        %v4677 = vpop.permute.xlu0 %4676
        %4678 = vrot.lane.b32.xlu0 %v4657, 64
        %v4679 = vpop.permute.xlu0 %4678
        %4680 = vrot.lane.b32.xlu0 %v4658, 64
        %v4681 = vpop.permute.xlu0 %4680
        %4682 = vrot.lane.b32.xlu0 %v4659, 64
        %v4683 = vpop.permute.xlu0 %4682
        %4684 = vrot.lane.b32.xlu0 %v4660, 64
        %v4685 = vpop.permute.xlu0 %4684
        %4686 = vrot.lane.b32.xlu0 %v4661, 64
        %v4687 = vpop.permute.xlu0 %4686
        %4688 = vrot.lane.b32.xlu0 %v4662, 64
        %v4689 = vpop.permute.xlu0 %4688
        %4690 = vrot.lane.b32.xlu0 %v4663, 64
        %v4691 = vpop.permute.xlu0 %4690
        %4692 = vrot.lane.b32.xlu0 %v4664, 64
        %v4693 = vpop.permute.xlu0 %4692
        %4694 = vrot.lane.b32.xlu0 %v4665, 64
        %v4695 = vpop.permute.xlu0 %4694
        %vm4706 = vcmask 650752
        %4707 = vst.msk [vmem:[#allocation5] sm:$0xf] %vm4706, %v4677
        %4708 = vst.msk [vmem:[#allocation5 + $0x8] sm:$0xf] %vm4706, %v4679
        %4709 = vst.msk [vmem:[#allocation5 + $0x10] sm:$0xf] %vm4706, %v4681
        %4710 = vst.msk [vmem:[#allocation5 + $0x18] sm:$0xf] %vm4706, %v4683
        %4711 = vst.msk [vmem:[#allocation5 + $0x20] sm:$0xf] %vm4706, %v4685
        %4712 = vst.msk [vmem:[#allocation5 + $0x28] sm:$0xf] %vm4706, %v4687
        %4713 = vst.msk [vmem:[#allocation5 + $0x30] sm:$0xf] %vm4706, %v4689
        %4714 = vst.msk [vmem:[#allocation5 + $0x38] sm:$0xf] %vm4706, %v4691
        %4715 = vst.msk [vmem:[#allocation5 + $0x40] sm:$0xf] %vm4706, %v4693
        %vm4716 = vcmask 649728
        %4717 = vst.msk [vmem:[#allocation5 + $0x48] sm:$0x7] %vm4716, %v4695
        %v4718 = vld [vmem:[#allocation4 + $0xc] sm:$0xff]
        %v4719 = vld [vmem:[#allocation4 + $0x14] sm:$0xff]
        %v4720 = vld [vmem:[#allocation4 + $0x1c] sm:$0xff]
        %v4721 = vld [vmem:[#allocation4 + $0x24] sm:$0xff]
        %v4722 = vld [vmem:[#allocation4 + $0x2c] sm:$0xff]
        %v4723 = vld [vmem:[#allocation4 + $0x34] sm:$0xff]
        %v4724 = vld [vmem:[#allocation4 + $0x3c] sm:$0xff]
        %v4725 = vld [vmem:[#allocation4 + $0x44] sm:$0xff]
        %v4726 = vld [vmem:[#allocation4 + $0x4c] sm:$0xff]
        %v4727 = vld [vmem:[#allocation4 + $0x54] sm:$0x3f]
        %v4728 = vpack.c.bf16 %v4718, %v4718
        %v4729 = vpack.c.bf16 %v4719, %v4719
        %v4730 = vpack.c.bf16 %v4720, %v4720
        %v4731 = vpack.c.bf16 %v4721, %v4721
        %v4732 = vpack.c.bf16 %v4722, %v4722
        %v4733 = vpack.c.bf16 %v4723, %v4723
        %v4734 = vpack.c.bf16 %v4724, %v4724
        %v4735 = vpack.c.bf16 %v4725, %v4725
        %v4736 = vpack.c.bf16 %v4726, %v4726
        %v4737 = vpack.c.bf16 %v4727, %v4727
        %4748 = vrot.lane.b32.xlu0 %v4728, 80
        %v4749 = vpop.permute.xlu0 %4748
        %4750 = vrot.lane.b32.xlu0 %v4729, 80
        %v4751 = vpop.permute.xlu0 %4750
        %4752 = vrot.lane.b32.xlu0 %v4730, 80
        %v4753 = vpop.permute.xlu0 %4752
        %4754 = vrot.lane.b32.xlu0 %v4731, 80
        %v4755 = vpop.permute.xlu0 %4754
        %4756 = vrot.lane.b32.xlu0 %v4732, 80
        %v4757 = vpop.permute.xlu0 %4756
        %4758 = vrot.lane.b32.xlu0 %v4733, 80
        %v4759 = vpop.permute.xlu0 %4758
        %4760 = vrot.lane.b32.xlu0 %v4734, 80
        %v4761 = vpop.permute.xlu0 %4760
        %4762 = vrot.lane.b32.xlu0 %v4735, 80
        %v4763 = vpop.permute.xlu0 %4762
        %4764 = vrot.lane.b32.xlu0 %v4736, 80
        %v4765 = vpop.permute.xlu0 %4764
        %4766 = vrot.lane.b32.xlu0 %v4737, 80
        %v4767 = vpop.permute.xlu0 %4766
        %vm4778 = vcmask 781952
        %4779 = vst.msk [vmem:[#allocation5] sm:$0xf] %vm4778, %v4749
        %4780 = vst.msk [vmem:[#allocation5 + $0x8] sm:$0xf] %vm4778, %v4751
        %4781 = vst.msk [vmem:[#allocation5 + $0x10] sm:$0xf] %vm4778, %v4753
        %4782 = vst.msk [vmem:[#allocation5 + $0x18] sm:$0xf] %vm4778, %v4755
        %4783 = vst.msk [vmem:[#allocation5 + $0x20] sm:$0xf] %vm4778, %v4757
        %4784 = vst.msk [vmem:[#allocation5 + $0x28] sm:$0xf] %vm4778, %v4759
        %4785 = vst.msk [vmem:[#allocation5 + $0x30] sm:$0xf] %vm4778, %v4761
        %4786 = vst.msk [vmem:[#allocation5 + $0x38] sm:$0xf] %vm4778, %v4763
        %4787 = vst.msk [vmem:[#allocation5 + $0x40] sm:$0xf] %vm4778, %v4765
        %vm4788 = vcmask 780928
        %4789 = vst.msk [vmem:[#allocation5 + $0x48] sm:$0x7] %vm4788, %v4767
        %v4790 = vld [vmem:[#allocation4 + $0x14] sm:$0xff]
        %v4791 = vld [vmem:[#allocation4 + $0x1c] sm:$0xff]
        %v4792 = vld [vmem:[#allocation4 + $0x24] sm:$0xff]
        %v4793 = vld [vmem:[#allocation4 + $0x2c] sm:$0xff]
        %v4794 = vld [vmem:[#allocation4 + $0x34] sm:$0xff]
        %v4795 = vld [vmem:[#allocation4 + $0x3c] sm:$0xff]
        %v4796 = vld [vmem:[#allocation4 + $0x44] sm:$0xff]
        %v4797 = vld [vmem:[#allocation4 + $0x4c] sm:$0xff]
        %v4798 = vld [vmem:[#allocation4 + $0x54] sm:$0xff]
        %v4799 = vld [vmem:[#allocation4 + $0x5c] sm:$0x3f]
        %v4800 = vpack.c.bf16 %v4790, %v4790
        %v4801 = vpack.c.bf16 %v4791, %v4791
        %v4802 = vpack.c.bf16 %v4792, %v4792
        %v4803 = vpack.c.bf16 %v4793, %v4793
        %v4804 = vpack.c.bf16 %v4794, %v4794
        %v4805 = vpack.c.bf16 %v4795, %v4795
        %v4806 = vpack.c.bf16 %v4796, %v4796
        %v4807 = vpack.c.bf16 %v4797, %v4797
        %v4808 = vpack.c.bf16 %v4798, %v4798
        %v4809 = vpack.c.bf16 %v4799, %v4799
        %4820 = vrot.lane.b32.xlu0 %v4800, 96
        %v4821 = vpop.permute.xlu0 %4820
        %4822 = vrot.lane.b32.xlu0 %v4801, 96
        %v4823 = vpop.permute.xlu0 %4822
        %4824 = vrot.lane.b32.xlu0 %v4802, 96
        %v4825 = vpop.permute.xlu0 %4824
        %4826 = vrot.lane.b32.xlu0 %v4803, 96
        %v4827 = vpop.permute.xlu0 %4826
        %4828 = vrot.lane.b32.xlu0 %v4804, 96
        %v4829 = vpop.permute.xlu0 %4828
        %4830 = vrot.lane.b32.xlu0 %v4805, 96
        %v4831 = vpop.permute.xlu0 %4830
        %4832 = vrot.lane.b32.xlu0 %v4806, 96
        %v4833 = vpop.permute.xlu0 %4832
        %4834 = vrot.lane.b32.xlu0 %v4807, 96
        %v4835 = vpop.permute.xlu0 %4834
        %4836 = vrot.lane.b32.xlu0 %v4808, 96
        %v4837 = vpop.permute.xlu0 %4836
        %4838 = vrot.lane.b32.xlu0 %v4809, 96
        %v4839 = vpop.permute.xlu0 %4838
        %vm4850 = vcmask 913152
        %4851 = vst.msk [vmem:[#allocation5] sm:$0xf] %vm4850, %v4821
        %4852 = vst.msk [vmem:[#allocation5 + $0x8] sm:$0xf] %vm4850, %v4823
        %4853 = vst.msk [vmem:[#allocation5 + $0x10] sm:$0xf] %vm4850, %v4825
        %4854 = vst.msk [vmem:[#allocation5 + $0x18] sm:$0xf] %vm4850, %v4827
        %4855 = vst.msk [vmem:[#allocation5 + $0x20] sm:$0xf] %vm4850, %v4829
        %4856 = vst.msk [vmem:[#allocation5 + $0x28] sm:$0xf] %vm4850, %v4831
        %4857 = vst.msk [vmem:[#allocation5 + $0x30] sm:$0xf] %vm4850, %v4833
        %4858 = vst.msk [vmem:[#allocation5 + $0x38] sm:$0xf] %vm4850, %v4835
        %4859 = vst.msk [vmem:[#allocation5 + $0x40] sm:$0xf] %vm4850, %v4837
        %vm4860 = vcmask 912128
        %4861 = vst.msk [vmem:[#allocation5 + $0x48] sm:$0x7] %vm4860, %v4839
        %v4862 = vld [vmem:[#allocation4 + $0x15] sm:$0xff]
        %v4863 = vld [vmem:[#allocation4 + $0x1d] sm:$0xff]
        %v4864 = vld [vmem:[#allocation4 + $0x25] sm:$0xff]
        %v4865 = vld [vmem:[#allocation4 + $0x2d] sm:$0xff]
        %v4866 = vld [vmem:[#allocation4 + $0x35] sm:$0xff]
        %v4867 = vld [vmem:[#allocation4 + $0x3d] sm:$0xff]
        %v4868 = vld [vmem:[#allocation4 + $0x45] sm:$0xff]
        %v4869 = vld [vmem:[#allocation4 + $0x4d] sm:$0xff]
        %v4870 = vld [vmem:[#allocation4 + $0x55] sm:$0xff]
        %v4871 = vld [vmem:[#allocation4 + $0x5d] sm:$0x3f]
        %v4872 = vpack.c.bf16 %v4862, %v4862
        %v4873 = vpack.c.bf16 %v4863, %v4863
        %v4874 = vpack.c.bf16 %v4864, %v4864
        %v4875 = vpack.c.bf16 %v4865, %v4865
        %v4876 = vpack.c.bf16 %v4866, %v4866
        %v4877 = vpack.c.bf16 %v4867, %v4867
        %v4878 = vpack.c.bf16 %v4868, %v4868
        %v4879 = vpack.c.bf16 %v4869, %v4869
        %v4880 = vpack.c.bf16 %v4870, %v4870
        %v4881 = vpack.c.bf16 %v4871, %v4871
        %4892 = vrot.lane.b32.xlu0 %v4872, 112
        %v4893 = vpop.permute.xlu0 %4892
        %4894 = vrot.lane.b32.xlu0 %v4873, 112
        %v4895 = vpop.permute.xlu0 %4894
        %4896 = vrot.lane.b32.xlu0 %v4874, 112
        %v4897 = vpop.permute.xlu0 %4896
        %4898 = vrot.lane.b32.xlu0 %v4875, 112
        %v4899 = vpop.permute.xlu0 %4898
        %4900 = vrot.lane.b32.xlu0 %v4876, 112
        %v4901 = vpop.permute.xlu0 %4900
        %4902 = vrot.lane.b32.xlu0 %v4877, 112
        %v4903 = vpop.permute.xlu0 %4902
        %4904 = vrot.lane.b32.xlu0 %v4878, 112
        %v4905 = vpop.permute.xlu0 %4904
        %4906 = vrot.lane.b32.xlu0 %v4879, 112
        %v4907 = vpop.permute.xlu0 %4906
        %4908 = vrot.lane.b32.xlu0 %v4880, 112
        %v4909 = vpop.permute.xlu0 %4908
        %4910 = vrot.lane.b32.xlu0 %v4881, 112
        %v4911 = vpop.permute.xlu0 %4910
        %vm4922 = vcmask 1044352
        %4923 = vst.msk [vmem:[#allocation5] sm:$0xf] %vm4922, %v4893
        %4924 = vst.msk [vmem:[#allocation5 + $0x8] sm:$0xf] %vm4922, %v4895
        %4925 = vst.msk [vmem:[#allocation5 + $0x10] sm:$0xf] %vm4922, %v4897
        %4926 = vst.msk [vmem:[#allocation5 + $0x18] sm:$0xf] %vm4922, %v4899
        %4927 = vst.msk [vmem:[#allocation5 + $0x20] sm:$0xf] %vm4922, %v4901
        %4928 = vst.msk [vmem:[#allocation5 + $0x28] sm:$0xf] %vm4922, %v4903
        %4929 = vst.msk [vmem:[#allocation5 + $0x30] sm:$0xf] %vm4922, %v4905
        %4930 = vst.msk [vmem:[#allocation5 + $0x38] sm:$0xf] %vm4922, %v4907
        %4931 = vst.msk [vmem:[#allocation5 + $0x40] sm:$0xf] %vm4922, %v4909
        %vm4932 = vcmask 1043328
        %4933 = vst.msk [vmem:[#allocation5 + $0x48] sm:$0x7] %vm4932, %v4911
        %v4934 = vld [vmem:[#allocation4 + $0x16] sm:$0xff]
        %v4935 = vld [vmem:[#allocation4 + $0x1e] sm:$0xff]
        %v4936 = vld [vmem:[#allocation4 + $0x26] sm:$0xff]
        %v4937 = vld [vmem:[#allocation4 + $0x2e] sm:$0xff]
        %v4938 = vld [vmem:[#allocation4 + $0x36] sm:$0xff]
        %v4939 = vld [vmem:[#allocation4 + $0x3e] sm:$0xff]
        %v4940 = vld [vmem:[#allocation4 + $0x46] sm:$0xff]
        %v4941 = vld [vmem:[#allocation4 + $0x4e] sm:$0xff]
        %v4942 = vld [vmem:[#allocation4 + $0x56] sm:$0xff]
        %v4943 = vld [vmem:[#allocation4 + $0x5e] sm:$0x3f]
        %v4944 = vpack.c.bf16 %v4934, %v4934
        %v4945 = vpack.c.bf16 %v4935, %v4935
        %v4946 = vpack.c.bf16 %v4936, %v4936
        %v4947 = vpack.c.bf16 %v4937, %v4937
        %v4948 = vpack.c.bf16 %v4938, %v4938
        %v4949 = vpack.c.bf16 %v4939, %v4939
        %v4950 = vpack.c.bf16 %v4940, %v4940
        %v4951 = vpack.c.bf16 %v4941, %v4941
        %v4952 = vpack.c.bf16 %v4942, %v4942
        %v4953 = vpack.c.bf16 %v4943, %v4943
        %4954 = vst.msk [vmem:[#allocation5 + $0x4] sm:$0xf] %vm4418, %v4944
        %4955 = vst.msk [vmem:[#allocation5 + $0xc] sm:$0xf] %vm4418, %v4945
        %4956 = vst.msk [vmem:[#allocation5 + $0x14] sm:$0xf] %vm4418, %v4946
        %4957 = vst.msk [vmem:[#allocation5 + $0x1c] sm:$0xf] %vm4418, %v4947
        %4958 = vst.msk [vmem:[#allocation5 + $0x24] sm:$0xf] %vm4418, %v4948
        %4959 = vst.msk [vmem:[#allocation5 + $0x2c] sm:$0xf] %vm4418, %v4949
        %4960 = vst.msk [vmem:[#allocation5 + $0x34] sm:$0xf] %vm4418, %v4950
        %4961 = vst.msk [vmem:[#allocation5 + $0x3c] sm:$0xf] %vm4418, %v4951
        %4962 = vst.msk [vmem:[#allocation5 + $0x44] sm:$0xf] %vm4418, %v4952
        %4963 = vst.msk [vmem:[#allocation5 + $0x4c] sm:$0x7] %vm4428, %v4953
        %v4964 = vld [vmem:[#allocation5] sm:$0xff]
        %v4965 = vld [vmem:[#allocation5 + $0x8] sm:$0xff]
        %v4966 = vld [vmem:[#allocation5 + $0x10] sm:$0xff]
        %v4967 = vld [vmem:[#allocation5 + $0x18] sm:$0xff]
        %v4968 = vld [vmem:[#allocation5 + $0x20] sm:$0xff]
        %v4969 = vld [vmem:[#allocation5 + $0x28] sm:$0xff]
        %v4970 = vld [vmem:[#allocation5 + $0x30] sm:$0xff]
        %v4971 = vld [vmem:[#allocation5 + $0x38] sm:$0xff]
        %v4972 = vld [vmem:[#allocation5 + $0x40] sm:$0xff]
        %v4973 = vld [vmem:[#allocation5 + $0x48] sm:$0x77]
        %v4974 = vld [vmem:[%s3] sm:$0xf]
        %v4975 = vld [vmem:[%s3 + $0x4] sm:$0xf]
        %v4976 = vld [vmem:[%s3 + $0x8] sm:$0xf]
        %v4977 = vld [vmem:[%s3 + $0xc] sm:$0xf]
        %v4978 = vld [vmem:[%s3 + $0x10] sm:$0xf]
        %v4979 = vld [vmem:[%s3 + $0x14] sm:$0xf]
        %v4980 = vld [vmem:[%s3 + $0x18] sm:$0xf]
        %v4981 = vld [vmem:[%s3 + $0x1c] sm:$0xf]
        %v4982 = vld [vmem:[%s3 + $0x20] sm:$0xf]
        %v4983 = vld [vmem:[%s3 + $0x24] sm:$0xf]
        %v4984 = vld [vmem:[%s3 + $0x28] sm:$0xf]
        %v4985 = vld [vmem:[%s3 + $0x2c] sm:$0xf]
        %v4986 = vld [vmem:[%s3 + $0x30] sm:$0xf]
        %v4987 = vld [vmem:[%s3 + $0x34] sm:$0xf]
        %v4988 = vld [vmem:[%s3 + $0x38] sm:$0xf]
        %v4989 = vld [vmem:[%s3 + $0x3c] sm:$0xf]
        %v4990 = vld [vmem:[%s3 + $0x40] sm:$0xf]
        %v4991 = vld [vmem:[%s3 + $0x44] sm:$0xf]
        %v4992 = vld [vmem:[%s4] sm:$0x1]
        %v4994 = vperm.slane %v4992, 0
        %v5006 = vunpack.c.l.b16 %v4964
        %v5007 = vunpack.c.h.b16 %v4964
        %v5008 = vunpack.c.l.b16 %v4965
        %v5009 = vunpack.c.h.b16 %v4965
        %v5010 = vunpack.c.l.b16 %v4966
        %v5011 = vunpack.c.h.b16 %v4966
        %v5012 = vunpack.c.l.b16 %v4967
        %v5013 = vunpack.c.h.b16 %v4967
        %v5014 = vunpack.c.l.b16 %v4968
        %v5015 = vunpack.c.h.b16 %v4968
        %v5016 = vunpack.c.l.b16 %v4969
        %v5017 = vunpack.c.h.b16 %v4969
        %v5018 = vunpack.c.l.b16 %v4970
        %v5019 = vunpack.c.h.b16 %v4970
        %v5020 = vunpack.c.l.b16 %v4971
        %v5021 = vunpack.c.h.b16 %v4971
        %v5022 = vunpack.c.l.b16 %v4972
        %v5023 = vunpack.c.h.b16 %v4972
        %v5024 = vunpack.c.l.b16 %v4973
        %v5025 = vunpack.c.h.b16 %v4973
        %v5026 = vpack.c.b16 %v5008, %v5006
        %v5027 = vpack.c.b16 %v5009, %v5007
        %v5028 = vpack.c.b16 %v5012, %v5010
        %v5029 = vpack.c.b16 %v5013, %v5011
        %v5030 = vpack.c.b16 %v5016, %v5014
        %v5031 = vpack.c.b16 %v5017, %v5015
        %v5032 = vpack.c.b16 %v5020, %v5018
        %v5033 = vpack.c.b16 %v5021, %v5019
        %v5034 = vpack.c.b16 %v5024, %v5022
        %v5035 = vpack.c.b16 %v5025, %v5023
        %v5059 = vunpack.c.l.b16 %v4974
        %v5060 = vunpack.c.l.b16 %v4975
        %v5061 = vunpack.c.l.b16 %v4976
        %v5062 = vunpack.c.l.b16 %v4977
        %v5063 = vunpack.c.l.b16 %v4978
        %v5064 = vunpack.c.l.b16 %v4979
        %v5065 = vunpack.c.l.b16 %v4980
        %v5066 = vunpack.c.l.b16 %v4981
        %v5067 = vunpack.c.l.b16 %v4982
        %v5068 = vunpack.c.l.b16 %v4983
        %v5069 = vunpack.c.l.b16 %v4984
        %v5070 = vunpack.c.l.b16 %v4985
        %v5071 = vunpack.c.l.b16 %v4986
        %v5072 = vunpack.c.l.b16 %v4987
        %v5073 = vunpack.c.l.b16 %v4988
        %v5074 = vunpack.c.l.b16 %v4989
        %v5075 = vunpack.c.l.b16 %v4990
        %v5076 = vunpack.c.l.b16 %v4991
        %v5077 = vpack.c.b16 %v5060, %v5059
        %v5078 = vpack.c.b16 %v5062, %v5061
        %v5079 = vpack.c.b16 %v5064, %v5063
        %v5080 = vpack.c.b16 %v5066, %v5065
        %v5081 = vpack.c.b16 %v5068, %v5067
        %v5082 = vpack.c.b16 %v5070, %v5069
        %v5083 = vpack.c.b16 %v5072, %v5071
        %v5084 = vpack.c.b16 %v5074, %v5073
        %v5085 = vpack.c.b16 %v5076, %v5075
        %v5096 = vsel %vm4101, %v5027, 0
        %v5099 = vsel %vm4101, %v5029, 0
        %v5102 = vsel %vm4101, %v5031, 0
        %v5105 = vsel %vm4101, %v5033, 0
        %v5108 = vsel %vm4101, %v5035, 0
        %5110 = vmatpush.bf16.msra.mxu0 %v5084
        %5111 = vmatpush.bf16.msra.mxu0 %v5083
        %5112 = vmatpush.bf16.msra.mxu0 %v5082
        %5113 = vmatpush.bf16.msra.mxu0 %v5081
        %5114 = vmatpush.bf16.msra.mxu0 %v5080
        %5115 = vmatpush.bf16.msra.mxu0 %v5079
        %5116 = vmatpush.bf16.msra.mxu0 %v5078
        %5117 = vmatpush.bf16.msra.mxu0 %v5077
        %5118 = vmatmul.bf16.gmra.mxu0 %v5026
        %v5119 = vpop.f32.mrf.mxu0
        %v5120 = vadd.f32 %v4994, %v5119
        %v5121 = vpop.f32.mrf.mxu0
        %v5122 = vadd.f32 %v4994, %v5121
        %5123 = vmatmul.bf16.gmra.mxu0 %v5028
        %v5124 = vpop.f32.mrf.mxu0
        %v5125 = vadd.f32 %v4994, %v5124
        %v5126 = vpop.f32.mrf.mxu0
        %v5127 = vadd.f32 %v4994, %v5126
        %5128 = vmatmul.bf16.gmra.mxu0 %v5030
        %v5129 = vpop.f32.mrf.mxu0
        %v5130 = vadd.f32 %v4994, %v5129
        %v5131 = vpop.f32.mrf.mxu0
        %v5132 = vadd.f32 %v4994, %v5131
        %5133 = vmatmul.bf16.gmra.mxu0 %v5032
        %v5134 = vpop.f32.mrf.mxu0
        %v5135 = vadd.f32 %v4994, %v5134
        %v5136 = vpop.f32.mrf.mxu0
        %v5137 = vadd.f32 %v4994, %v5136
        %5138 = vmatmul.bf16.gmra.mxu0 %v5034
        %v5139 = vpop.f32.mrf.mxu0
        %v5140 = vadd.f32 %v4994, %v5139
        %v5141 = vpop.f32.mrf.mxu0
        %v5142 = vadd.f32 %v4994, %v5141
        %5143 = vdwg.mxu0
        %5144 = vmatpush.bf16.msra.mxu0 0
        %5145 = vmatpush.bf16.msra.mxu0 0
        %5146 = vmatpush.bf16.msra.mxu0 0
        %5147 = vmatpush.bf16.msra.mxu0 0
        %5148 = vmatpush.bf16.msra.mxu0 0
        %5149 = vmatpush.bf16.msra.mxu0 0
        %5150 = vmatpush.bf16.msra.mxu0 0
        %5151 = vmatpush.bf16.msra.mxu0 %v5085
        %5152 = vmatmul.bf16.gmra.mxu0 %v5096
        %v5153 = vpop.f32.mrf.mxu0
        %v5154 = vadd.f32 %v5120, %v5153
        %v5155 = vpop.f32.mrf.mxu0
        %v5156 = vadd.f32 %v5122, %v5155
        %5157 = vmatmul.bf16.gmra.mxu0 %v5099
        %v5158 = vpop.f32.mrf.mxu0
        %v5159 = vadd.f32 %v5125, %v5158
        %v5160 = vpop.f32.mrf.mxu0
        %v5161 = vadd.f32 %v5127, %v5160
        %5162 = vmatmul.bf16.gmra.mxu0 %v5102
        %v5163 = vpop.f32.mrf.mxu0
        %v5164 = vadd.f32 %v5130, %v5163
        %v5165 = vpop.f32.mrf.mxu0
        %v5166 = vadd.f32 %v5132, %v5165
        %5167 = vmatmul.bf16.gmra.mxu0 %v5105
        %v5168 = vpop.f32.mrf.mxu0
        %v5169 = vadd.f32 %v5135, %v5168
        %v5170 = vpop.f32.mrf.mxu0
        %v5171 = vadd.f32 %v5137, %v5170
        %5172 = vmatmul.bf16.gmra.mxu0 %v5108
        %v5173 = vpop.f32.mrf.mxu0
        %v5174 = vadd.f32 %v5140, %v5173
        %v5175 = vpop.f32.mrf.mxu0
        %v5176 = vadd.f32 %v5142, %v5175
        %5177 = vdwg.mxu0
        %v5178 = vmax.f32 %v5154, 0.0
        %v5179 = vmax.f32 %v5156, 0.0
        %v5180 = vmax.f32 %v5159, 0.0
        %v5181 = vmax.f32 %v5161, 0.0
        %v5182 = vmax.f32 %v5164, 0.0
        %v5183 = vmax.f32 %v5166, 0.0
        %v5184 = vmax.f32 %v5169, 0.0
        %v5185 = vmax.f32 %v5171, 0.0
        %v5186 = vmax.f32 %v5174, 0.0
        %v5187 = vmax.f32 %v5176, 0.0
        %vm5188 = vcmask 261120
        %5189 = vst.msk [vmem:[#allocation6] sm:$0xff] %vm5188, %v5178
        %5190 = vst.msk [vmem:[#allocation6 + $0x8] sm:$0xff] %vm5188, %v5179
        %5191 = vst.msk [vmem:[#allocation6 + $0x10] sm:$0xff] %vm5188, %v5180
        %5192 = vst.msk [vmem:[#allocation6 + $0x18] sm:$0xff] %vm5188, %v5181
        %5193 = vst.msk [vmem:[#allocation6 + $0x20] sm:$0xff] %vm5188, %v5182
        %5194 = vst.msk [vmem:[#allocation6 + $0x28] sm:$0xff] %vm5188, %v5183
        %5195 = vst.msk [vmem:[#allocation6 + $0x30] sm:$0xff] %vm5188, %v5184
        %5196 = vst.msk [vmem:[#allocation6 + $0x38] sm:$0xff] %vm5188, %v5185
        %5197 = vst.msk [vmem:[#allocation6 + $0x40] sm:$0xff] %vm5188, %v5186
        %vm5198 = vcmask 259072
        %5199 = vst.msk [vmem:[#allocation6 + $0x48] sm:$0x3f] %vm5198, %v5187
        %v5200 = vld [vmem:[#allocation6] ss:$2 sm:$0xf]
        %s5201 = scalar_lea.vmem [#allocation6], 1
        %v5202 = vld [vmem:[%s5201] ss:$2 sm:$0xf]
        %s5203 = scalar_lea.vmem [#allocation6], 10
        %v5204 = vld [vmem:[%s5203] ss:$2 sm:$0xf]
        %s5205 = scalar_lea.vmem [#allocation6], 11
        %v5206 = vld [vmem:[%s5205] ss:$2 sm:$0xf]
        %v5207 = vmax.f32 %v5200, %v5202
        %v5208 = vmax.f32 %v5204, %v5206
        %v5209 = vmax.f32 %v5207, %v5208
        %vm5210 = vcmask 257024
        %5211 = vst.msk [vmem:[#allocation7] sm:$0xf] %vm5210, %v5209
        %s5212 = scalar_lea.vmem [#allocation6], 20
        %v5213 = vld [vmem:[%s5212] ss:$2 sm:$0xf]
        %s5214 = scalar_lea.vmem [#allocation6], 21
        %v5215 = vld [vmem:[%s5214] ss:$2 sm:$0xf]
        %s5216 = scalar_lea.vmem [#allocation6], 30
        %v5217 = vld [vmem:[%s5216] ss:$2 sm:$0xf]
        %s5218 = scalar_lea.vmem [#allocation6], 31
        %v5219 = vld [vmem:[%s5218] ss:$2 sm:$0xf]
        %v5220 = vmax.f32 %v5213, %v5215
        %v5221 = vmax.f32 %v5217, %v5219
        %v5222 = vmax.f32 %v5220, %v5221
        %5223 = vst.msk [vmem:[#allocation7 + $0x4] sm:$0xf] %vm5210, %v5222
        %s5224 = scalar_lea.vmem [#allocation6], 40
        %v5225 = vld [vmem:[%s5224] ss:$2 sm:$0xf]
        %s5226 = scalar_lea.vmem [#allocation6], 41
        %v5227 = vld [vmem:[%s5226] ss:$2 sm:$0xf]
        %s5228 = scalar_lea.vmem [#allocation6], 50
        %v5229 = vld [vmem:[%s5228] ss:$2 sm:$0xf]
        %s5230 = scalar_lea.vmem [#allocation6], 51
        %v5231 = vld [vmem:[%s5230] ss:$2 sm:$0xf]
        %v5232 = vmax.f32 %v5225, %v5227
        %v5233 = vmax.f32 %v5229, %v5231
        %v5234 = vmax.f32 %v5232, %v5233
        %5235 = vst.msk [vmem:[#allocation7 + $0x8] sm:$0xf] %vm5210, %v5234
        %s5236 = scalar_lea.vmem [#allocation6], 60
        %v5237 = vld [vmem:[%s5236] ss:$2 sm:$0xf]
        %s5238 = scalar_lea.vmem [#allocation6], 61
        %v5239 = vld [vmem:[%s5238] ss:$2 sm:$0xf]
        %s5240 = scalar_lea.vmem [#allocation6], 70
        %v5241 = vld [vmem:[%s5240] ss:$2 sm:$0xf]
        %s5242 = scalar_lea.vmem [#allocation6], 71
        %v5243 = vld [vmem:[%s5242] ss:$2 sm:$0xf]
        %v5244 = vmax.f32 %v5237, %v5239
        %v5245 = vmax.f32 %v5241, %v5243
        %v5246 = vmax.f32 %v5244, %v5245
        %5247 = vst.msk [vmem:[#allocation7 + $0xc] sm:$0xf] %vm5210, %v5246
        %v5248 = vld [vmem:[#allocation7] sm:$0x3f]
        %v5249 = vpack.c.bf16 %v5248, %v5248
        %vm5250 = vcmask 256000
        %5251 = vst.msk [vmem:[#allocation8] sm:$0x7] %vm5250, %v5249
        %v5252 = vld [vmem:[#allocation7 + $0x1] sm:$0x3f]
        %v5253 = vpack.c.bf16 %v5252, %v5252
        %5255 = vrot.lane.b32.xlu0 %v5253, 32
        %v5256 = vpop.permute.xlu0 %5255
        %vm5258 = vcmask 518400
        %5259 = vst.msk [vmem:[#allocation8] sm:$0x7] %vm5258, %v5256
        %v5260 = vld [vmem:[#allocation7 + $0x2] sm:$0x3f]
        %v5261 = vpack.c.bf16 %v5260, %v5260
        %5263 = vrot.lane.b32.xlu0 %v5261, 64
        %v5264 = vpop.permute.xlu0 %5263
        %vm5266 = vcmask 780800
        %5267 = vst.msk [vmem:[#allocation8] sm:$0x7] %vm5266, %v5264
        %v5268 = vld [vmem:[#allocation7 + $0x4] sm:$0x3f]
        %v5269 = vpack.c.bf16 %v5268, %v5268
        %5271 = vrot.lane.b32.xlu0 %v5269, 96
        %v5272 = vpop.permute.xlu0 %5271
        %vm5274 = vcmask 1043200
        %5275 = vst.msk [vmem:[#allocation8] sm:$0x7] %vm5274, %v5272
        %v5276 = vld [vmem:[#allocation7 + $0x5] sm:$0x3f]
        %v5277 = vpack.c.bf16 %v5276, %v5276
        %5278 = vst.msk [vmem:[#allocation8 + $0x4] sm:$0x7] %vm5250, %v5277
        %v5279 = vld [vmem:[#allocation7 + $0x6] sm:$0x3f]
        %v5280 = vpack.c.bf16 %v5279, %v5279
        %5282 = vrot.lane.b32.xlu0 %v5280, 32
        %v5283 = vpop.permute.xlu0 %5282
        %5285 = vst.msk [vmem:[#allocation8 + $0x4] sm:$0x7] %vm5258, %v5283
        %v5286 = vld [vmem:[#allocation7 + $0x8] sm:$0x3f]
        %v5287 = vpack.c.bf16 %v5286, %v5286
        %5289 = vrot.lane.b32.xlu0 %v5287, 64
        %v5290 = vpop.permute.xlu0 %5289
        %5292 = vst.msk [vmem:[#allocation8 + $0x4] sm:$0x7] %vm5266, %v5290
        %v5293 = vld [vmem:[#allocation7 + $0x9] sm:$0x3f]
        %v5294 = vpack.c.bf16 %v5293, %v5293
        %5296 = vrot.lane.b32.xlu0 %v5294, 96
        %v5297 = vpop.permute.xlu0 %5296
        %5299 = vst.msk [vmem:[#allocation8 + $0x4] sm:$0x7] %vm5274, %v5297
        %v5300 = vld [vmem:[#allocation7 + $0xa] sm:$0x3f]
        %v5301 = vpack.c.bf16 %v5300, %v5300
        %5302 = vst.msk [vmem:[#allocation8 + $0x8] sm:$0x7] %vm5250, %v5301
        %v5303 = vld [vmem:[#allocation8] sm:$0x77]
        %v5304 = vld [vmem:[#allocation8 + $0x8] sm:$0x7]
        %v5305 = vld [vmem:[%s5] sm:$0xf]
        %v5306 = vld [vmem:[%s5 + $0x4] sm:$0xf]
        %v5307 = vld [vmem:[%s5 + $0x8] sm:$0xf]
        %v5308 = vld [vmem:[%s5 + $0xc] sm:$0xf]
        %v5309 = vld [vmem:[%s5 + $0x10] sm:$0xf]
        %v5310 = vld [vmem:[%s5 + $0x14] sm:$0xf]
        %v5311 = vld [vmem:[%s5 + $0x18] sm:$0xf]
        %v5312 = vld [vmem:[%s5 + $0x1c] sm:$0xf]
        %v5313 = vld [vmem:[%s5 + $0x20] sm:$0xf]
        %v5314 = vld [vmem:[%s5 + $0x24] sm:$0xf]
        %v5315 = vld [vmem:[%s5 + $0x28] sm:$0xf]
        %v5316 = vld [vmem:[%s5 + $0x2c] sm:$0xf]
        %v5317 = vld [vmem:[%s5 + $0x30] sm:$0xf]
        %v5318 = vld [vmem:[%s5 + $0x34] sm:$0xf]
        %v5319 = vld [vmem:[%s5 + $0x38] sm:$0xf]
        %v5320 = vld [vmem:[%s5 + $0x3c] sm:$0xf]
        %v5321 = vld [vmem:[%s5 + $0x40] sm:$0xf]
        %v5322 = vld [vmem:[%s5 + $0x44] sm:$0xf]
        %v5323 = vld [vmem:[%s5 + $0x48] sm:$0xf]
        %v5324 = vld [vmem:[%s5 + $0x4c] sm:$0xf]
        %v5325 = vld [vmem:[%s5 + $0x50] sm:$0xf]
        %v5326 = vld [vmem:[%s5 + $0x54] sm:$0xf]
        %v5327 = vld [vmem:[%s5 + $0x58] sm:$0xf]
        %v5328 = vld [vmem:[%s5 + $0x5c] sm:$0xf]
        %v5329 = vld [vmem:[%s5 + $0x60] sm:$0xf]
        %v5330 = vld [vmem:[%s5 + $0x64] sm:$0xf]
        %v5331 = vld [vmem:[%s5 + $0x68] sm:$0xf]
        %v5332 = vld [vmem:[%s5 + $0x6c] sm:$0xf]
        %v5333 = vld [vmem:[%s5 + $0x70] sm:$0xf]
        %v5334 = vld [vmem:[%s5 + $0x74] sm:$0xf]
        %v5335 = vld [vmem:[%s5 + $0x78] sm:$0xf]
        %v5336 = vld [vmem:[%s5 + $0x7c] sm:$0xf]
        %v5337 = vld [vmem:[%s5 + $0x80] sm:$0xf]
        %v5338 = vld [vmem:[%s5 + $0x84] sm:$0xf]
        %v5339 = vld [vmem:[%s5 + $0x88] sm:$0xf]
        %v5340 = vld [vmem:[%s5 + $0x8c] sm:$0xf]
        %v5341 = vld [vmem:[%s6] sm:$0x1]
        %v5343 = vperm.slane %v5341, 0
        %v5347 = vunpack.c.l.b16 %v5303
        %v5348 = vunpack.c.h.b16 %v5303
        %v5349 = vunpack.c.l.b16 %v5304
        %v5350 = vpack.c.b16 %v5347, %v5347
        %v5351 = vpack.c.b16 %v5348, %v5348
        %v5352 = vpack.c.b16 %v5349, %v5349
        %v5391 = vunpack.c.l.b16 %v5305
        %v5392 = vunpack.c.l.b16 %v5306
        %v5393 = vunpack.c.l.b16 %v5307
        %v5394 = vunpack.c.l.b16 %v5308
        %v5395 = vunpack.c.l.b16 %v5309
        %v5396 = vunpack.c.l.b16 %v5310
        %v5397 = vunpack.c.l.b16 %v5311
        %v5398 = vunpack.c.l.b16 %v5312
        %v5399 = vunpack.c.l.b16 %v5313
        %v5400 = vunpack.c.l.b16 %v5314
        %v5401 = vunpack.c.l.b16 %v5315
        %v5402 = vunpack.c.l.b16 %v5316
        %v5403 = vunpack.c.l.b16 %v5317
        %v5404 = vunpack.c.l.b16 %v5318
        %v5405 = vunpack.c.l.b16 %v5319
        %v5406 = vunpack.c.l.b16 %v5320
        %v5407 = vunpack.c.l.b16 %v5321
        %v5408 = vunpack.c.l.b16 %v5322
        %v5409 = vunpack.c.l.b16 %v5323
        %v5410 = vunpack.c.l.b16 %v5324
        %v5411 = vunpack.c.l.b16 %v5325
        %v5412 = vunpack.c.l.b16 %v5326
        %v5413 = vunpack.c.l.b16 %v5327
        %v5414 = vunpack.c.l.b16 %v5328
        %v5415 = vunpack.c.l.b16 %v5329
        %v5416 = vunpack.c.l.b16 %v5330
        %v5417 = vunpack.c.l.b16 %v5331
        %v5418 = vunpack.c.l.b16 %v5332
        %v5419 = vunpack.c.l.b16 %v5333
        %v5420 = vunpack.c.l.b16 %v5334
        %v5421 = vunpack.c.l.b16 %v5335
        %v5422 = vunpack.c.l.b16 %v5336
        %v5423 = vunpack.c.l.b16 %v5337
        %v5424 = vunpack.c.l.b16 %v5338
        %v5425 = vunpack.c.l.b16 %v5339
        %v5426 = vunpack.c.l.b16 %v5340
        %v5427 = vpack.c.b16 %v5392, %v5391
        %v5428 = vpack.c.b16 %v5394, %v5393
        %v5429 = vpack.c.b16 %v5396, %v5395
        %v5430 = vpack.c.b16 %v5398, %v5397
        %v5431 = vpack.c.b16 %v5400, %v5399
        %v5432 = vpack.c.b16 %v5402, %v5401
        %v5433 = vpack.c.b16 %v5404, %v5403
        %v5434 = vpack.c.b16 %v5406, %v5405
        %v5435 = vpack.c.b16 %v5408, %v5407
        %v5436 = vpack.c.b16 %v5410, %v5409
        %v5437 = vpack.c.b16 %v5412, %v5411
        %v5438 = vpack.c.b16 %v5414, %v5413
        %v5439 = vpack.c.b16 %v5416, %v5415
        %v5440 = vpack.c.b16 %v5418, %v5417
        %v5441 = vpack.c.b16 %v5420, %v5419
        %v5442 = vpack.c.b16 %v5422, %v5421
        %v5443 = vpack.c.b16 %v5424, %v5423
        %v5444 = vpack.c.b16 %v5426, %v5425
        %v5464 = vsel %vm5188, %v5352, 0
        %5466 = vmatpush.bf16.msra.mxu0 %v5434
        %5467 = vmatpush.bf16.msra.mxu0 %v5433
        %5468 = vmatpush.bf16.msra.mxu0 %v5432
        %5469 = vmatpush.bf16.msra.mxu0 %v5431
        %5470 = vmatpush.bf16.msra.mxu0 %v5430
        %5471 = vmatpush.bf16.msra.mxu0 %v5429
        %5472 = vmatpush.bf16.msra.mxu0 %v5428
        %5473 = vmatpush.bf16.msra.mxu0 %v5427
        %5474 = vmatmul.bf16.gmra.mxu0 %v5350
        %v5475 = vpop.f32.mrf.mxu0
        %v5476 = vadd.f32 %v5343, %v5475
        %v5477 = vpop.f32.mrf.mxu0
        %5478 = vdwg.mxu0
        %5479 = vmatpush.bf16.msra.mxu0 %v5442
        %5480 = vmatpush.bf16.msra.mxu0 %v5441
        %5481 = vmatpush.bf16.msra.mxu0 %v5440
        %5482 = vmatpush.bf16.msra.mxu0 %v5439
        %5483 = vmatpush.bf16.msra.mxu0 %v5438
        %5484 = vmatpush.bf16.msra.mxu0 %v5437
        %5485 = vmatpush.bf16.msra.mxu0 %v5436
        %5486 = vmatpush.bf16.msra.mxu0 %v5435
        %5487 = vmatmul.bf16.gmra.mxu0 %v5351
        %v5488 = vpop.f32.mrf.mxu0
        %v5489 = vadd.f32 %v5476, %v5488
        %v5490 = vpop.f32.mrf.mxu0
        %5491 = vdwg.mxu0
        %5492 = vmatpush.bf16.msra.mxu0 0
        %5493 = vmatpush.bf16.msra.mxu0 0
        %5494 = vmatpush.bf16.msra.mxu0 0
        %5495 = vmatpush.bf16.msra.mxu0 0
        %5496 = vmatpush.bf16.msra.mxu0 0
        %5497 = vmatpush.bf16.msra.mxu0 0
        %5498 = vmatpush.bf16.msra.mxu0 %v5444
        %5499 = vmatpush.bf16.msra.mxu0 %v5443
        %5500 = vmatmul.bf16.gmra.mxu0 %v5464
        %v5501 = vpop.f32.mrf.mxu0
        %v5502 = vadd.f32 %v5489, %v5501
        %v5503 = vpop.f32.mrf.mxu0
        %5504 = vdwg.mxu0
        %v5505 = vmax.f32 %v5502, 0.0
        %5506 = vst.msk [vmem:[#allocation9] sm:$0x3f] %vm4156, %v5505
        %v5507 = vld [vmem:[#allocation9] sm:$0x1]
        %v5508 = vld [vmem:[#allocation9 + $0x1] sm:$0x1]
        %v5509 = vld [vmem:[#allocation9 + $0x4] sm:$0x1]
        %v5510 = vld [vmem:[#allocation9 + $0x5] sm:$0x1]
        %v5511 = vmax.f32 %v5507, %v5508
        %v5512 = vmax.f32 %v5509, %v5510
        %v5513 = vmax.f32 %v5511, %v5512
        %vm5514 = vcmask 122880
        %5515 = vst.msk [vmem:[#allocation10] sm:$0x1] %vm5514, %v5513
        %v5516 = vld [vmem:[#allocation10] sm:$0x1]
        %v5517 = vld [vmem:[%s7] sm:$0xff]
        %v5518 = vld [vmem:[%s7 + $0x8] sm:$0xff]
        %v5519 = vld [vmem:[%s8] sm:$0x1]
        %v5521 = vsel %vm4101, %v5516, 0
        %5523 = vmatpush.msra.mxu0 0.0
        %5524 = vmatpush.msra.mxu0 0.0
        %5525 = vmatpush.msra.mxu0 0.0
        %5526 = vmatpush.msra.mxu0 0.0
        %5527 = vmatpush.msra.mxu0 0.0
        %5528 = vmatpush.msra.mxu0 0.0
        %5529 = vmatpush.msra.mxu0 0.0
        %5530 = vmatpush.msra.mxu0 0.0
        %5531 = vmatpush.msra.mxu0 0.0
        %5532 = vmatpush.msra.mxu0 0.0
        %5533 = vmatpush.msra.mxu0 0.0
        %5534 = vmatpush.msra.mxu0 0.0
        %5535 = vmatpush.msra.mxu0 0.0
        %5536 = vmatpush.msra.mxu0 0.0
        %5537 = vmatpush.msra.mxu0 %v5518
        %5538 = vmatpush.msra.mxu0 %v5517
        %5539 = vmatmul.f32.gmra.mxu0 %v5521
        %v5540 = vpop.f32.mrf.mxu0
        %v5541 = vadd.f32 %v5519, %v5540
        %5542 = vdwg.mxu0
        %vm5543 = vcmask 8192
        %5544 = vst.msk [vmem:[%s324] sm:$0x1] %vm5543, %v5541
        %s5545 = sand.u32 %s225, 1
        %s5546 = scalar_lea.sflag [#allocation12], %s5545
        %s5547 = sand.u32 %s225, 1
        %s5548 = scalar_lea.vmem [#allocation11], %s5547
        // Predicated region
        $region57: #{cnn_forward.1} parent=55 // pred_check
          %p5549 = pneg %p235
        $region58: #{cnn_forward.1} parent=55 // pred_check_branch
          %5551 = sbr.rel (%p5549) target = $region60
        $region59: #{cnn_forward.1} parent=55 // pred_region
          %5553 = vsyncadd %s5546, 0
          %s5554 = scalar_lea.hbm %s9, %s23
          %s5556 = sshll.u32 %s5548, 4
          %s5557 = int_to_ptr.vmem [resolvable:$true] %s5556
          %s5558 = sshll.u32 %s5554, 4
          %s5559 = int_to_ptr.hbm [resolvable:$true] %s5558
          %5561 = dma.vmem_to_hbm [thread:$0]  %s5557, 16, %s5559, %s5546
        $region60: #{cnn_forward.1} parent=55 // pred_fallthru
          _
      $region56: #{cnn_forward.1} parent=5 // pred_fallthru
        _
      %p5562 = scmp.le.s32.totalorder 2, %s18
      // Predicated region
      $region61: #{cnn_forward.1} parent=5 // pred_check
        %p5563 = pneg %p5562
      $region62: #{cnn_forward.1} parent=5 // pred_check_branch
        %5565 = sbr.rel (%p5563) target = $region64
      $region63: #{cnn_forward.1} parent=5 // pred_region
        %s5566 = ssub.s32 %s18, 2
        // Predicated region
        $region65: #{cnn_forward.1} parent=63 // pred_check
          %p5567 = pneg %p241
        $region66: #{cnn_forward.1} parent=63 // pred_check_branch
          %5569 = sbr.rel (%p5567) target = $region68
        $region67: #{cnn_forward.1} parent=63 // pred_region
          %s5570 = sand.u32 %s226, 1
          %s5571 = scalar_lea.sflag [#allocation12], %s5570
          %s5572 = sand.u32 %s226, 1
          %s5573 = scalar_lea.vmem [#allocation11], %s5572
          %5575 = dma.done %s5571, 16
        $region68: #{cnn_forward.1} parent=63 // pred_fallthru
          _
      $region64: #{cnn_forward.1} parent=5 // pred_fallthru
        _
    $region6: #{cnn_forward.1} parent=1 // loop_footer
      %s22 = sadd.s32 1, %s18
    $region7: #{cnn_forward.1} parent=1 // loop_footer_branch
      %17 = sbr.rel target = $region3
    $region8: #{cnn_forward.1} parent=1 // loop_exit
      _
    %5576 = vsyncpa [#allocation12], 1
    %s5577 = scalar_lea.sflag [#allocation12], 1
    %5578 = vsyncpa %s5577, 1

</llo_original>
